<compile_context>
chip_gen: v5e
topology: v5e:2x2
jax: 0.10.0
libtpu: 0.0.40
codegen_flags: <defaults>
</compile_context>

<pallas_src>
import numpy as np
import jax
import jax.numpy as jnp
from jax.experimental import pallas as pl
from jax.experimental.pallas import tpu as pltpu


# ----------------------------------------------------------------------------
# Deterministic parameter setup (matches torch gaussian_kernel(size, sigma))
# ----------------------------------------------------------------------------
def gaussian_taps(size, sigma):
    coords = np.arange(size, dtype=np.float32) - (size // 2)
    g = np.exp(-(coords ** 2) / (2.0 * sigma ** 2)).astype(np.float32)
    g = g / g.sum()
    return [float(v) for v in g]


def band_mats(H, W, taps):
    """Banded matrices for the separable 'valid' gaussian conv."""
    ws = len(taps)
    Hc, Wc = H - ws + 1, W - ws + 1
    Bh = np.zeros((Hc, H), np.float32)
    for i in range(Hc):
        for k in range(ws):
            Bh[i, i + k] = taps[k]
    Bw = np.zeros((W, Wc), np.float32)
    for j in range(Wc):
        for k in range(ws):
            Bw[j + k, j] = taps[k]
    return Bh, Bw


def pool_mats(H, W):
    """Matrices so Ph @ x @ Pw == avg_pool2d(x, 2, stride=2,
    padding=(H%2, W%2), count_include_pad=True)."""
    ph_pad, pw_pad = H % 2, W % 2
    Ho = (H + 2 * ph_pad) // 2
    Wo = (W + 2 * pw_pad) // 2
    Ph = np.zeros((Ho, H), np.float32)
    for i in range(Ho):
        for k in range(2):
            r = 2 * i + k - ph_pad
            if 0 <= r < H:
                Ph[i, r] = 0.5
    Pw = np.zeros((W, Wo), np.float32)
    for j in range(Wo):
        for k in range(2):
            c = 2 * j + k - pw_pad
            if 0 <= c < W:
                Pw[c, j] = 0.5
    return Ph, Pw, Ho, Wo


# ----------------------------------------------------------------------------
# Fused MS-SSIM pyramid kernel (one (n, c) plane per grid step)
# ----------------------------------------------------------------------------
def make_msssim_kernel(level_shapes, ws, C1, C2, levels):
    def kernel(*refs):
        gen_ref, gt_ref = refs[0], refs[1]
        base = 2
        bw_refs = refs[base:base + levels]; base += levels
        bhb_refs = refs[base:base + levels]; base += levels
        ph_refs = refs[base:base + levels - 1]; base += levels - 1
        pw_refs = refs[base:base + levels - 1]; base += levels - 1
        out_ref = refs[base]

        # normalize (x + 1) / 2 in-kernel
        x = (gen_ref[0, 0] + 1.0) * 0.5
        y = (gt_ref[0, 0] + 1.0) * 0.5

        results = []  # (1,1) per level: cs for levels 0..3, ssim for level 4
        for l in range(levels):
            H, W = level_shapes[l]
            Hc, Wc = H - ws + 1, W - ws + 1
            inv_area = 1.0 / float(Hc * Wc)

            # Batched separable gaussian filtering on the MXU.
            slab = jnp.concatenate([x, y, x * x, y * y, x * y], axis=0)  # (5H, W)
            t = jnp.dot(slab, bw_refs[l][...],
                        preferred_element_type=jnp.float32)             # (5H, Wc)
            f = jnp.dot(bhb_refs[l][...], t,
                        preferred_element_type=jnp.float32)             # (5Hc, Wc)

            mu1 = f[0 * Hc:1 * Hc, :]
            mu2 = f[1 * Hc:2 * Hc, :]
            exx = f[2 * Hc:3 * Hc, :]
            eyy = f[3 * Hc:4 * Hc, :]
            exy = f[4 * Hc:5 * Hc, :]

            mu1_sq = mu1 * mu1
            mu2_sq = mu2 * mu2
            mu1_mu2 = mu1 * mu2
            sigma1_sq = exx - mu1_sq
            sigma2_sq = eyy - mu2_sq
            sigma12 = exy - mu1_mu2

            d1 = mu1_sq + mu2_sq + C1
            d2 = sigma1_sq + sigma2_sq + C2
            n2 = 2.0 * sigma12 + C2
            r = 1.0 / (d1 * d2)          # single reciprocal per level
            cs_map = n2 * d1 * r

            if l < levels - 1:
                results.append(jnp.sum(cs_map, keepdims=True) * inv_area)
                # 2x2 average pool (count_include_pad) via two matmuls / image
                x = jnp.dot(ph_refs[l][...],
                            jnp.dot(x, pw_refs[l][...],
                                    preferred_element_type=jnp.float32),
                            preferred_element_type=jnp.float32)
                y = jnp.dot(ph_refs[l][...],
                            jnp.dot(y, pw_refs[l][...],
                                    preferred_element_type=jnp.float32),
                            preferred_element_type=jnp.float32)
            else:
                n1 = 2.0 * mu1_mu2 + C1
                ssim_map = n1 * n2 * r
                results.append(jnp.sum(ssim_map, keepdims=True) * inv_area)

        # One lane-dense (8, 128) store: row l lane 0 carries result l.
        sub = jax.lax.broadcasted_iota(jnp.int32, (8, 128), 0)
        tile = jnp.zeros((8, 128), jnp.float32)
        for i, v in enumerate(results):
            tile = tile + jnp.where(sub == i, v, 0.0)
        out_ref[0, 0] = tile

    return kernel


# ----------------------------------------------------------------------------
# MS-SSIM forward: 1 - ms_ssim((gen+1)/2, (gt+1)/2)
# ----------------------------------------------------------------------------
def ms_ssim_loss(gen_frames, gt_frames):
    N, C, H, W = gen_frames.shape
    levels = 5
    weights = jnp.asarray([0.0448, 0.2856, 0.3001, 0.2363, 0.1333], jnp.float32)

    win_size = 3 if W < 256 else 11
    taps = gaussian_taps(win_size, 1.5)

    data_range = 1.0
    K1, K2 = 0.01, 0.03
    C1 = (K1 * data_range) ** 2
    C2 = (K2 * data_range) ** 2

    # Precompute per-level banded-filter / pooling matrices (compile-time).
    level_shapes = []
    bw_list, bhb_list, ph_list, pw_list = [], [], [], []
    h, w = H, W
    eye5 = np.eye(5, dtype=np.float32)
    for l in range(levels):
        assert h >= win_size and w >= win_size, "level smaller than window"
        level_shapes.append((h, w))
        Bh, Bw = band_mats(h, w, taps)
        bw_list.append(jnp.asarray(Bw))
        bhb_list.append(jnp.asarray(np.kron(eye5, Bh)))  # block-diag H-pass op
        if l < levels - 1:
            Ph, Pw, ho, wo = pool_mats(h, w)
            ph_list.append(jnp.asarray(Ph))
            pw_list.append(jnp.asarray(Pw))
            h, w = ho, wo

    kernel = make_msssim_kernel(level_shapes, win_size, C1, C2, levels)

    img_spec = pl.BlockSpec((1, 1, H, W), lambda n, c: (n, c, 0, 0))

    def mat_spec(a):
        return pl.BlockSpec(a.shape, lambda n, c: (0, 0))

    mats = bw_list + bhb_list + ph_list + pw_list
    in_specs = [img_spec, img_spec] + [mat_spec(a) for a in mats]

    out = pl.pallas_call(
        kernel,
        out_shape=jax.ShapeDtypeStruct((N, C, 8, 128), jnp.float32),
        grid=(N, C),
        in_specs=in_specs,
        out_specs=pl.BlockSpec((1, 1, 8, 128), lambda n, c: (n, c, 0, 0)),
        compiler_params=pltpu.CompilerParams(
            dimension_semantics=("parallel", "parallel"),
            vmem_limit_bytes=32 * 1024 * 1024),
    )(gen_frames, gt_frames, *mats)

    # rows 0..3 = cs per level, row 4 = ssim of the last level
    vals = jax.nn.relu(out[:, :, :levels, 0])                    # (N, C, 5)
    ms_ssim_val = jnp.prod(vals ** weights[None, None, :], axis=-1)
    return 1.0 - jnp.mean(ms_ssim_val)


if __name__ == "__main__":
    key = jax.random.PRNGKey(0)
    k1, k2 = jax.random.split(key)
    # H=W=64 so all 5 MS-SSIM scales (64, 32, 16, 8, 4) stay >= win_size=3,
    # matching the validity constraints of the PyTorch module.
    gen_frames = jax.random.uniform(k1, (2, 3, 64, 64), jnp.float32, -1.0, 1.0)
    gt_frames = jax.random.uniform(k2, (2, 3, 64, 64), jnp.float32, -1.0, 1.0)

    loss = jax.jit(ms_ssim_loss)(gen_frames, gt_frames)
    jax.block_until_ready(loss)
    print("KERNEL_OK")
</pallas_src>

<mosaic_0001>
module attributes {stable_mosaic.version = 11 : i64} {
  func.func @kernel(%arg0: i32, %arg1: i32, %arg2: memref<1x1x64x64xf32, #tpu.memory_space<vmem>>, %arg3: memref<1x1x64x64xf32, #tpu.memory_space<vmem>>, %arg4: memref<64x62xf32, #tpu.memory_space<vmem>>, %arg5: memref<32x30xf32, #tpu.memory_space<vmem>>, %arg6: memref<16x14xf32, #tpu.memory_space<vmem>>, %arg7: memref<8x6xf32, #tpu.memory_space<vmem>>, %arg8: memref<4x2xf32, #tpu.memory_space<vmem>>, %arg9: memref<310x320xf32, #tpu.memory_space<vmem>>, %arg10: memref<150x160xf32, #tpu.memory_space<vmem>>, %arg11: memref<70x80xf32, #tpu.memory_space<vmem>>, %arg12: memref<30x40xf32, #tpu.memory_space<vmem>>, %arg13: memref<10x20xf32, #tpu.memory_space<vmem>>, %arg14: memref<32x64xf32, #tpu.memory_space<vmem>>, %arg15: memref<16x32xf32, #tpu.memory_space<vmem>>, %arg16: memref<8x16xf32, #tpu.memory_space<vmem>>, %arg17: memref<4x8xf32, #tpu.memory_space<vmem>>, %arg18: memref<64x32xf32, #tpu.memory_space<vmem>>, %arg19: memref<32x16xf32, #tpu.memory_space<vmem>>, %arg20: memref<16x8xf32, #tpu.memory_space<vmem>>, %arg21: memref<8x4xf32, #tpu.memory_space<vmem>>, %arg22: memref<1x1x8x128xf32, #tpu.memory_space<vmem>>) attributes {dimension_semantics = [#tpu.dimension_semantics<parallel>, #tpu.dimension_semantics<parallel>], iteration_bounds = array<i64: 2, 3>, scalar_prefetch = 0 : i64, scratch_operands = 0 : i64, tpu.core_type = #tpu.core_type<tc>, window_params = [{transform_indices = @transform_0, window_bounds = array<i64: 1, 1, 64, 64>}, {transform_indices = @transform_1, window_bounds = array<i64: 1, 1, 64, 64>}, {pipeline_mode = #tpu.pipeline_mode<synchronous>, transform_indices = @transform_2, window_bounds = array<i64: 64, 62>}, {pipeline_mode = #tpu.pipeline_mode<synchronous>, transform_indices = @transform_3, window_bounds = array<i64: 32, 30>}, {pipeline_mode = #tpu.pipeline_mode<synchronous>, transform_indices = @transform_4, window_bounds = array<i64: 16, 14>}, {pipeline_mode = #tpu.pipeline_mode<synchronous>, transform_indices = @transform_5, window_bounds = array<i64: 8, 6>}, {pipeline_mode = #tpu.pipeline_mode<synchronous>, transform_indices = @transform_6, window_bounds = array<i64: 4, 2>}, {pipeline_mode = #tpu.pipeline_mode<synchronous>, transform_indices = @transform_7, window_bounds = array<i64: 310, 320>}, {pipeline_mode = #tpu.pipeline_mode<synchronous>, transform_indices = @transform_8, window_bounds = array<i64: 150, 160>}, {pipeline_mode = #tpu.pipeline_mode<synchronous>, transform_indices = @transform_9, window_bounds = array<i64: 70, 80>}, {pipeline_mode = #tpu.pipeline_mode<synchronous>, transform_indices = @transform_10, window_bounds = array<i64: 30, 40>}, {pipeline_mode = #tpu.pipeline_mode<synchronous>, transform_indices = @transform_11, window_bounds = array<i64: 10, 20>}, {pipeline_mode = #tpu.pipeline_mode<synchronous>, transform_indices = @transform_12, window_bounds = array<i64: 32, 64>}, {pipeline_mode = #tpu.pipeline_mode<synchronous>, transform_indices = @transform_13, window_bounds = array<i64: 16, 32>}, {pipeline_mode = #tpu.pipeline_mode<synchronous>, transform_indices = @transform_14, window_bounds = array<i64: 8, 16>}, {pipeline_mode = #tpu.pipeline_mode<synchronous>, transform_indices = @transform_15, window_bounds = array<i64: 4, 8>}, {pipeline_mode = #tpu.pipeline_mode<synchronous>, transform_indices = @transform_16, window_bounds = array<i64: 64, 32>}, {pipeline_mode = #tpu.pipeline_mode<synchronous>, transform_indices = @transform_17, window_bounds = array<i64: 32, 16>}, {pipeline_mode = #tpu.pipeline_mode<synchronous>, transform_indices = @transform_18, window_bounds = array<i64: 16, 8>}, {pipeline_mode = #tpu.pipeline_mode<synchronous>, transform_indices = @transform_19, window_bounds = array<i64: 8, 4>}, {transform_indices = @transform_20, window_bounds = array<i64: 1, 1, 8, 128>}]} {
    %c0 = arith.constant 0 : index
    %c0_0 = arith.constant 0 : index
    %c0_1 = arith.constant 0 : index
    %c0_2 = arith.constant 0 : index
    %0 = vector.load %arg2[%c0, %c0_0, %c0_1, %c0_2] : memref<1x1x64x64xf32, #tpu.memory_space<vmem>>, vector<1x1x64x64xf32>
    %1 = vector.shape_cast %0 : vector<1x1x64x64xf32> to vector<64x64xf32>
    %cst = arith.constant 1.000000e+00 : f32
    %2 = vector.broadcast %cst : f32 to vector<64x64xf32>
    %3 = arith.addf %1, %2 : vector<64x64xf32>
    %cst_3 = arith.constant 5.000000e-01 : f32
    %4 = vector.broadcast %cst_3 : f32 to vector<64x64xf32>
    %5 = arith.mulf %3, %4 : vector<64x64xf32>
    %c0_4 = arith.constant 0 : index
    %c0_5 = arith.constant 0 : index
    %c0_6 = arith.constant 0 : index
    %c0_7 = arith.constant 0 : index
    %6 = vector.load %arg3[%c0_4, %c0_5, %c0_6, %c0_7] : memref<1x1x64x64xf32, #tpu.memory_space<vmem>>, vector<1x1x64x64xf32>
    %7 = vector.shape_cast %6 : vector<1x1x64x64xf32> to vector<64x64xf32>
    %cst_8 = arith.constant 1.000000e+00 : f32
    %8 = vector.broadcast %cst_8 : f32 to vector<64x64xf32>
    %9 = arith.addf %7, %8 : vector<64x64xf32>
    %cst_9 = arith.constant 5.000000e-01 : f32
    %10 = vector.broadcast %cst_9 : f32 to vector<64x64xf32>
    %11 = arith.mulf %9, %10 : vector<64x64xf32>
    %12 = arith.mulf %5, %5 : vector<64x64xf32>
    %13 = arith.mulf %11, %11 : vector<64x64xf32>
    %14 = arith.mulf %5, %11 : vector<64x64xf32>
    %15 = tpu.concatenate %5, %11, %12, %13, %14 in 0 : vector<64x64xf32>, vector<64x64xf32>, vector<64x64xf32>, vector<64x64xf32>, vector<64x64xf32> -> vector<320x64xf32>
    %c0_10 = arith.constant 0 : index
    %c0_11 = arith.constant 0 : index
    %16 = vector.load %arg4[%c0_10, %c0_11] : memref<64x62xf32, #tpu.memory_space<vmem>>, vector<64x62xf32>
    %cst_12 = arith.constant dense<0.000000e+00> : vector<320x62xf32>
    %17 = tpu.matmul %15, %16, %cst_12 {dimension_numbers = #tpu.dot_dimension_numbers<[1], [0], [0], [1], [0, 0, 1, 1], [], []>} : vector<320x64xf32>, vector<64x62xf32>, vector<320x62xf32> -> vector<320x62xf32>
    %c0_13 = arith.constant 0 : index
    %c0_14 = arith.constant 0 : index
    %18 = vector.load %arg9[%c0_13, %c0_14] : memref<310x320xf32, #tpu.memory_space<vmem>>, vector<310x320xf32>
    %cst_15 = arith.constant dense<0.000000e+00> : vector<310x62xf32>
    %19 = tpu.matmul %18, %17, %cst_15 {dimension_numbers = #tpu.dot_dimension_numbers<[1], [0], [0], [1], [0, 0, 1, 1], [], []>} : vector<310x320xf32>, vector<320x62xf32>, vector<310x62xf32> -> vector<310x62xf32>
    %20 = vector.extract_strided_slice %19 {offsets = [0, 0], sizes = [62, 62], strides = [1, 1]} : vector<310x62xf32> to vector<62x62xf32>
    %21 = vector.extract_strided_slice %19 {offsets = [62, 0], sizes = [62, 62], strides = [1, 1]} : vector<310x62xf32> to vector<62x62xf32>
    %22 = vector.extract_strided_slice %19 {offsets = [124, 0], sizes = [62, 62], strides = [1, 1]} : vector<310x62xf32> to vector<62x62xf32>
    %23 = vector.extract_strided_slice %19 {offsets = [186, 0], sizes = [62, 62], strides = [1, 1]} : vector<310x62xf32> to vector<62x62xf32>
    %24 = vector.extract_strided_slice %19 {offsets = [248, 0], sizes = [62, 62], strides = [1, 1]} : vector<310x62xf32> to vector<62x62xf32>
    %25 = arith.mulf %20, %20 : vector<62x62xf32>
    %26 = arith.mulf %21, %21 : vector<62x62xf32>
    %27 = arith.mulf %20, %21 : vector<62x62xf32>
    %28 = arith.subf %22, %25 : vector<62x62xf32>
    %29 = arith.subf %23, %26 : vector<62x62xf32>
    %30 = arith.subf %24, %27 : vector<62x62xf32>
    %31 = arith.addf %25, %26 : vector<62x62xf32>
    %cst_16 = arith.constant 9.99999974E-5 : f32
    %32 = vector.broadcast %cst_16 : f32 to vector<62x62xf32>
    %33 = arith.addf %31, %32 : vector<62x62xf32>
    %34 = arith.addf %28, %29 : vector<62x62xf32>
    %cst_17 = arith.constant 8.99999984E-4 : f32
    %35 = vector.broadcast %cst_17 : f32 to vector<62x62xf32>
    %36 = arith.addf %34, %35 : vector<62x62xf32>
    %cst_18 = arith.constant 2.000000e+00 : f32
    %37 = vector.broadcast %cst_18 : f32 to vector<62x62xf32>
    %38 = arith.mulf %37, %30 : vector<62x62xf32>
    %cst_19 = arith.constant 8.99999984E-4 : f32
    %39 = vector.broadcast %cst_19 : f32 to vector<62x62xf32>
    %40 = arith.addf %38, %39 : vector<62x62xf32>
    %41 = arith.mulf %33, %36 : vector<62x62xf32>
    %cst_20 = arith.constant 1.000000e+00 : f32
    %42 = vector.broadcast %cst_20 : f32 to vector<62x62xf32>
    %43 = arith.divf %42, %41 : vector<62x62xf32>
    %44 = arith.mulf %40, %33 : vector<62x62xf32>
    %45 = arith.mulf %44, %43 : vector<62x62xf32>
    %46 = vector.shape_cast %45 : vector<62x62xf32> to vector<1x62x62xf32>
    %cst_21 = arith.constant dense<0.000000e+00> : vector<1xf32>
    %47 = vector.multi_reduction <add>, %46, %cst_21 [1, 2] : vector<1x62x62xf32> to vector<1xf32>
    %48 = vector.shape_cast %47 : vector<1xf32> to vector<1x1x1xf32>
    %49 = vector.extract %48[0, 0, 0] : f32 from vector<1x1x1xf32>
    %50 = vector.broadcast %49 : f32 to vector<1x1xf32>
    %cst_22 = arith.constant 2.60145694E-4 : f32
    %51 = vector.broadcast %cst_22 : f32 to vector<1x1xf32>
    %52 = arith.mulf %50, %51 : vector<1x1xf32>
    %c0_23 = arith.constant 0 : index
    %c0_24 = arith.constant 0 : index
    %53 = vector.load %arg14[%c0_23, %c0_24] : memref<32x64xf32, #tpu.memory_space<vmem>>, vector<32x64xf32>
    %c0_25 = arith.constant 0 : index
    %c0_26 = arith.constant 0 : index
    %54 = vector.load %arg18[%c0_25, %c0_26] : memref<64x32xf32, #tpu.memory_space<vmem>>, vector<64x32xf32>
    %cst_27 = arith.constant dense<0.000000e+00> : vector<64x32xf32>
    %55 = tpu.matmul %5, %54, %cst_27 {dimension_numbers = #tpu.dot_dimension_numbers<[1], [0], [0], [1], [0, 0, 1, 1], [], []>} : vector<64x64xf32>, vector<64x32xf32>, vector<64x32xf32> -> vector<64x32xf32>
    %cst_28 = arith.constant dense<0.000000e+00> : vector<32x32xf32>
    %56 = tpu.matmul %53, %55, %cst_28 {dimension_numbers = #tpu.dot_dimension_numbers<[1], [0], [0], [1], [0, 0, 1, 1], [], []>} : vector<32x64xf32>, vector<64x32xf32>, vector<32x32xf32> -> vector<32x32xf32>
    %c0_29 = arith.constant 0 : index
    %c0_30 = arith.constant 0 : index
    %57 = vector.load %arg14[%c0_29, %c0_30] : memref<32x64xf32, #tpu.memory_space<vmem>>, vector<32x64xf32>
    %c0_31 = arith.constant 0 : index
    %c0_32 = arith.constant 0 : index
    %58 = vector.load %arg18[%c0_31, %c0_32] : memref<64x32xf32, #tpu.memory_space<vmem>>, vector<64x32xf32>
    %cst_33 = arith.constant dense<0.000000e+00> : vector<64x32xf32>
    %59 = tpu.matmul %11, %58, %cst_33 {dimension_numbers = #tpu.dot_dimension_numbers<[1], [0], [0], [1], [0, 0, 1, 1], [], []>} : vector<64x64xf32>, vector<64x32xf32>, vector<64x32xf32> -> vector<64x32xf32>
    %cst_34 = arith.constant dense<0.000000e+00> : vector<32x32xf32>
    %60 = tpu.matmul %57, %59, %cst_34 {dimension_numbers = #tpu.dot_dimension_numbers<[1], [0], [0], [1], [0, 0, 1, 1], [], []>} : vector<32x64xf32>, vector<64x32xf32>, vector<32x32xf32> -> vector<32x32xf32>
    %61 = arith.mulf %56, %56 : vector<32x32xf32>
    %62 = arith.mulf %60, %60 : vector<32x32xf32>
    %63 = arith.mulf %56, %60 : vector<32x32xf32>
    %64 = tpu.concatenate %56, %60, %61, %62, %63 in 0 : vector<32x32xf32>, vector<32x32xf32>, vector<32x32xf32>, vector<32x32xf32>, vector<32x32xf32> -> vector<160x32xf32>
    %c0_35 = arith.constant 0 : index
    %c0_36 = arith.constant 0 : index
    %65 = vector.load %arg5[%c0_35, %c0_36] : memref<32x30xf32, #tpu.memory_space<vmem>>, vector<32x30xf32>
    %cst_37 = arith.constant dense<0.000000e+00> : vector<160x30xf32>
    %66 = tpu.matmul %64, %65, %cst_37 {dimension_numbers = #tpu.dot_dimension_numbers<[1], [0], [0], [1], [0, 0, 1, 1], [], []>} : vector<160x32xf32>, vector<32x30xf32>, vector<160x30xf32> -> vector<160x30xf32>
    %c0_38 = arith.constant 0 : index
    %c0_39 = arith.constant 0 : index
    %67 = vector.load %arg10[%c0_38, %c0_39] : memref<150x160xf32, #tpu.memory_space<vmem>>, vector<150x160xf32>
    %cst_40 = arith.constant dense<0.000000e+00> : vector<150x30xf32>
    %68 = tpu.matmul %67, %66, %cst_40 {dimension_numbers = #tpu.dot_dimension_numbers<[1], [0], [0], [1], [0, 0, 1, 1], [], []>} : vector<150x160xf32>, vector<160x30xf32>, vector<150x30xf32> -> vector<150x30xf32>
    %69 = vector.extract_strided_slice %68 {offsets = [0, 0], sizes = [30, 30], strides = [1, 1]} : vector<150x30xf32> to vector<30x30xf32>
    %70 = vector.extract_strided_slice %68 {offsets = [30, 0], sizes = [30, 30], strides = [1, 1]} : vector<150x30xf32> to vector<30x30xf32>
    %71 = vector.extract_strided_slice %68 {offsets = [60, 0], sizes = [30, 30], strides = [1, 1]} : vector<150x30xf32> to vector<30x30xf32>
    %72 = vector.extract_strided_slice %68 {offsets = [90, 0], sizes = [30, 30], strides = [1, 1]} : vector<150x30xf32> to vector<30x30xf32>
    %73 = vector.extract_strided_slice %68 {offsets = [120, 0], sizes = [30, 30], strides = [1, 1]} : vector<150x30xf32> to vector<30x30xf32>
    %74 = arith.mulf %69, %69 : vector<30x30xf32>
    %75 = arith.mulf %70, %70 : vector<30x30xf32>
    %76 = arith.mulf %69, %70 : vector<30x30xf32>
    %77 = arith.subf %71, %74 : vector<30x30xf32>
    %78 = arith.subf %72, %75 : vector<30x30xf32>
    %79 = arith.subf %73, %76 : vector<30x30xf32>
    %80 = arith.addf %74, %75 : vector<30x30xf32>
    %cst_41 = arith.constant 9.99999974E-5 : f32
    %81 = vector.broadcast %cst_41 : f32 to vector<30x30xf32>
    %82 = arith.addf %80, %81 : vector<30x30xf32>
    %83 = arith.addf %77, %78 : vector<30x30xf32>
    %cst_42 = arith.constant 8.99999984E-4 : f32
    %84 = vector.broadcast %cst_42 : f32 to vector<30x30xf32>
    %85 = arith.addf %83, %84 : vector<30x30xf32>
    %cst_43 = arith.constant 2.000000e+00 : f32
    %86 = vector.broadcast %cst_43 : f32 to vector<30x30xf32>
    %87 = arith.mulf %86, %79 : vector<30x30xf32>
    %cst_44 = arith.constant 8.99999984E-4 : f32
    %88 = vector.broadcast %cst_44 : f32 to vector<30x30xf32>
    %89 = arith.addf %87, %88 : vector<30x30xf32>
    %90 = arith.mulf %82, %85 : vector<30x30xf32>
    %cst_45 = arith.constant 1.000000e+00 : f32
    %91 = vector.broadcast %cst_45 : f32 to vector<30x30xf32>
    %92 = arith.divf %91, %90 : vector<30x30xf32>
    %93 = arith.mulf %89, %82 : vector<30x30xf32>
    %94 = arith.mulf %93, %92 : vector<30x30xf32>
    %95 = vector.shape_cast %94 : vector<30x30xf32> to vector<1x30x30xf32>
    %cst_46 = arith.constant dense<0.000000e+00> : vector<1xf32>
    %96 = vector.multi_reduction <add>, %95, %cst_46 [1, 2] : vector<1x30x30xf32> to vector<1xf32>
    %97 = vector.shape_cast %96 : vector<1xf32> to vector<1x1x1xf32>
    %98 = vector.extract %97[0, 0, 0] : f32 from vector<1x1x1xf32>
    %99 = vector.broadcast %98 : f32 to vector<1x1xf32>
    %cst_47 = arith.constant 0.00111111114 : f32
    %100 = vector.broadcast %cst_47 : f32 to vector<1x1xf32>
    %101 = arith.mulf %99, %100 : vector<1x1xf32>
    %c0_48 = arith.constant 0 : index
    %c0_49 = arith.constant 0 : index
    %102 = vector.load %arg15[%c0_48, %c0_49] : memref<16x32xf32, #tpu.memory_space<vmem>>, vector<16x32xf32>
    %c0_50 = arith.constant 0 : index
    %c0_51 = arith.constant 0 : index
    %103 = vector.load %arg19[%c0_50, %c0_51] : memref<32x16xf32, #tpu.memory_space<vmem>>, vector<32x16xf32>
    %cst_52 = arith.constant dense<0.000000e+00> : vector<32x16xf32>
    %104 = tpu.matmul %56, %103, %cst_52 {dimension_numbers = #tpu.dot_dimension_numbers<[1], [0], [0], [1], [0, 0, 1, 1], [], []>} : vector<32x32xf32>, vector<32x16xf32>, vector<32x16xf32> -> vector<32x16xf32>
    %cst_53 = arith.constant dense<0.000000e+00> : vector<16x16xf32>
    %105 = tpu.matmul %102, %104, %cst_53 {dimension_numbers = #tpu.dot_dimension_numbers<[1], [0], [0], [1], [0, 0, 1, 1], [], []>} : vector<16x32xf32>, vector<32x16xf32>, vector<16x16xf32> -> vector<16x16xf32>
    %c0_54 = arith.constant 0 : index
    %c0_55 = arith.constant 0 : index
    %106 = vector.load %arg15[%c0_54, %c0_55] : memref<16x32xf32, #tpu.memory_space<vmem>>, vector<16x32xf32>
    %c0_56 = arith.constant 0 : index
    %c0_57 = arith.constant 0 : index
    %107 = vector.load %arg19[%c0_56, %c0_57] : memref<32x16xf32, #tpu.memory_space<vmem>>, vector<32x16xf32>
    %cst_58 = arith.constant dense<0.000000e+00> : vector<32x16xf32>
    %108 = tpu.matmul %60, %107, %cst_58 {dimension_numbers = #tpu.dot_dimension_numbers<[1], [0], [0], [1], [0, 0, 1, 1], [], []>} : vector<32x32xf32>, vector<32x16xf32>, vector<32x16xf32> -> vector<32x16xf32>
    %cst_59 = arith.constant dense<0.000000e+00> : vector<16x16xf32>
    %109 = tpu.matmul %106, %108, %cst_59 {dimension_numbers = #tpu.dot_dimension_numbers<[1], [0], [0], [1], [0, 0, 1, 1], [], []>} : vector<16x32xf32>, vector<32x16xf32>, vector<16x16xf32> -> vector<16x16xf32>
    %110 = arith.mulf %105, %105 : vector<16x16xf32>
    %111 = arith.mulf %109, %109 : vector<16x16xf32>
    %112 = arith.mulf %105, %109 : vector<16x16xf32>
    %113 = tpu.concatenate %105, %109, %110, %111, %112 in 0 : vector<16x16xf32>, vector<16x16xf32>, vector<16x16xf32>, vector<16x16xf32>, vector<16x16xf32> -> vector<80x16xf32>
    %c0_60 = arith.constant 0 : index
    %c0_61 = arith.constant 0 : index
    %114 = vector.load %arg6[%c0_60, %c0_61] : memref<16x14xf32, #tpu.memory_space<vmem>>, vector<16x14xf32>
    %cst_62 = arith.constant dense<0.000000e+00> : vector<80x14xf32>
    %115 = tpu.matmul %113, %114, %cst_62 {dimension_numbers = #tpu.dot_dimension_numbers<[1], [0], [0], [1], [0, 0, 1, 1], [], []>} : vector<80x16xf32>, vector<16x14xf32>, vector<80x14xf32> -> vector<80x14xf32>
    %c0_63 = arith.constant 0 : index
    %c0_64 = arith.constant 0 : index
    %116 = vector.load %arg11[%c0_63, %c0_64] : memref<70x80xf32, #tpu.memory_space<vmem>>, vector<70x80xf32>
    %cst_65 = arith.constant dense<0.000000e+00> : vector<70x14xf32>
    %117 = tpu.matmul %116, %115, %cst_65 {dimension_numbers = #tpu.dot_dimension_numbers<[1], [0], [0], [1], [0, 0, 1, 1], [], []>} : vector<70x80xf32>, vector<80x14xf32>, vector<70x14xf32> -> vector<70x14xf32>
    %118 = vector.extract_strided_slice %117 {offsets = [0, 0], sizes = [14, 14], strides = [1, 1]} : vector<70x14xf32> to vector<14x14xf32>
    %119 = vector.extract_strided_slice %117 {offsets = [14, 0], sizes = [14, 14], strides = [1, 1]} : vector<70x14xf32> to vector<14x14xf32>
    %120 = vector.extract_strided_slice %117 {offsets = [28, 0], sizes = [14, 14], strides = [1, 1]} : vector<70x14xf32> to vector<14x14xf32>
    %121 = vector.extract_strided_slice %117 {offsets = [42, 0], sizes = [14, 14], strides = [1, 1]} : vector<70x14xf32> to vector<14x14xf32>
    %122 = vector.extract_strided_slice %117 {offsets = [56, 0], sizes = [14, 14], strides = [1, 1]} : vector<70x14xf32> to vector<14x14xf32>
    %123 = arith.mulf %118, %118 : vector<14x14xf32>
    %124 = arith.mulf %119, %119 : vector<14x14xf32>
    %125 = arith.mulf %118, %119 : vector<14x14xf32>
    %126 = arith.subf %120, %123 : vector<14x14xf32>
    %127 = arith.subf %121, %124 : vector<14x14xf32>
    %128 = arith.subf %122, %125 : vector<14x14xf32>
    %129 = arith.addf %123, %124 : vector<14x14xf32>
    %cst_66 = arith.constant 9.99999974E-5 : f32
    %130 = vector.broadcast %cst_66 : f32 to vector<14x14xf32>
    %131 = arith.addf %129, %130 : vector<14x14xf32>
    %132 = arith.addf %126, %127 : vector<14x14xf32>
    %cst_67 = arith.constant 8.99999984E-4 : f32
    %133 = vector.broadcast %cst_67 : f32 to vector<14x14xf32>
    %134 = arith.addf %132, %133 : vector<14x14xf32>
    %cst_68 = arith.constant 2.000000e+00 : f32
    %135 = vector.broadcast %cst_68 : f32 to vector<14x14xf32>
    %136 = arith.mulf %135, %128 : vector<14x14xf32>
    %cst_69 = arith.constant 8.99999984E-4 : f32
    %137 = vector.broadcast %cst_69 : f32 to vector<14x14xf32>
    %138 = arith.addf %136, %137 : vector<14x14xf32>
    %139 = arith.mulf %131, %134 : vector<14x14xf32>
    %cst_70 = arith.constant 1.000000e+00 : f32
    %140 = vector.broadcast %cst_70 : f32 to vector<14x14xf32>
    %141 = arith.divf %140, %139 : vector<14x14xf32>
    %142 = arith.mulf %138, %131 : vector<14x14xf32>
    %143 = arith.mulf %142, %141 : vector<14x14xf32>
    %144 = vector.shape_cast %143 : vector<14x14xf32> to vector<1x14x14xf32>
    %cst_71 = arith.constant dense<0.000000e+00> : vector<1xf32>
    %145 = vector.multi_reduction <add>, %144, %cst_71 [1, 2] : vector<1x14x14xf32> to vector<1xf32>
    %146 = vector.shape_cast %145 : vector<1xf32> to vector<1x1x1xf32>
    %147 = vector.extract %146[0, 0, 0] : f32 from vector<1x1x1xf32>
    %148 = vector.broadcast %147 : f32 to vector<1x1xf32>
    %cst_72 = arith.constant 0.00510204071 : f32
    %149 = vector.broadcast %cst_72 : f32 to vector<1x1xf32>
    %150 = arith.mulf %148, %149 : vector<1x1xf32>
    %c0_73 = arith.constant 0 : index
    %c0_74 = arith.constant 0 : index
    %151 = vector.load %arg16[%c0_73, %c0_74] : memref<8x16xf32, #tpu.memory_space<vmem>>, vector<8x16xf32>
    %c0_75 = arith.constant 0 : index
    %c0_76 = arith.constant 0 : index
    %152 = vector.load %arg20[%c0_75, %c0_76] : memref<16x8xf32, #tpu.memory_space<vmem>>, vector<16x8xf32>
    %cst_77 = arith.constant dense<0.000000e+00> : vector<16x8xf32>
    %153 = tpu.matmul %105, %152, %cst_77 {dimension_numbers = #tpu.dot_dimension_numbers<[1], [0], [0], [1], [0, 0, 1, 1], [], []>} : vector<16x16xf32>, vector<16x8xf32>, vector<16x8xf32> -> vector<16x8xf32>
    %cst_78 = arith.constant dense<0.000000e+00> : vector<8x8xf32>
    %154 = tpu.matmul %151, %153, %cst_78 {dimension_numbers = #tpu.dot_dimension_numbers<[1], [0], [0], [1], [0, 0, 1, 1], [], []>} : vector<8x16xf32>, vector<16x8xf32>, vector<8x8xf32> -> vector<8x8xf32>
    %c0_79 = arith.constant 0 : index
    %c0_80 = arith.constant 0 : index
    %155 = vector.load %arg16[%c0_79, %c0_80] : memref<8x16xf32, #tpu.memory_space<vmem>>, vector<8x16xf32>
    %c0_81 = arith.constant 0 : index
    %c0_82 = arith.constant 0 : index
    %156 = vector.load %arg20[%c0_81, %c0_82] : memref<16x8xf32, #tpu.memory_space<vmem>>, vector<16x8xf32>
    %cst_83 = arith.constant dense<0.000000e+00> : vector<16x8xf32>
    %157 = tpu.matmul %109, %156, %cst_83 {dimension_numbers = #tpu.dot_dimension_numbers<[1], [0], [0], [1], [0, 0, 1, 1], [], []>} : vector<16x16xf32>, vector<16x8xf32>, vector<16x8xf32> -> vector<16x8xf32>
    %cst_84 = arith.constant dense<0.000000e+00> : vector<8x8xf32>
    %158 = tpu.matmul %155, %157, %cst_84 {dimension_numbers = #tpu.dot_dimension_numbers<[1], [0], [0], [1], [0, 0, 1, 1], [], []>} : vector<8x16xf32>, vector<16x8xf32>, vector<8x8xf32> -> vector<8x8xf32>
    %159 = arith.mulf %154, %154 : vector<8x8xf32>
    %160 = arith.mulf %158, %158 : vector<8x8xf32>
    %161 = arith.mulf %154, %158 : vector<8x8xf32>
    %162 = tpu.concatenate %154, %158, %159, %160, %161 in 0 : vector<8x8xf32>, vector<8x8xf32>, vector<8x8xf32>, vector<8x8xf32>, vector<8x8xf32> -> vector<40x8xf32>
    %c0_85 = arith.constant 0 : index
    %c0_86 = arith.constant 0 : index
    %163 = vector.load %arg7[%c0_85, %c0_86] : memref<8x6xf32, #tpu.memory_space<vmem>>, vector<8x6xf32>
    %cst_87 = arith.constant dense<0.000000e+00> : vector<40x6xf32>
    %164 = tpu.matmul %162, %163, %cst_87 {dimension_numbers = #tpu.dot_dimension_numbers<[1], [0], [0], [1], [0, 0, 1, 1], [], []>} : vector<40x8xf32>, vector<8x6xf32>, vector<40x6xf32> -> vector<40x6xf32>
    %c0_88 = arith.constant 0 : index
    %c0_89 = arith.constant 0 : index
    %165 = vector.load %arg12[%c0_88, %c0_89] : memref<30x40xf32, #tpu.memory_space<vmem>>, vector<30x40xf32>
    %cst_90 = arith.constant dense<0.000000e+00> : vector<30x6xf32>
    %166 = tpu.matmul %165, %164, %cst_90 {dimension_numbers = #tpu.dot_dimension_numbers<[1], [0], [0], [1], [0, 0, 1, 1], [], []>} : vector<30x40xf32>, vector<40x6xf32>, vector<30x6xf32> -> vector<30x6xf32>
    %167 = vector.extract_strided_slice %166 {offsets = [0, 0], sizes = [6, 6], strides = [1, 1]} : vector<30x6xf32> to vector<6x6xf32>
    %168 = vector.extract_strided_slice %166 {offsets = [6, 0], sizes = [6, 6], strides = [1, 1]} : vector<30x6xf32> to vector<6x6xf32>
    %169 = vector.extract_strided_slice %166 {offsets = [12, 0], sizes = [6, 6], strides = [1, 1]} : vector<30x6xf32> to vector<6x6xf32>
    %170 = vector.extract_strided_slice %166 {offsets = [18, 0], sizes = [6, 6], strides = [1, 1]} : vector<30x6xf32> to vector<6x6xf32>
    %171 = vector.extract_strided_slice %166 {offsets = [24, 0], sizes = [6, 6], strides = [1, 1]} : vector<30x6xf32> to vector<6x6xf32>
    %172 = arith.mulf %167, %167 : vector<6x6xf32>
    %173 = arith.mulf %168, %168 : vector<6x6xf32>
    %174 = arith.mulf %167, %168 : vector<6x6xf32>
    %175 = arith.subf %169, %172 : vector<6x6xf32>
    %176 = arith.subf %170, %173 : vector<6x6xf32>
    %177 = arith.subf %171, %174 : vector<6x6xf32>
    %178 = arith.addf %172, %173 : vector<6x6xf32>
    %cst_91 = arith.constant 9.99999974E-5 : f32
    %179 = vector.broadcast %cst_91 : f32 to vector<6x6xf32>
    %180 = arith.addf %178, %179 : vector<6x6xf32>
    %181 = arith.addf %175, %176 : vector<6x6xf32>
    %cst_92 = arith.constant 8.99999984E-4 : f32
    %182 = vector.broadcast %cst_92 : f32 to vector<6x6xf32>
    %183 = arith.addf %181, %182 : vector<6x6xf32>
    %cst_93 = arith.constant 2.000000e+00 : f32
    %184 = vector.broadcast %cst_93 : f32 to vector<6x6xf32>
    %185 = arith.mulf %184, %177 : vector<6x6xf32>
    %cst_94 = arith.constant 8.99999984E-4 : f32
    %186 = vector.broadcast %cst_94 : f32 to vector<6x6xf32>
    %187 = arith.addf %185, %186 : vector<6x6xf32>
    %188 = arith.mulf %180, %183 : vector<6x6xf32>
    %cst_95 = arith.constant 1.000000e+00 : f32
    %189 = vector.broadcast %cst_95 : f32 to vector<6x6xf32>
    %190 = arith.divf %189, %188 : vector<6x6xf32>
    %191 = arith.mulf %187, %180 : vector<6x6xf32>
    %192 = arith.mulf %191, %190 : vector<6x6xf32>
    %193 = vector.shape_cast %192 : vector<6x6xf32> to vector<1x6x6xf32>
    %cst_96 = arith.constant dense<0.000000e+00> : vector<1xf32>
    %194 = vector.multi_reduction <add>, %193, %cst_96 [1, 2] : vector<1x6x6xf32> to vector<1xf32>
    %195 = vector.shape_cast %194 : vector<1xf32> to vector<1x1x1xf32>
    %196 = vector.extract %195[0, 0, 0] : f32 from vector<1x1x1xf32>
    %197 = vector.broadcast %196 : f32 to vector<1x1xf32>
    %cst_97 = arith.constant 0.027777778 : f32
    %198 = vector.broadcast %cst_97 : f32 to vector<1x1xf32>
    %199 = arith.mulf %197, %198 : vector<1x1xf32>
    %c0_98 = arith.constant 0 : index
    %c0_99 = arith.constant 0 : index
    %200 = vector.load %arg17[%c0_98, %c0_99] : memref<4x8xf32, #tpu.memory_space<vmem>>, vector<4x8xf32>
    %c0_100 = arith.constant 0 : index
    %c0_101 = arith.constant 0 : index
    %201 = vector.load %arg21[%c0_100, %c0_101] : memref<8x4xf32, #tpu.memory_space<vmem>>, vector<8x4xf32>
    %cst_102 = arith.constant dense<0.000000e+00> : vector<8x4xf32>
    %202 = tpu.matmul %154, %201, %cst_102 {dimension_numbers = #tpu.dot_dimension_numbers<[1], [0], [0], [1], [0, 0, 1, 1], [], []>} : vector<8x8xf32>, vector<8x4xf32>, vector<8x4xf32> -> vector<8x4xf32>
    %cst_103 = arith.constant dense<0.000000e+00> : vector<4x4xf32>
    %203 = tpu.matmul %200, %202, %cst_103 {dimension_numbers = #tpu.dot_dimension_numbers<[1], [0], [0], [1], [0, 0, 1, 1], [], []>} : vector<4x8xf32>, vector<8x4xf32>, vector<4x4xf32> -> vector<4x4xf32>
    %c0_104 = arith.constant 0 : index
    %c0_105 = arith.constant 0 : index
    %204 = vector.load %arg17[%c0_104, %c0_105] : memref<4x8xf32, #tpu.memory_space<vmem>>, vector<4x8xf32>
    %c0_106 = arith.constant 0 : index
    %c0_107 = arith.constant 0 : index
    %205 = vector.load %arg21[%c0_106, %c0_107] : memref<8x4xf32, #tpu.memory_space<vmem>>, vector<8x4xf32>
    %cst_108 = arith.constant dense<0.000000e+00> : vector<8x4xf32>
    %206 = tpu.matmul %158, %205, %cst_108 {dimension_numbers = #tpu.dot_dimension_numbers<[1], [0], [0], [1], [0, 0, 1, 1], [], []>} : vector<8x8xf32>, vector<8x4xf32>, vector<8x4xf32> -> vector<8x4xf32>
    %cst_109 = arith.constant dense<0.000000e+00> : vector<4x4xf32>
    %207 = tpu.matmul %204, %206, %cst_109 {dimension_numbers = #tpu.dot_dimension_numbers<[1], [0], [0], [1], [0, 0, 1, 1], [], []>} : vector<4x8xf32>, vector<8x4xf32>, vector<4x4xf32> -> vector<4x4xf32>
    %208 = arith.mulf %203, %203 : vector<4x4xf32>
    %209 = arith.mulf %207, %207 : vector<4x4xf32>
    %210 = arith.mulf %203, %207 : vector<4x4xf32>
    %211 = tpu.concatenate %203, %207, %208, %209, %210 in 0 : vector<4x4xf32>, vector<4x4xf32>, vector<4x4xf32>, vector<4x4xf32>, vector<4x4xf32> -> vector<20x4xf32>
    %c0_110 = arith.constant 0 : index
    %c0_111 = arith.constant 0 : index
    %212 = vector.load %arg8[%c0_110, %c0_111] : memref<4x2xf32, #tpu.memory_space<vmem>>, vector<4x2xf32>
    %cst_112 = arith.constant dense<0.000000e+00> : vector<20x2xf32>
    %213 = tpu.matmul %211, %212, %cst_112 {dimension_numbers = #tpu.dot_dimension_numbers<[1], [0], [0], [1], [0, 0, 1, 1], [], []>} : vector<20x4xf32>, vector<4x2xf32>, vector<20x2xf32> -> vector<20x2xf32>
    %c0_113 = arith.constant 0 : index
    %c0_114 = arith.constant 0 : index
    %214 = vector.load %arg13[%c0_113, %c0_114] : memref<10x20xf32, #tpu.memory_space<vmem>>, vector<10x20xf32>
    %cst_115 = arith.constant dense<0.000000e+00> : vector<10x2xf32>
    %215 = tpu.matmul %214, %213, %cst_115 {dimension_numbers = #tpu.dot_dimension_numbers<[1], [0], [0], [1], [0, 0, 1, 1], [], []>} : vector<10x20xf32>, vector<20x2xf32>, vector<10x2xf32> -> vector<10x2xf32>
    %216 = vector.extract_strided_slice %215 {offsets = [0, 0], sizes = [2, 2], strides = [1, 1]} : vector<10x2xf32> to vector<2x2xf32>
    %217 = vector.extract_strided_slice %215 {offsets = [2, 0], sizes = [2, 2], strides = [1, 1]} : vector<10x2xf32> to vector<2x2xf32>
    %218 = vector.extract_strided_slice %215 {offsets = [4, 0], sizes = [2, 2], strides = [1, 1]} : vector<10x2xf32> to vector<2x2xf32>
    %219 = vector.extract_strided_slice %215 {offsets = [6, 0], sizes = [2, 2], strides = [1, 1]} : vector<10x2xf32> to vector<2x2xf32>
    %220 = vector.extract_strided_slice %215 {offsets = [8, 0], sizes = [2, 2], strides = [1, 1]} : vector<10x2xf32> to vector<2x2xf32>
    %221 = arith.mulf %216, %216 : vector<2x2xf32>
    %222 = arith.mulf %217, %217 : vector<2x2xf32>
    %223 = arith.mulf %216, %217 : vector<2x2xf32>
    %224 = arith.subf %218, %221 : vector<2x2xf32>
    %225 = arith.subf %219, %222 : vector<2x2xf32>
    %226 = arith.subf %220, %223 : vector<2x2xf32>
    %227 = arith.addf %221, %222 : vector<2x2xf32>
    %cst_116 = arith.constant 9.99999974E-5 : f32
    %228 = vector.broadcast %cst_116 : f32 to vector<2x2xf32>
    %229 = arith.addf %227, %228 : vector<2x2xf32>
    %230 = arith.addf %224, %225 : vector<2x2xf32>
    %cst_117 = arith.constant 8.99999984E-4 : f32
    %231 = vector.broadcast %cst_117 : f32 to vector<2x2xf32>
    %232 = arith.addf %230, %231 : vector<2x2xf32>
    %cst_118 = arith.constant 2.000000e+00 : f32
    %233 = vector.broadcast %cst_118 : f32 to vector<2x2xf32>
    %234 = arith.mulf %233, %226 : vector<2x2xf32>
    %cst_119 = arith.constant 8.99999984E-4 : f32
    %235 = vector.broadcast %cst_119 : f32 to vector<2x2xf32>
    %236 = arith.addf %234, %235 : vector<2x2xf32>
    %237 = arith.mulf %229, %232 : vector<2x2xf32>
    %cst_120 = arith.constant 1.000000e+00 : f32
    %238 = vector.broadcast %cst_120 : f32 to vector<2x2xf32>
    %239 = arith.divf %238, %237 : vector<2x2xf32>
    %cst_121 = arith.constant 2.000000e+00 : f32
    %240 = vector.broadcast %cst_121 : f32 to vector<2x2xf32>
    %241 = arith.mulf %240, %223 : vector<2x2xf32>
    %cst_122 = arith.constant 9.99999974E-5 : f32
    %242 = vector.broadcast %cst_122 : f32 to vector<2x2xf32>
    %243 = arith.addf %241, %242 : vector<2x2xf32>
    %244 = arith.mulf %243, %236 : vector<2x2xf32>
    %245 = arith.mulf %244, %239 : vector<2x2xf32>
    %246 = vector.shape_cast %245 : vector<2x2xf32> to vector<1x2x2xf32>
    %cst_123 = arith.constant dense<0.000000e+00> : vector<1xf32>
    %247 = vector.multi_reduction <add>, %246, %cst_123 [1, 2] : vector<1x2x2xf32> to vector<1xf32>
    %248 = vector.shape_cast %247 : vector<1xf32> to vector<1x1x1xf32>
    %249 = vector.extract %248[0, 0, 0] : f32 from vector<1x1x1xf32>
    %250 = vector.broadcast %249 : f32 to vector<1x1xf32>
    %cst_124 = arith.constant 2.500000e-01 : f32
    %251 = vector.broadcast %cst_124 : f32 to vector<1x1xf32>
    %252 = arith.mulf %250, %251 : vector<1x1xf32>
    %253 = tpu.iota {dimensions = array<i32: 0>} : vector<8x128xi32>
    %cst_125 = arith.constant 0.000000e+00 : f32
    %254 = vector.broadcast %cst_125 : f32 to vector<8x128xf32>
    %c0_i32 = arith.constant 0 : i32
    %255 = vector.broadcast %c0_i32 : i32 to vector<8x128xi32>
    %256 = arith.cmpi eq, %253, %255 : vector<8x128xi32>
    %cst_126 = arith.constant 0.000000e+00 : f32
    %257 = vector.shape_cast %52 : vector<1x1xf32> to vector<1x1xf32>
    %258 = vector.broadcast %257 : vector<1x1xf32> to vector<8x128xf32>
    %259 = vector.broadcast %cst_126 : f32 to vector<8x128xf32>
    %260 = arith.select %256, %258, %259 : vector<8x128xi1>, vector<8x128xf32>
    %261 = arith.addf %254, %260 : vector<8x128xf32>
    %c1_i32 = arith.constant 1 : i32
    %262 = vector.broadcast %c1_i32 : i32 to vector<8x128xi32>
    %263 = arith.cmpi eq, %253, %262 : vector<8x128xi32>
    %cst_127 = arith.constant 0.000000e+00 : f32
    %264 = vector.shape_cast %101 : vector<1x1xf32> to vector<1x1xf32>
    %265 = vector.broadcast %264 : vector<1x1xf32> to vector<8x128xf32>
    %266 = vector.broadcast %cst_127 : f32 to vector<8x128xf32>
    %267 = arith.select %263, %265, %266 : vector<8x128xi1>, vector<8x128xf32>
    %268 = arith.addf %261, %267 : vector<8x128xf32>
    %c2_i32 = arith.constant 2 : i32
    %269 = vector.broadcast %c2_i32 : i32 to vector<8x128xi32>
    %270 = arith.cmpi eq, %253, %269 : vector<8x128xi32>
    %cst_128 = arith.constant 0.000000e+00 : f32
    %271 = vector.shape_cast %150 : vector<1x1xf32> to vector<1x1xf32>
    %272 = vector.broadcast %271 : vector<1x1xf32> to vector<8x128xf32>
    %273 = vector.broadcast %cst_128 : f32 to vector<8x128xf32>
    %274 = arith.select %270, %272, %273 : vector<8x128xi1>, vector<8x128xf32>
    %275 = arith.addf %268, %274 : vector<8x128xf32>
    %c3_i32 = arith.constant 3 : i32
    %276 = vector.broadcast %c3_i32 : i32 to vector<8x128xi32>
    %277 = arith.cmpi eq, %253, %276 : vector<8x128xi32>
    %cst_129 = arith.constant 0.000000e+00 : f32
    %278 = vector.shape_cast %199 : vector<1x1xf32> to vector<1x1xf32>
    %279 = vector.broadcast %278 : vector<1x1xf32> to vector<8x128xf32>
    %280 = vector.broadcast %cst_129 : f32 to vector<8x128xf32>
    %281 = arith.select %277, %279, %280 : vector<8x128xi1>, vector<8x128xf32>
    %282 = arith.addf %275, %281 : vector<8x128xf32>
    %c4_i32 = arith.constant 4 : i32
    %283 = vector.broadcast %c4_i32 : i32 to vector<8x128xi32>
    %284 = arith.cmpi eq, %253, %283 : vector<8x128xi32>
    %cst_130 = arith.constant 0.000000e+00 : f32
    %285 = vector.shape_cast %252 : vector<1x1xf32> to vector<1x1xf32>
    %286 = vector.broadcast %285 : vector<1x1xf32> to vector<8x128xf32>
    %287 = vector.broadcast %cst_130 : f32 to vector<8x128xf32>
    %288 = arith.select %284, %286, %287 : vector<8x128xi1>, vector<8x128xf32>
    %289 = arith.addf %282, %288 : vector<8x128xf32>
    %c0_131 = arith.constant 0 : index
    %c0_132 = arith.constant 0 : index
    %c0_133 = arith.constant 0 : index
    %c0_134 = arith.constant 0 : index
    %290 = vector.load %arg22[%c0_131, %c0_132, %c0_133, %c0_134] : memref<1x1x8x128xf32, #tpu.memory_space<vmem>>, vector<1x1x8x128xf32>
    %291 = vector.shape_cast %290 : vector<1x1x8x128xf32> to vector<8x128xf32>
    %292 = vector.shape_cast %289 : vector<8x128xf32> to vector<1x1x8x128xf32>
    tpu.vector_store %arg22[%c0_131, %c0_132, %c0_133, %c0_134], %292 {strides = array<i32>} : memref<1x1x8x128xf32, #tpu.memory_space<vmem>>, vector<1x1x8x128xf32>,
    return
  }
  func.func @transform_0(%arg0: i32, %arg1: i32) -> (i32, i32, i32, i32) {
    %c0_i32 = arith.constant 0 : i32
    %c0_i32_0 = arith.constant 0 : i32
    %c0_i32_1 = arith.constant 0 : i32
    return %arg0, %arg1, %c0_i32, %c0_i32_0 : i32, i32, i32, i32
  }
  func.func @transform_1(%arg0: i32, %arg1: i32) -> (i32, i32, i32, i32) {
    %c0_i32 = arith.constant 0 : i32
    %c0_i32_0 = arith.constant 0 : i32
    %c0_i32_1 = arith.constant 0 : i32
    return %arg0, %arg1, %c0_i32, %c0_i32_0 : i32, i32, i32, i32
  }
  func.func @transform_2(%arg0: i32, %arg1: i32) -> (i32, i32) {
    %c0_i32 = arith.constant 0 : i32
    %c0_i32_0 = arith.constant 0 : i32
    %c0_i32_1 = arith.constant 0 : i32
    return %c0_i32, %c0_i32_0 : i32, i32
  }
  func.func @transform_3(%arg0: i32, %arg1: i32) -> (i32, i32) {
    %c0_i32 = arith.constant 0 : i32
    %c0_i32_0 = arith.constant 0 : i32
    %c0_i32_1 = arith.constant 0 : i32
    return %c0_i32, %c0_i32_0 : i32, i32
  }
  func.func @transform_4(%arg0: i32, %arg1: i32) -> (i32, i32) {
    %c0_i32 = arith.constant 0 : i32
    %c0_i32_0 = arith.constant 0 : i32
    %c0_i32_1 = arith.constant 0 : i32
    return %c0_i32, %c0_i32_0 : i32, i32
  }
  func.func @transform_5(%arg0: i32, %arg1: i32) -> (i32, i32) {
    %c0_i32 = arith.constant 0 : i32
    %c0_i32_0 = arith.constant 0 : i32
    %c0_i32_1 = arith.constant 0 : i32
    return %c0_i32, %c0_i32_0 : i32, i32
  }
  func.func @transform_6(%arg0: i32, %arg1: i32) -> (i32, i32) {
    %c0_i32 = arith.constant 0 : i32
    %c0_i32_0 = arith.constant 0 : i32
    %c0_i32_1 = arith.constant 0 : i32
    return %c0_i32, %c0_i32_0 : i32, i32
  }
  func.func @transform_7(%arg0: i32, %arg1: i32) -> (i32, i32) {
    %c0_i32 = arith.constant 0 : i32
    %c0_i32_0 = arith.constant 0 : i32
    %c0_i32_1 = arith.constant 0 : i32
    return %c0_i32, %c0_i32_0 : i32, i32
  }
  func.func @transform_8(%arg0: i32, %arg1: i32) -> (i32, i32) {
    %c0_i32 = arith.constant 0 : i32
    %c0_i32_0 = arith.constant 0 : i32
    %c0_i32_1 = arith.constant 0 : i32
    return %c0_i32, %c0_i32_0 : i32, i32
  }
  func.func @transform_9(%arg0: i32, %arg1: i32) -> (i32, i32) {
    %c0_i32 = arith.constant 0 : i32
    %c0_i32_0 = arith.constant 0 : i32
    %c0_i32_1 = arith.constant 0 : i32
    return %c0_i32, %c0_i32_0 : i32, i32
  }
  func.func @transform_10(%arg0: i32, %arg1: i32) -> (i32, i32) {
    %c0_i32 = arith.constant 0 : i32
    %c0_i32_0 = arith.constant 0 : i32
    %c0_i32_1 = arith.constant 0 : i32
    return %c0_i32, %c0_i32_0 : i32, i32
  }
  func.func @transform_11(%arg0: i32, %arg1: i32) -> (i32, i32) {
    %c0_i32 = arith.constant 0 : i32
    %c0_i32_0 = arith.constant 0 : i32
    %c0_i32_1 = arith.constant 0 : i32
    return %c0_i32, %c0_i32_0 : i32, i32
  }
  func.func @transform_12(%arg0: i32, %arg1: i32) -> (i32, i32) {
    %c0_i32 = arith.constant 0 : i32
    %c0_i32_0 = arith.constant 0 : i32
    %c0_i32_1 = arith.constant 0 : i32
    return %c0_i32, %c0_i32_0 : i32, i32
  }
  func.func @transform_13(%arg0: i32, %arg1: i32) -> (i32, i32) {
    %c0_i32 = arith.constant 0 : i32
    %c0_i32_0 = arith.constant 0 : i32
    %c0_i32_1 = arith.constant 0 : i32
    return %c0_i32, %c0_i32_0 : i32, i32
  }
  func.func @transform_14(%arg0: i32, %arg1: i32) -> (i32, i32) {
    %c0_i32 = arith.constant 0 : i32
    %c0_i32_0 = arith.constant 0 : i32
    %c0_i32_1 = arith.constant 0 : i32
    return %c0_i32, %c0_i32_0 : i32, i32
  }
  func.func @transform_15(%arg0: i32, %arg1: i32) -> (i32, i32) {
    %c0_i32 = arith.constant 0 : i32
    %c0_i32_0 = arith.constant 0 : i32
    %c0_i32_1 = arith.constant 0 : i32
    return %c0_i32, %c0_i32_0 : i32, i32
  }
  func.func @transform_16(%arg0: i32, %arg1: i32) -> (i32, i32) {
    %c0_i32 = arith.constant 0 : i32
    %c0_i32_0 = arith.constant 0 : i32
    %c0_i32_1 = arith.constant 0 : i32
    return %c0_i32, %c0_i32_0 : i32, i32
  }
  func.func @transform_17(%arg0: i32, %arg1: i32) -> (i32, i32) {
    %c0_i32 = arith.constant 0 : i32
    %c0_i32_0 = arith.constant 0 : i32
    %c0_i32_1 = arith.constant 0 : i32
    return %c0_i32, %c0_i32_0 : i32, i32
  }
  func.func @transform_18(%arg0: i32, %arg1: i32) -> (i32, i32) {
    %c0_i32 = arith.constant 0 : i32
    %c0_i32_0 = arith.constant 0 : i32
    %c0_i32_1 = arith.constant 0 : i32
    return %c0_i32, %c0_i32_0 : i32, i32
  }
  func.func @transform_19(%arg0: i32, %arg1: i32) -> (i32, i32) {
    %c0_i32 = arith.constant 0 : i32
    %c0_i32_0 = arith.constant 0 : i32
    %c0_i32_1 = arith.constant 0 : i32
    return %c0_i32, %c0_i32_0 : i32, i32
  }
  func.func @transform_20(%arg0: i32, %arg1: i32) -> (i32, i32, i32, i32) {
    %c0_i32 = arith.constant 0 : i32
    %c0_i32_0 = arith.constant 0 : i32
    %c0_i32_1 = arith.constant 0 : i32
    return %arg0, %arg1, %c0_i32, %c0_i32_0 : i32, i32, i32, i32
  }
}

</mosaic_0001>

<llo_original>
// kernel: ms_ssim_loss.1
$region0: #{ms_ssim_loss.1}
  #allocation0 [shape = 'u32[]', space=smem, size = 0x4, offset = 0x4, fixed_abs, tag = 'smem constant byte address 0x4 - core index']
  #allocation1 [shape = 'u32[72,128]{1,0:T(1,128)}', space=vmem, size = 0x9000, scoped, tag = 'internal scratch']
  %s0 = inlined_call_operand.hbm [shape: f32[2,3,64,64], index: 0, kind: input, shape index: {}]
  %s1 = inlined_call_operand.hbm [shape: f32[2,3,64,64], index: 1, kind: input, shape index: {}]
  %s2 = inlined_call_operand.hbm [shape: f32[64,62], index: 2, kind: input, shape index: {}]
  %s3 = inlined_call_operand.hbm [shape: f32[32,30], index: 3, kind: input, shape index: {}]
  %s4 = inlined_call_operand.hbm [shape: f32[16,14], index: 4, kind: input, shape index: {}]
  %s5 = inlined_call_operand.hbm [shape: f32[8,6], index: 5, kind: input, shape index: {}]
  %s6 = inlined_call_operand.vmem [shape: f32[4,2], index: 6, kind: input, shape index: {}]
  %s7 = inlined_call_operand.hbm [shape: f32[310,320], index: 7, kind: input, shape index: {}]
  %s8 = inlined_call_operand.hbm [shape: f32[150,160], index: 8, kind: input, shape index: {}]
  %s9 = inlined_call_operand.hbm [shape: f32[70,80], index: 9, kind: input, shape index: {}]
  %s10 = inlined_call_operand.hbm [shape: f32[30,40], index: 10, kind: input, shape index: {}]
  %s11 = inlined_call_operand.vmem [shape: f32[10,20], index: 11, kind: input, shape index: {}]
  %s12 = inlined_call_operand.hbm [shape: f32[32,64], index: 12, kind: input, shape index: {}]
  %s13 = inlined_call_operand.hbm [shape: f32[16,32], index: 13, kind: input, shape index: {}]
  %s14 = inlined_call_operand.hbm [shape: f32[8,16], index: 14, kind: input, shape index: {}]
  %s15 = inlined_call_operand.hbm [shape: f32[4,8], index: 15, kind: input, shape index: {}]
  %s16 = inlined_call_operand.hbm [shape: f32[64,32], index: 16, kind: input, shape index: {}]
  %s17 = inlined_call_operand.hbm [shape: f32[32,16], index: 17, kind: input, shape index: {}]
  %s18 = inlined_call_operand.hbm [shape: f32[16,8], index: 18, kind: input, shape index: {}]
  %s19 = inlined_call_operand.hbm [shape: f32[8,4], index: 19, kind: input, shape index: {}]
  %s20 = inlined_call_operand.vmem [shape: f32[2,3,8,128], index: 20, kind: output, shape index: {}]
  %s21 = sld [smem:[#allocation0]]
  $region185: #{ms_ssim_loss.1} parent=0
    _
  %s23 = ssub.s32 1, %s21
  %s24 = scalar_select 0, %s23, %s21
  $region1: #{ms_ssim_loss.1} parent=0
    #allocation2 [shape = 'u8[65536]{0}', space=vmem, size = 0x10000, scoped, tag = 'input window, operand 0']
    #allocation3 [shape = 's32[2]{0}', space=sflag, size = 0x8, scoped, tag = 'scoped memory for ms_ssim_loss.1']
    #allocation4 [shape = 'u8[65536]{0}', space=vmem, size = 0x10000, scoped, tag = 'input window, operand 1']
    #allocation5 [shape = 's32[2]{0}', space=sflag, size = 0x8, scoped, tag = 'scoped memory for ms_ssim_loss.1']
    #allocation6 [shape = 'u8[32768]{0}', space=vmem, size = 0x8000, scoped, tag = 'input window, operand 2, single buffered']
    #allocation7 [shape = 'u8[16384]{0}', space=vmem, size = 0x4000, scoped, tag = 'input window, operand 3, single buffered']
    #allocation8 [shape = 's32[1]{0}', space=sflag, size = 0x4, scoped, tag = 'scoped memory for ms_ssim_loss.1']
    #allocation9 [shape = 'u8[8192]{0}', space=vmem, size = 0x2000, scoped, tag = 'input window, operand 4, single buffered']
    #allocation10 [shape = 'u8[4096]{0}', space=vmem, size = 0x1000, scoped, tag = 'input window, operand 5, single buffered']
    #allocation11 [shape = 's32[1]{0}', space=sflag, size = 0x4, scoped, tag = 'scoped memory for ms_ssim_loss.1']
    #allocation12 [shape = 'u8[479232]{0}', space=vmem, size = 0x75000, scoped, tag = 'input window, operand 7, single buffered']
    #allocation13 [shape = 'u8[155648]{0}', space=vmem, size = 0x26000, scoped, tag = 'input window, operand 8, single buffered']
    #allocation14 [shape = 's32[1]{0}', space=sflag, size = 0x4, scoped, tag = 'scoped memory for ms_ssim_loss.1']
    #allocation15 [shape = 'u8[36864]{0}', space=vmem, size = 0x9000, scoped, tag = 'input window, operand 9, single buffered']
    #allocation16 [shape = 'u8[16384]{0}', space=vmem, size = 0x4000, scoped, tag = 'input window, operand 10, single buffered']
    #allocation17 [shape = 's32[1]{0}', space=sflag, size = 0x4, scoped, tag = 'scoped memory for ms_ssim_loss.1']
    #allocation18 [shape = 'u8[16384]{0}', space=vmem, size = 0x4000, scoped, tag = 'input window, operand 12, single buffered']
    #allocation19 [shape = 'u8[8192]{0}', space=vmem, size = 0x2000, scoped, tag = 'input window, operand 13, single buffered']
    #allocation20 [shape = 's32[1]{0}', space=sflag, size = 0x4, scoped, tag = 'scoped memory for ms_ssim_loss.1']
    #allocation21 [shape = 'u8[4096]{0}', space=vmem, size = 0x1000, scoped, tag = 'input window, operand 14, single buffered']
    #allocation22 [shape = 'u8[2048]{0}', space=vmem, size = 0x800, scoped, tag = 'input window, operand 15, single buffered']
    #allocation23 [shape = 's32[1]{0}', space=sflag, size = 0x4, scoped, tag = 'scoped memory for ms_ssim_loss.1']
    #allocation24 [shape = 'u8[32768]{0}', space=vmem, size = 0x8000, scoped, tag = 'input window, operand 16, single buffered']
    #allocation25 [shape = 'u8[16384]{0}', space=vmem, size = 0x4000, scoped, tag = 'input window, operand 17, single buffered']
    #allocation26 [shape = 's32[1]{0}', space=sflag, size = 0x4, scoped, tag = 'scoped memory for ms_ssim_loss.1']
    #allocation27 [shape = 'u8[8192]{0}', space=vmem, size = 0x2000, scoped, tag = 'input window, operand 18, single buffered']
    #allocation28 [shape = 'u8[4096]{0}', space=vmem, size = 0x1000, scoped, tag = 'input window, operand 19, single buffered']
    #allocation29 [shape = 's32[1]{0}', space=sflag, size = 0x4, scoped, tag = 'scoped memory for ms_ssim_loss.1']
    %25 = vsyncpa [#allocation3], 0
    %s26 = scalar_lea.sflag [#allocation3], 1
    %27 = vsyncpa %s26, 0
    %28 = vsyncpa [#allocation5], 0
    %s29 = scalar_lea.sflag [#allocation5], 1
    %30 = vsyncpa %s29, 0
    %31 = vsyncpa [#allocation8], 0
    %32 = vsyncpa [#allocation11], 0
    %33 = vsyncpa [#allocation14], 0
    %34 = vsyncpa [#allocation17], 0
    %35 = vsyncpa [#allocation20], 0
    %36 = vsyncpa [#allocation23], 0
    %37 = vsyncpa [#allocation26], 0
    %38 = vsyncpa [#allocation29], 0
    loop: start=0, step=1, limit=8
    $region2: #{ms_ssim_loss.1} parent=1 // loop_pre_header
      _
    $region3: #{ms_ssim_loss.1} parent=1 // loop_header
      %s40 = sphi 0, %s44
      %p41 = scmp.ge.s32.totalorder %s40, 8
      %s47 = sphi 0, %s59
      %s48 = sphi 0, %s55
      %s49 = sphi 0, %s47
      %s50 = sphi 0, %s48
      %s51 = sphi 0, %s49
      %s52 = sphi 0, %s50
      %s64 = sphi 0, %s66
      %s67 = sphi 0, %s64
      %s68 = sphi 0, %s67
      %s84 = sphi 0, %s68
      %s92 = sphi 0, %s94
      %s95 = sphi 0, %s92
      %s96 = sphi 0, %s95
      %s112 = sphi 0, %s96
      %s116 = sphi 0, %s116
      %s118 = sphi 0, %s116
      %s119 = sphi 0, %s118
      %s133 = sphi 0, %s119
      %s137 = sphi 0, %s137
      %s139 = sphi 0, %s137
      %s140 = sphi 0, %s139
      %s154 = sphi 0, %s140
      %s158 = sphi 0, %s158
      %s160 = sphi 0, %s158
      %s161 = sphi 0, %s160
      %s175 = sphi 0, %s161
      %s179 = sphi 0, %s179
      %s181 = sphi 0, %s179
      %s182 = sphi 0, %s181
      %s196 = sphi 0, %s182
      %s200 = sphi 0, %s200
      %s202 = sphi 0, %s200
      %s203 = sphi 0, %s202
      %s217 = sphi 0, %s203
      %s221 = sphi 0, %s221
      %s223 = sphi 0, %s221
      %s224 = sphi 0, %s223
      %s238 = sphi 0, %s224
      %s242 = sphi 0, %s242
      %s244 = sphi 0, %s242
      %s245 = sphi 0, %s244
      %s259 = sphi 0, %s245
      %s263 = sphi 0, %s263
      %s265 = sphi 0, %s263
      %s266 = sphi 0, %s265
      %s280 = sphi 0, %s266
      %s284 = sphi 0, %s284
      %s286 = sphi 0, %s284
      %s287 = sphi 0, %s286
      %s301 = sphi 0, %s287
      %s305 = sphi 0, %s305
      %s307 = sphi 0, %s305
      %s308 = sphi 0, %s307
      %s322 = sphi 0, %s308
      %s326 = sphi 0, %s326
      %s328 = sphi 0, %s326
      %s329 = sphi 0, %s328
      %s343 = sphi 0, %s329
      %s347 = sphi 0, %s347
      %s349 = sphi 0, %s347
      %s350 = sphi 0, %s349
      %s364 = sphi 0, %s350
      %s368 = sphi 0, %s368
      %s370 = sphi 0, %s368
      %s371 = sphi 0, %s370
      %s385 = sphi 0, %s371
      %s389 = sphi 0, %s389
      %s391 = sphi 0, %s389
      %s392 = sphi 0, %s391
      %s406 = sphi 0, %s392
      %s410 = sphi 0, %s410
      %s412 = sphi 0, %s410
      %s413 = sphi 0, %s412
      %s427 = sphi 0, %s413
      %s431 = sphi 0, %s431
      %s433 = sphi 0, %s431
      %s434 = sphi 0, %s433
      %s448 = sphi 0, %s434
      %s452 = sphi 0, %s452
      %s454 = sphi 0, %s452
      %s455 = sphi 0, %s454
      %s469 = sphi 0, %s455
      %s473 = sphi 0, %s473
      %s475 = sphi 0, %s473
      %s476 = sphi 0, %s475
      %s490 = sphi 0, %s476
      %s498 = sphi 0, %s500
      %s501 = sphi 0, %s498
      %s502 = sphi 0, %s501
      %s518 = sphi 0, %s502
    $region4: #{ms_ssim_loss.1} parent=1 // loop_header_branch
      %43 = sbr.rel (%p41) target = $region8
    $region5: #{ms_ssim_loss.1} parent=1 // loop_body
      %s45 = ssub.s32 %s40, 1
      %s46 = ssub.s32 %s40, 2
      %s53 = sadd.s32 1, %s48
      %p54 = scmp.ge.s32.totalorder %s53, 3
      %s55 = scalar_select %p54, 0, %s53
      %s56 = sadd.s32 1, %s47
      %s57 = scalar_select %p54, %s56, %s47
      %p58 = scmp.ge.s32.totalorder %s57, 2
      %s59 = scalar_select %p58, 0, %s57
      %s60 = ssub.s32 %s47, %s59
      %s61 = ssub.s32 %s48, %s55
      %s62 = sor.u32 %s60, %s61
      %p63 = scmp.eq.s32.totalorder %s62, 0
      %s65 = sadd.s32 %s64, 1
      %s66 = scalar_select %p63, %s64, %s65
      %p69 = pneg %p63
      %p70 = scmp.eq.s32.totalorder %s40, 5
      %p71 = por %p69, %p70
      %p72 = scmp.ne.s32.totalorder %s64, %s67
      %p73 = scmp.eq.s32.totalorder %s40, 0
      %p74 = por %p72, %p73
      %p75 = scmp.ne.s32.totalorder %s64, %s67
      %p76 = scmp.eq.s32.totalorder %s45, 5
      %p77 = por %p75, %p76
      %p78 = scmp.ne.s32.totalorder %s67, %s68
      %p79 = scmp.eq.s32.totalorder %s45, 0
      %p80 = por %p78, %p79
      %p81 = scmp.ne.s32.totalorder %s67, %s68
      %p82 = scmp.eq.s32.totalorder %s46, 5
      %p83 = por %p81, %p82
      %p85 = scmp.ne.s32.totalorder %s68, %s84
      %p86 = scmp.eq.s32.totalorder %s46, 0
      %p87 = por %p85, %p86
      %s88 = ssub.s32 %s47, %s59
      %s89 = ssub.s32 %s48, %s55
      %s90 = sor.u32 %s88, %s89
      %p91 = scmp.eq.s32.totalorder %s90, 0
      %s93 = sadd.s32 %s92, 1
      %s94 = scalar_select %p91, %s92, %s93
      %p97 = pneg %p91
      %p98 = scmp.eq.s32.totalorder %s40, 5
      %p99 = por %p97, %p98
      %p100 = scmp.ne.s32.totalorder %s92, %s95
      %p101 = scmp.eq.s32.totalorder %s40, 0
      %p102 = por %p100, %p101
      %p103 = scmp.ne.s32.totalorder %s92, %s95
      %p104 = scmp.eq.s32.totalorder %s45, 5
      %p105 = por %p103, %p104
      %p106 = scmp.ne.s32.totalorder %s95, %s96
      %p107 = scmp.eq.s32.totalorder %s45, 0
      %p108 = por %p106, %p107
      %p109 = scmp.ne.s32.totalorder %s95, %s96
      %p110 = scmp.eq.s32.totalorder %s46, 5
      %p111 = por %p109, %p110
      %p113 = scmp.ne.s32.totalorder %s96, %s112
      %p114 = scmp.eq.s32.totalorder %s46, 0
      %p115 = por %p113, %p114
      %s117 = sadd.s32 %s116, 1
      %p120 = scmp.eq.s32.totalorder %s40, 5
      %p121 = scmp.ne.s32.totalorder %s116, %s118
      %p122 = scmp.eq.s32.totalorder %s40, 0
      %p123 = por %p121, %p122
      %p124 = scmp.ne.s32.totalorder %s116, %s118
      %p125 = scmp.eq.s32.totalorder %s45, 5
      %p126 = por %p124, %p125
      %p127 = scmp.ne.s32.totalorder %s118, %s119
      %p128 = scmp.eq.s32.totalorder %s45, 0
      %p129 = por %p127, %p128
      %p130 = scmp.ne.s32.totalorder %s118, %s119
      %p131 = scmp.eq.s32.totalorder %s46, 5
      %p132 = por %p130, %p131
      %p134 = scmp.ne.s32.totalorder %s119, %s133
      %p135 = scmp.eq.s32.totalorder %s46, 0
      %p136 = por %p134, %p135
      %s138 = sadd.s32 %s137, 1
      %p141 = scmp.eq.s32.totalorder %s40, 5
      %p142 = scmp.ne.s32.totalorder %s137, %s139
      %p143 = scmp.eq.s32.totalorder %s40, 0
      %p144 = por %p142, %p143
      %p145 = scmp.ne.s32.totalorder %s137, %s139
      %p146 = scmp.eq.s32.totalorder %s45, 5
      %p147 = por %p145, %p146
      %p148 = scmp.ne.s32.totalorder %s139, %s140
      %p149 = scmp.eq.s32.totalorder %s45, 0
      %p150 = por %p148, %p149
      %p151 = scmp.ne.s32.totalorder %s139, %s140
      %p152 = scmp.eq.s32.totalorder %s46, 5
      %p153 = por %p151, %p152
      %p155 = scmp.ne.s32.totalorder %s140, %s154
      %p156 = scmp.eq.s32.totalorder %s46, 0
      %p157 = por %p155, %p156
      %s159 = sadd.s32 %s158, 1
      %p162 = scmp.eq.s32.totalorder %s40, 5
      %p163 = scmp.ne.s32.totalorder %s158, %s160
      %p164 = scmp.eq.s32.totalorder %s40, 0
      %p165 = por %p163, %p164
      %p166 = scmp.ne.s32.totalorder %s158, %s160
      %p167 = scmp.eq.s32.totalorder %s45, 5
      %p168 = por %p166, %p167
      %p169 = scmp.ne.s32.totalorder %s160, %s161
      %p170 = scmp.eq.s32.totalorder %s45, 0
      %p171 = por %p169, %p170
      %p172 = scmp.ne.s32.totalorder %s160, %s161
      %p173 = scmp.eq.s32.totalorder %s46, 5
      %p174 = por %p172, %p173
      %p176 = scmp.ne.s32.totalorder %s161, %s175
      %p177 = scmp.eq.s32.totalorder %s46, 0
      %p178 = por %p176, %p177
      %s180 = sadd.s32 %s179, 1
      %p183 = scmp.eq.s32.totalorder %s40, 5
      %p184 = scmp.ne.s32.totalorder %s179, %s181
      %p185 = scmp.eq.s32.totalorder %s40, 0
      %p186 = por %p184, %p185
      %p187 = scmp.ne.s32.totalorder %s179, %s181
      %p188 = scmp.eq.s32.totalorder %s45, 5
      %p189 = por %p187, %p188
      %p190 = scmp.ne.s32.totalorder %s181, %s182
      %p191 = scmp.eq.s32.totalorder %s45, 0
      %p192 = por %p190, %p191
      %p193 = scmp.ne.s32.totalorder %s181, %s182
      %p194 = scmp.eq.s32.totalorder %s46, 5
      %p195 = por %p193, %p194
      %p197 = scmp.ne.s32.totalorder %s182, %s196
      %p198 = scmp.eq.s32.totalorder %s46, 0
      %p199 = por %p197, %p198
      %s201 = sadd.s32 %s200, 1
      %p204 = scmp.eq.s32.totalorder %s40, 5
      %p205 = scmp.ne.s32.totalorder %s200, %s202
      %p206 = scmp.eq.s32.totalorder %s40, 0
      %p207 = por %p205, %p206
      %p208 = scmp.ne.s32.totalorder %s200, %s202
      %p209 = scmp.eq.s32.totalorder %s45, 5
      %p210 = por %p208, %p209
      %p211 = scmp.ne.s32.totalorder %s202, %s203
      %p212 = scmp.eq.s32.totalorder %s45, 0
      %p213 = por %p211, %p212
      %p214 = scmp.ne.s32.totalorder %s202, %s203
      %p215 = scmp.eq.s32.totalorder %s46, 5
      %p216 = por %p214, %p215
      %p218 = scmp.ne.s32.totalorder %s203, %s217
      %p219 = scmp.eq.s32.totalorder %s46, 0
      %p220 = por %p218, %p219
      %s222 = sadd.s32 %s221, 1
      %p225 = scmp.eq.s32.totalorder %s40, 5
      %p226 = scmp.ne.s32.totalorder %s221, %s223
      %p227 = scmp.eq.s32.totalorder %s40, 0
      %p228 = por %p226, %p227
      %p229 = scmp.ne.s32.totalorder %s221, %s223
      %p230 = scmp.eq.s32.totalorder %s45, 5
      %p231 = por %p229, %p230
      %p232 = scmp.ne.s32.totalorder %s223, %s224
      %p233 = scmp.eq.s32.totalorder %s45, 0
      %p234 = por %p232, %p233
      %p235 = scmp.ne.s32.totalorder %s223, %s224
      %p236 = scmp.eq.s32.totalorder %s46, 5
      %p237 = por %p235, %p236
      %p239 = scmp.ne.s32.totalorder %s224, %s238
      %p240 = scmp.eq.s32.totalorder %s46, 0
      %p241 = por %p239, %p240
      %s243 = sadd.s32 %s242, 1
      %p246 = scmp.eq.s32.totalorder %s40, 5
      %p247 = scmp.ne.s32.totalorder %s242, %s244
      %p248 = scmp.eq.s32.totalorder %s40, 0
      %p249 = por %p247, %p248
      %p250 = scmp.ne.s32.totalorder %s242, %s244
      %p251 = scmp.eq.s32.totalorder %s45, 5
      %p252 = por %p250, %p251
      %p253 = scmp.ne.s32.totalorder %s244, %s245
      %p254 = scmp.eq.s32.totalorder %s45, 0
      %p255 = por %p253, %p254
      %p256 = scmp.ne.s32.totalorder %s244, %s245
      %p257 = scmp.eq.s32.totalorder %s46, 5
      %p258 = por %p256, %p257
      %p260 = scmp.ne.s32.totalorder %s245, %s259
      %p261 = scmp.eq.s32.totalorder %s46, 0
      %p262 = por %p260, %p261
      %s264 = sadd.s32 %s263, 1
      %p267 = scmp.eq.s32.totalorder %s40, 5
      %p268 = scmp.ne.s32.totalorder %s263, %s265
      %p269 = scmp.eq.s32.totalorder %s40, 0
      %p270 = por %p268, %p269
      %p271 = scmp.ne.s32.totalorder %s263, %s265
      %p272 = scmp.eq.s32.totalorder %s45, 5
      %p273 = por %p271, %p272
      %p274 = scmp.ne.s32.totalorder %s265, %s266
      %p275 = scmp.eq.s32.totalorder %s45, 0
      %p276 = por %p274, %p275
      %p277 = scmp.ne.s32.totalorder %s265, %s266
      %p278 = scmp.eq.s32.totalorder %s46, 5
      %p279 = por %p277, %p278
      %p281 = scmp.ne.s32.totalorder %s266, %s280
      %p282 = scmp.eq.s32.totalorder %s46, 0
      %p283 = por %p281, %p282
      %s285 = sadd.s32 %s284, 1
      %p288 = scmp.eq.s32.totalorder %s40, 5
      %p289 = scmp.ne.s32.totalorder %s284, %s286
      %p290 = scmp.eq.s32.totalorder %s40, 0
      %p291 = por %p289, %p290
      %p292 = scmp.ne.s32.totalorder %s284, %s286
      %p293 = scmp.eq.s32.totalorder %s45, 5
      %p294 = por %p292, %p293
      %p295 = scmp.ne.s32.totalorder %s286, %s287
      %p296 = scmp.eq.s32.totalorder %s45, 0
      %p297 = por %p295, %p296
      %p298 = scmp.ne.s32.totalorder %s286, %s287
      %p299 = scmp.eq.s32.totalorder %s46, 5
      %p300 = por %p298, %p299
      %p302 = scmp.ne.s32.totalorder %s287, %s301
      %p303 = scmp.eq.s32.totalorder %s46, 0
      %p304 = por %p302, %p303
      %s306 = sadd.s32 %s305, 1
      %p309 = scmp.eq.s32.totalorder %s40, 5
      %p310 = scmp.ne.s32.totalorder %s305, %s307
      %p311 = scmp.eq.s32.totalorder %s40, 0
      %p312 = por %p310, %p311
      %p313 = scmp.ne.s32.totalorder %s305, %s307
      %p314 = scmp.eq.s32.totalorder %s45, 5
      %p315 = por %p313, %p314
      %p316 = scmp.ne.s32.totalorder %s307, %s308
      %p317 = scmp.eq.s32.totalorder %s45, 0
      %p318 = por %p316, %p317
      %p319 = scmp.ne.s32.totalorder %s307, %s308
      %p320 = scmp.eq.s32.totalorder %s46, 5
      %p321 = por %p319, %p320
      %p323 = scmp.ne.s32.totalorder %s308, %s322
      %p324 = scmp.eq.s32.totalorder %s46, 0
      %p325 = por %p323, %p324
      %s327 = sadd.s32 %s326, 1
      %p330 = scmp.eq.s32.totalorder %s40, 5
      %p331 = scmp.ne.s32.totalorder %s326, %s328
      %p332 = scmp.eq.s32.totalorder %s40, 0
      %p333 = por %p331, %p332
      %p334 = scmp.ne.s32.totalorder %s326, %s328
      %p335 = scmp.eq.s32.totalorder %s45, 5
      %p336 = por %p334, %p335
      %p337 = scmp.ne.s32.totalorder %s328, %s329
      %p338 = scmp.eq.s32.totalorder %s45, 0
      %p339 = por %p337, %p338
      %p340 = scmp.ne.s32.totalorder %s328, %s329
      %p341 = scmp.eq.s32.totalorder %s46, 5
      %p342 = por %p340, %p341
      %p344 = scmp.ne.s32.totalorder %s329, %s343
      %p345 = scmp.eq.s32.totalorder %s46, 0
      %p346 = por %p344, %p345
      %s348 = sadd.s32 %s347, 1
      %p351 = scmp.eq.s32.totalorder %s40, 5
      %p352 = scmp.ne.s32.totalorder %s347, %s349
      %p353 = scmp.eq.s32.totalorder %s40, 0
      %p354 = por %p352, %p353
      %p355 = scmp.ne.s32.totalorder %s347, %s349
      %p356 = scmp.eq.s32.totalorder %s45, 5
      %p357 = por %p355, %p356
      %p358 = scmp.ne.s32.totalorder %s349, %s350
      %p359 = scmp.eq.s32.totalorder %s45, 0
      %p360 = por %p358, %p359
      %p361 = scmp.ne.s32.totalorder %s349, %s350
      %p362 = scmp.eq.s32.totalorder %s46, 5
      %p363 = por %p361, %p362
      %p365 = scmp.ne.s32.totalorder %s350, %s364
      %p366 = scmp.eq.s32.totalorder %s46, 0
      %p367 = por %p365, %p366
      %s369 = sadd.s32 %s368, 1
      %p372 = scmp.eq.s32.totalorder %s40, 5
      %p373 = scmp.ne.s32.totalorder %s368, %s370
      %p374 = scmp.eq.s32.totalorder %s40, 0
      %p375 = por %p373, %p374
      %p376 = scmp.ne.s32.totalorder %s368, %s370
      %p377 = scmp.eq.s32.totalorder %s45, 5
      %p378 = por %p376, %p377
      %p379 = scmp.ne.s32.totalorder %s370, %s371
      %p380 = scmp.eq.s32.totalorder %s45, 0
      %p381 = por %p379, %p380
      %p382 = scmp.ne.s32.totalorder %s370, %s371
      %p383 = scmp.eq.s32.totalorder %s46, 5
      %p384 = por %p382, %p383
      %p386 = scmp.ne.s32.totalorder %s371, %s385
      %p387 = scmp.eq.s32.totalorder %s46, 0
      %p388 = por %p386, %p387
      %s390 = sadd.s32 %s389, 1
      %p393 = scmp.eq.s32.totalorder %s40, 5
      %p394 = scmp.ne.s32.totalorder %s389, %s391
      %p395 = scmp.eq.s32.totalorder %s40, 0
      %p396 = por %p394, %p395
      %p397 = scmp.ne.s32.totalorder %s389, %s391
      %p398 = scmp.eq.s32.totalorder %s45, 5
      %p399 = por %p397, %p398
      %p400 = scmp.ne.s32.totalorder %s391, %s392
      %p401 = scmp.eq.s32.totalorder %s45, 0
      %p402 = por %p400, %p401
      %p403 = scmp.ne.s32.totalorder %s391, %s392
      %p404 = scmp.eq.s32.totalorder %s46, 5
      %p405 = por %p403, %p404
      %p407 = scmp.ne.s32.totalorder %s392, %s406
      %p408 = scmp.eq.s32.totalorder %s46, 0
      %p409 = por %p407, %p408
      %s411 = sadd.s32 %s410, 1
      %p414 = scmp.eq.s32.totalorder %s40, 5
      %p415 = scmp.ne.s32.totalorder %s410, %s412
      %p416 = scmp.eq.s32.totalorder %s40, 0
      %p417 = por %p415, %p416
      %p418 = scmp.ne.s32.totalorder %s410, %s412
      %p419 = scmp.eq.s32.totalorder %s45, 5
      %p420 = por %p418, %p419
      %p421 = scmp.ne.s32.totalorder %s412, %s413
      %p422 = scmp.eq.s32.totalorder %s45, 0
      %p423 = por %p421, %p422
      %p424 = scmp.ne.s32.totalorder %s412, %s413
      %p425 = scmp.eq.s32.totalorder %s46, 5
      %p426 = por %p424, %p425
      %p428 = scmp.ne.s32.totalorder %s413, %s427
      %p429 = scmp.eq.s32.totalorder %s46, 0
      %p430 = por %p428, %p429
      %s432 = sadd.s32 %s431, 1
      %p435 = scmp.eq.s32.totalorder %s40, 5
      %p436 = scmp.ne.s32.totalorder %s431, %s433
      %p437 = scmp.eq.s32.totalorder %s40, 0
      %p438 = por %p436, %p437
      %p439 = scmp.ne.s32.totalorder %s431, %s433
      %p440 = scmp.eq.s32.totalorder %s45, 5
      %p441 = por %p439, %p440
      %p442 = scmp.ne.s32.totalorder %s433, %s434
      %p443 = scmp.eq.s32.totalorder %s45, 0
      %p444 = por %p442, %p443
      %p445 = scmp.ne.s32.totalorder %s433, %s434
      %p446 = scmp.eq.s32.totalorder %s46, 5
      %p447 = por %p445, %p446
      %p449 = scmp.ne.s32.totalorder %s434, %s448
      %p450 = scmp.eq.s32.totalorder %s46, 0
      %p451 = por %p449, %p450
      %s453 = sadd.s32 %s452, 1
      %p456 = scmp.eq.s32.totalorder %s40, 5
      %p457 = scmp.ne.s32.totalorder %s452, %s454
      %p458 = scmp.eq.s32.totalorder %s40, 0
      %p459 = por %p457, %p458
      %p460 = scmp.ne.s32.totalorder %s452, %s454
      %p461 = scmp.eq.s32.totalorder %s45, 5
      %p462 = por %p460, %p461
      %p463 = scmp.ne.s32.totalorder %s454, %s455
      %p464 = scmp.eq.s32.totalorder %s45, 0
      %p465 = por %p463, %p464
      %p466 = scmp.ne.s32.totalorder %s454, %s455
      %p467 = scmp.eq.s32.totalorder %s46, 5
      %p468 = por %p466, %p467
      %p470 = scmp.ne.s32.totalorder %s455, %s469
      %p471 = scmp.eq.s32.totalorder %s46, 0
      %p472 = por %p470, %p471
      %s474 = sadd.s32 %s473, 1
      %p477 = scmp.eq.s32.totalorder %s40, 5
      %p478 = scmp.ne.s32.totalorder %s473, %s475
      %p479 = scmp.eq.s32.totalorder %s40, 0
      %p480 = por %p478, %p479
      %p481 = scmp.ne.s32.totalorder %s473, %s475
      %p482 = scmp.eq.s32.totalorder %s45, 5
      %p483 = por %p481, %p482
      %p484 = scmp.ne.s32.totalorder %s475, %s476
      %p485 = scmp.eq.s32.totalorder %s45, 0
      %p486 = por %p484, %p485
      %p487 = scmp.ne.s32.totalorder %s475, %s476
      %p488 = scmp.eq.s32.totalorder %s46, 5
      %p489 = por %p487, %p488
      %p491 = scmp.ne.s32.totalorder %s476, %s490
      %p492 = scmp.eq.s32.totalorder %s46, 0
      %p493 = por %p491, %p492
      %s494 = ssub.s32 %s47, %s59
      %s495 = ssub.s32 %s48, %s55
      %s496 = sor.u32 %s494, %s495
      %p497 = scmp.eq.s32.totalorder %s496, 0
      %s499 = sadd.s32 %s498, 1
      %s500 = scalar_select %p497, %s498, %s499
      %p503 = pneg %p497
      %p504 = scmp.eq.s32.totalorder %s40, 5
      %p505 = por %p503, %p504
      %p506 = scmp.ne.s32.totalorder %s498, %s501
      %p507 = scmp.eq.s32.totalorder %s40, 0
      %p508 = por %p506, %p507
      %p509 = scmp.ne.s32.totalorder %s498, %s501
      %p510 = scmp.eq.s32.totalorder %s45, 5
      %p511 = por %p509, %p510
      %p512 = scmp.ne.s32.totalorder %s501, %s502
      %p513 = scmp.eq.s32.totalorder %s45, 0
      %p514 = por %p512, %p513
      %p515 = scmp.ne.s32.totalorder %s501, %s502
      %p516 = scmp.eq.s32.totalorder %s46, 5
      %p517 = por %p515, %p516
      %p519 = scmp.ne.s32.totalorder %s502, %s518
      %p520 = scmp.eq.s32.totalorder %s46, 0
      %p521 = por %p519, %p520
      %p522 = scmp.le.s32.totalorder 1, %s40
      %p523 = scmp.lt.s32.totalorder %s40, 7
      %p524 = pnand %p522, %p523
      %p525 = pneg %p524
      // Predicated region
      $region9: #{ms_ssim_loss.1} parent=5 // pred_check
        _
      $region10: #{ms_ssim_loss.1} parent=5 // pred_check_branch
        %527 = sbr.rel (%p524) target = $region12
      $region11: #{ms_ssim_loss.1} parent=5 // pred_region
        %s528 = ssub.s32 %s40, 1
        // Predicated region
        $region13: #{ms_ssim_loss.1} parent=11 // pred_check
          %p529 = pneg %p129
        $region14: #{ms_ssim_loss.1} parent=11 // pred_check_branch
          %531 = sbr.rel (%p529) target = $region16
        $region15: #{ms_ssim_loss.1} parent=11 // pred_region
          %533 = vsyncadd [#allocation5], 0
          %s534 = sshll.u32 %s2, 4
          %s535 = int_to_ptr.hbm [resolvable:$true] %s534
          %s536 = sshll.u32 [#allocation6], 4
          %s537 = int_to_ptr.vmem [resolvable:$true] %s536
          %542 = dma.hbm_to_vmem [thread:$0]  %s535, 1024, %s537, [#allocation5], 128, 128, 8
        $region16: #{ms_ssim_loss.1} parent=11 // pred_fallthru
          _
        // Predicated region
        $region17: #{ms_ssim_loss.1} parent=11 // pred_check
          %p543 = pneg %p150
        $region18: #{ms_ssim_loss.1} parent=11 // pred_check_branch
          %545 = sbr.rel (%p543) target = $region20
        $region19: #{ms_ssim_loss.1} parent=11 // pred_region
          %547 = vsyncadd [#allocation8], 0
          %s548 = sshll.u32 %s3, 4
          %s549 = int_to_ptr.hbm [resolvable:$true] %s548
          %s550 = sshll.u32 [#allocation7], 4
          %s551 = int_to_ptr.vmem [resolvable:$true] %s550
          %556 = dma.hbm_to_vmem [thread:$0]  %s549, 512, %s551, [#allocation8], 128, 128, 8
        $region20: #{ms_ssim_loss.1} parent=11 // pred_fallthru
          _
        // Predicated region
        $region21: #{ms_ssim_loss.1} parent=11 // pred_check
          %p557 = pneg %p171
        $region22: #{ms_ssim_loss.1} parent=11 // pred_check_branch
          %559 = sbr.rel (%p557) target = $region24
        $region23: #{ms_ssim_loss.1} parent=11 // pred_region
          %561 = vsyncadd [#allocation8], 0
          %s562 = sshll.u32 %s4, 4
          %s563 = int_to_ptr.hbm [resolvable:$true] %s562
          %s564 = sshll.u32 [#allocation9], 4
          %s565 = int_to_ptr.vmem [resolvable:$true] %s564
          %570 = dma.hbm_to_vmem [thread:$0]  %s563, 256, %s565, [#allocation8], 128, 128, 8
        $region24: #{ms_ssim_loss.1} parent=11 // pred_fallthru
          _
        // Predicated region
        $region25: #{ms_ssim_loss.1} parent=11 // pred_check
          %p571 = pneg %p192
        $region26: #{ms_ssim_loss.1} parent=11 // pred_check_branch
          %573 = sbr.rel (%p571) target = $region28
        $region27: #{ms_ssim_loss.1} parent=11 // pred_region
          %575 = vsyncadd [#allocation11], 0
          %s577 = sshll.u32 %s5, 4
          %s578 = int_to_ptr.hbm [resolvable:$true] %s577
          %s579 = sshll.u32 [#allocation10], 4
          %s580 = int_to_ptr.vmem [resolvable:$true] %s579
          %582 = dma.hbm_to_vmem [thread:$0]  %s578, 128, %s580, [#allocation11]
        $region28: #{ms_ssim_loss.1} parent=11 // pred_fallthru
          _
        // Predicated region
        $region29: #{ms_ssim_loss.1} parent=11 // pred_check
          %p583 = pneg %p213
        $region30: #{ms_ssim_loss.1} parent=11 // pred_check_branch
          %585 = sbr.rel (%p583) target = $region32
        $region31: #{ms_ssim_loss.1} parent=11 // pred_region
          _
        $region32: #{ms_ssim_loss.1} parent=11 // pred_fallthru
          _
        // Predicated region
        $region33: #{ms_ssim_loss.1} parent=11 // pred_check
          %p586 = pneg %p234
        $region34: #{ms_ssim_loss.1} parent=11 // pred_check_branch
          %588 = sbr.rel (%p586) target = $region36
        $region35: #{ms_ssim_loss.1} parent=11 // pred_region
          %590 = vsyncadd [#allocation11], 0
          %s591 = sshll.u32 %s7, 4
          %s592 = int_to_ptr.hbm [resolvable:$true] %s591
          %s593 = sshll.u32 [#allocation12], 4
          %s594 = int_to_ptr.vmem [resolvable:$true] %s593
          %599 = dma.hbm_to_vmem [thread:$0]  %s592, 14976, %s594, [#allocation11], 384, 384, 24
        $region36: #{ms_ssim_loss.1} parent=11 // pred_fallthru
          _
        // Predicated region
        $region37: #{ms_ssim_loss.1} parent=11 // pred_check
          %p600 = pneg %p255
        $region38: #{ms_ssim_loss.1} parent=11 // pred_check_branch
          %602 = sbr.rel (%p600) target = $region40
        $region39: #{ms_ssim_loss.1} parent=11 // pred_region
          %604 = vsyncadd [#allocation14], 0
          %s605 = sshll.u32 %s8, 4
          %s606 = int_to_ptr.hbm [resolvable:$true] %s605
          %s607 = sshll.u32 [#allocation13], 4
          %s608 = int_to_ptr.vmem [resolvable:$true] %s607
          %613 = dma.hbm_to_vmem [thread:$0]  %s606, 4864, %s608, [#allocation14], 256, 256, 16
        $region40: #{ms_ssim_loss.1} parent=11 // pred_fallthru
          _
        // Predicated region
        $region41: #{ms_ssim_loss.1} parent=11 // pred_check
          %p614 = pneg %p276
        $region42: #{ms_ssim_loss.1} parent=11 // pred_check_branch
          %616 = sbr.rel (%p614) target = $region44
        $region43: #{ms_ssim_loss.1} parent=11 // pred_region
          %618 = vsyncadd [#allocation14], 0
          %s619 = sshll.u32 %s9, 4
          %s620 = int_to_ptr.hbm [resolvable:$true] %s619
          %s621 = sshll.u32 [#allocation15], 4
          %s622 = int_to_ptr.vmem [resolvable:$true] %s621
          %627 = dma.hbm_to_vmem [thread:$0]  %s620, 1152, %s622, [#allocation14], 128, 128, 8
        $region44: #{ms_ssim_loss.1} parent=11 // pred_fallthru
          _
        // Predicated region
        $region45: #{ms_ssim_loss.1} parent=11 // pred_check
          %p628 = pneg %p297
        $region46: #{ms_ssim_loss.1} parent=11 // pred_check_branch
          %630 = sbr.rel (%p628) target = $region48
        $region47: #{ms_ssim_loss.1} parent=11 // pred_region
          %632 = vsyncadd [#allocation17], 0
          %s633 = sshll.u32 %s10, 4
          %s634 = int_to_ptr.hbm [resolvable:$true] %s633
          %s635 = sshll.u32 [#allocation16], 4
          %s636 = int_to_ptr.vmem [resolvable:$true] %s635
          %641 = dma.hbm_to_vmem [thread:$0]  %s634, 512, %s636, [#allocation17], 128, 128, 8
        $region48: #{ms_ssim_loss.1} parent=11 // pred_fallthru
          _
        // Predicated region
        $region49: #{ms_ssim_loss.1} parent=11 // pred_check
          %p642 = pneg %p318
        $region50: #{ms_ssim_loss.1} parent=11 // pred_check_branch
          %644 = sbr.rel (%p642) target = $region52
        $region51: #{ms_ssim_loss.1} parent=11 // pred_region
          _
        $region52: #{ms_ssim_loss.1} parent=11 // pred_fallthru
          _
        // Predicated region
        $region53: #{ms_ssim_loss.1} parent=11 // pred_check
          %p645 = pneg %p339
        $region54: #{ms_ssim_loss.1} parent=11 // pred_check_branch
          %647 = sbr.rel (%p645) target = $region56
        $region55: #{ms_ssim_loss.1} parent=11 // pred_region
          %649 = vsyncadd [#allocation17], 0
          %s650 = sshll.u32 %s12, 4
          %s651 = int_to_ptr.hbm [resolvable:$true] %s650
          %s652 = sshll.u32 [#allocation18], 4
          %s653 = int_to_ptr.vmem [resolvable:$true] %s652
          %658 = dma.hbm_to_vmem [thread:$0]  %s651, 512, %s653, [#allocation17], 128, 128, 8
        $region56: #{ms_ssim_loss.1} parent=11 // pred_fallthru
          _
        // Predicated region
        $region57: #{ms_ssim_loss.1} parent=11 // pred_check
          %p659 = pneg %p360
        $region58: #{ms_ssim_loss.1} parent=11 // pred_check_branch
          %661 = sbr.rel (%p659) target = $region60
        $region59: #{ms_ssim_loss.1} parent=11 // pred_region
          %663 = vsyncadd [#allocation20], 0
          %s664 = sshll.u32 %s13, 4
          %s665 = int_to_ptr.hbm [resolvable:$true] %s664
          %s666 = sshll.u32 [#allocation19], 4
          %s667 = int_to_ptr.vmem [resolvable:$true] %s666
          %672 = dma.hbm_to_vmem [thread:$0]  %s665, 256, %s667, [#allocation20], 128, 128, 8
        $region60: #{ms_ssim_loss.1} parent=11 // pred_fallthru
          _
        // Predicated region
        $region61: #{ms_ssim_loss.1} parent=11 // pred_check
          %p673 = pneg %p381
        $region62: #{ms_ssim_loss.1} parent=11 // pred_check_branch
          %675 = sbr.rel (%p673) target = $region64
        $region63: #{ms_ssim_loss.1} parent=11 // pred_region
          %677 = vsyncadd [#allocation20], 0
          %s679 = sshll.u32 %s14, 4
          %s680 = int_to_ptr.hbm [resolvable:$true] %s679
          %s681 = sshll.u32 [#allocation21], 4
          %s682 = int_to_ptr.vmem [resolvable:$true] %s681
          %684 = dma.hbm_to_vmem [thread:$0]  %s680, 128, %s682, [#allocation20]
        $region64: #{ms_ssim_loss.1} parent=11 // pred_fallthru
          _
        // Predicated region
        $region65: #{ms_ssim_loss.1} parent=11 // pred_check
          %p685 = pneg %p402
        $region66: #{ms_ssim_loss.1} parent=11 // pred_check_branch
          %687 = sbr.rel (%p685) target = $region68
        $region67: #{ms_ssim_loss.1} parent=11 // pred_region
          %689 = vsyncadd [#allocation23], 0
          %s691 = sshll.u32 %s15, 4
          %s692 = int_to_ptr.hbm [resolvable:$true] %s691
          %s693 = sshll.u32 [#allocation22], 4
          %s694 = int_to_ptr.vmem [resolvable:$true] %s693
          %696 = dma.hbm_to_vmem [thread:$0]  %s692, 64, %s694, [#allocation23]
        $region68: #{ms_ssim_loss.1} parent=11 // pred_fallthru
          _
        // Predicated region
        $region69: #{ms_ssim_loss.1} parent=11 // pred_check
          %p697 = pneg %p423
        $region70: #{ms_ssim_loss.1} parent=11 // pred_check_branch
          %699 = sbr.rel (%p697) target = $region72
        $region71: #{ms_ssim_loss.1} parent=11 // pred_region
          %701 = vsyncadd [#allocation23], 0
          %s702 = sshll.u32 %s16, 4
          %s703 = int_to_ptr.hbm [resolvable:$true] %s702
          %s704 = sshll.u32 [#allocation24], 4
          %s705 = int_to_ptr.vmem [resolvable:$true] %s704
          %710 = dma.hbm_to_vmem [thread:$0]  %s703, 1024, %s705, [#allocation23], 128, 128, 8
        $region72: #{ms_ssim_loss.1} parent=11 // pred_fallthru
          _
        // Predicated region
        $region73: #{ms_ssim_loss.1} parent=11 // pred_check
          %p711 = pneg %p444
        $region74: #{ms_ssim_loss.1} parent=11 // pred_check_branch
          %713 = sbr.rel (%p711) target = $region76
        $region75: #{ms_ssim_loss.1} parent=11 // pred_region
          %715 = vsyncadd [#allocation26], 0
          %s716 = sshll.u32 %s17, 4
          %s717 = int_to_ptr.hbm [resolvable:$true] %s716
          %s718 = sshll.u32 [#allocation25], 4
          %s719 = int_to_ptr.vmem [resolvable:$true] %s718
          %724 = dma.hbm_to_vmem [thread:$0]  %s717, 512, %s719, [#allocation26], 128, 128, 8
        $region76: #{ms_ssim_loss.1} parent=11 // pred_fallthru
          _
        // Predicated region
        $region77: #{ms_ssim_loss.1} parent=11 // pred_check
          %p725 = pneg %p465
        $region78: #{ms_ssim_loss.1} parent=11 // pred_check_branch
          %727 = sbr.rel (%p725) target = $region80
        $region79: #{ms_ssim_loss.1} parent=11 // pred_region
          %729 = vsyncadd [#allocation26], 0
          %s730 = sshll.u32 %s18, 4
          %s731 = int_to_ptr.hbm [resolvable:$true] %s730
          %s732 = sshll.u32 [#allocation27], 4
          %s733 = int_to_ptr.vmem [resolvable:$true] %s732
          %738 = dma.hbm_to_vmem [thread:$0]  %s731, 256, %s733, [#allocation26], 128, 128, 8
        $region80: #{ms_ssim_loss.1} parent=11 // pred_fallthru
          _
        // Predicated region
        $region81: #{ms_ssim_loss.1} parent=11 // pred_check
          %p739 = pneg %p486
        $region82: #{ms_ssim_loss.1} parent=11 // pred_check_branch
          %741 = sbr.rel (%p739) target = $region84
        $region83: #{ms_ssim_loss.1} parent=11 // pred_region
          %743 = vsyncadd [#allocation29], 0
          %s745 = sshll.u32 %s19, 4
          %s746 = int_to_ptr.hbm [resolvable:$true] %s745
          %s747 = sshll.u32 [#allocation28], 4
          %s748 = int_to_ptr.vmem [resolvable:$true] %s747
          %750 = dma.hbm_to_vmem [thread:$0]  %s746, 128, %s748, [#allocation29]
        $region84: #{ms_ssim_loss.1} parent=11 // pred_fallthru
          _
      $region12: #{ms_ssim_loss.1} parent=5 // pred_fallthru
        _
      %p751 = scmp.lt.s32.totalorder %s40, 6
      // Predicated region
      $region85: #{ms_ssim_loss.1} parent=5 // pred_check
        %p752 = pneg %p751
      $region86: #{ms_ssim_loss.1} parent=5 // pred_check_branch
        %754 = sbr.rel (%p752) target = $region88
      $region87: #{ms_ssim_loss.1} parent=5 // pred_region
        // Predicated region
        $region89: #{ms_ssim_loss.1} parent=87 // pred_check
          %p755 = pneg %p74
        $region90: #{ms_ssim_loss.1} parent=87 // pred_check_branch
          %757 = sbr.rel (%p755) target = $region92
        $region91: #{ms_ssim_loss.1} parent=87 // pred_region
          %s758 = sand.u32 %s64, 1
          %s759 = scalar_lea.sflag [#allocation3], %s758
          %s760 = sand.u32 %s64, 1
          %s761 = smul.addr %s760, 64
          %s762 = scalar_lea.vmem [#allocation2], %s761
          %764 = vsyncadd %s759, 0
          %s765 = smul.addr %s48, 8
          %s766 = smul.addr %s47, 24
          %s767 = sadd.s32 %s765, %s766
          %s768 = smul.addr %s767, 8
          %s769 = scalar_lea.hbm %s0, %s768
          %s770 = sshll.u32 %s769, 4
          %s771 = int_to_ptr.hbm [resolvable:$true] %s770
          %s772 = sshll.u32 %s762, 4
          %s773 = int_to_ptr.vmem [resolvable:$true] %s772
          %778 = dma.hbm_to_vmem [thread:$0]  %s771, 1024, %s773, %s759, 128, 128, 8
        $region92: #{ms_ssim_loss.1} parent=87 // pred_fallthru
          _
        // Predicated region
        $region93: #{ms_ssim_loss.1} parent=87 // pred_check
          %p779 = pneg %p102
        $region94: #{ms_ssim_loss.1} parent=87 // pred_check_branch
          %781 = sbr.rel (%p779) target = $region96
        $region95: #{ms_ssim_loss.1} parent=87 // pred_region
          %s782 = sand.u32 %s40, 1
          %s783 = scalar_lea.sflag [#allocation5], %s782
          %s784 = sand.u32 %s92, 1
          %s785 = smul.addr %s784, 64
          %s786 = scalar_lea.vmem [#allocation4], %s785
          %788 = vsyncadd %s783, 0
          %s789 = smul.addr %s48, 8
          %s790 = smul.addr %s47, 24
          %s791 = sadd.s32 %s789, %s790
          %s792 = smul.addr %s791, 8
          %s793 = scalar_lea.hbm %s1, %s792
          %s794 = sshll.u32 %s793, 4
          %s795 = int_to_ptr.hbm [resolvable:$true] %s794
          %s796 = sshll.u32 %s786, 4
          %s797 = int_to_ptr.vmem [resolvable:$true] %s796
          %802 = dma.hbm_to_vmem [thread:$0]  %s795, 1024, %s797, %s783, 128, 128, 8
        $region96: #{ms_ssim_loss.1} parent=87 // pred_fallthru
          _
      $region88: #{ms_ssim_loss.1} parent=5 // pred_fallthru
        _
      %p803 = scmp.le.s32.totalorder 1, %s40
      %p804 = scmp.lt.s32.totalorder %s40, 7
      %p805 = pnand %p803, %p804
      %p806 = pneg %p805
      // Predicated region
      $region97: #{ms_ssim_loss.1} parent=5 // pred_check
        _
      $region98: #{ms_ssim_loss.1} parent=5 // pred_check_branch
        %808 = sbr.rel (%p805) target = $region100
      $region99: #{ms_ssim_loss.1} parent=5 // pred_region
        %s809 = ssub.s32 %s40, 1
        %s810 = sand.u32 %s67, 1
        %s811 = scalar_lea.sflag [#allocation3], %s810
        %s812 = sand.u32 %s67, 1
        %s813 = smul.addr %s812, 64
        %s814 = scalar_lea.vmem [#allocation2], %s813
        // Predicated region
        $region101: #{ms_ssim_loss.1} parent=99 // pred_check
          %p815 = pneg %p80
        $region102: #{ms_ssim_loss.1} parent=99 // pred_check_branch
          %817 = sbr.rel (%p815) target = $region104
        $region103: #{ms_ssim_loss.1} parent=99 // pred_region
          %819 = dma.done %s811, 1024
        $region104: #{ms_ssim_loss.1} parent=99 // pred_fallthru
          _
        %s820 = sand.u32 %s45, 1
        %s821 = scalar_lea.sflag [#allocation5], %s820
        %s822 = sand.u32 %s95, 1
        %s823 = smul.addr %s822, 64
        %s824 = scalar_lea.vmem [#allocation4], %s823
        // Predicated region
        $region105: #{ms_ssim_loss.1} parent=99 // pred_check
          %p825 = pneg %p108
        $region106: #{ms_ssim_loss.1} parent=99 // pred_check_branch
          %827 = sbr.rel (%p825) target = $region108
        $region107: #{ms_ssim_loss.1} parent=99 // pred_region
          %829 = dma.done %s821, 1024
        $region108: #{ms_ssim_loss.1} parent=99 // pred_fallthru
          _
        // Predicated region
        $region109: #{ms_ssim_loss.1} parent=99 // pred_check
          %p830 = pneg %p129
        $region110: #{ms_ssim_loss.1} parent=99 // pred_check_branch
          %832 = sbr.rel (%p830) target = $region112
        $region111: #{ms_ssim_loss.1} parent=99 // pred_region
          %834 = dma.done [#allocation5], 1024
        $region112: #{ms_ssim_loss.1} parent=99 // pred_fallthru
          _
        // Predicated region
        $region113: #{ms_ssim_loss.1} parent=99 // pred_check
          %p835 = pneg %p150
        $region114: #{ms_ssim_loss.1} parent=99 // pred_check_branch
          %837 = sbr.rel (%p835) target = $region116
        $region115: #{ms_ssim_loss.1} parent=99 // pred_region
          %839 = dma.done [#allocation8], 512
        $region116: #{ms_ssim_loss.1} parent=99 // pred_fallthru
          _
        // Predicated region
        $region117: #{ms_ssim_loss.1} parent=99 // pred_check
          %p840 = pneg %p171
        $region118: #{ms_ssim_loss.1} parent=99 // pred_check_branch
          %842 = sbr.rel (%p840) target = $region120
        $region119: #{ms_ssim_loss.1} parent=99 // pred_region
          %844 = dma.done [#allocation8], 256
        $region120: #{ms_ssim_loss.1} parent=99 // pred_fallthru
          _
        // Predicated region
        $region121: #{ms_ssim_loss.1} parent=99 // pred_check
          %p845 = pneg %p192
        $region122: #{ms_ssim_loss.1} parent=99 // pred_check_branch
          %847 = sbr.rel (%p845) target = $region124
        $region123: #{ms_ssim_loss.1} parent=99 // pred_region
          %849 = dma.done [#allocation11], 128
        $region124: #{ms_ssim_loss.1} parent=99 // pred_fallthru
          _
        // Predicated region
        $region125: #{ms_ssim_loss.1} parent=99 // pred_check
          %p850 = pneg %p234
        $region126: #{ms_ssim_loss.1} parent=99 // pred_check_branch
          %852 = sbr.rel (%p850) target = $region128
        $region127: #{ms_ssim_loss.1} parent=99 // pred_region
          %854 = dma.done [#allocation11], 14976
        $region128: #{ms_ssim_loss.1} parent=99 // pred_fallthru
          _
        // Predicated region
        $region129: #{ms_ssim_loss.1} parent=99 // pred_check
          %p855 = pneg %p255
        $region130: #{ms_ssim_loss.1} parent=99 // pred_check_branch
          %857 = sbr.rel (%p855) target = $region132
        $region131: #{ms_ssim_loss.1} parent=99 // pred_region
          %859 = dma.done [#allocation14], 4864
        $region132: #{ms_ssim_loss.1} parent=99 // pred_fallthru
          _
        // Predicated region
        $region133: #{ms_ssim_loss.1} parent=99 // pred_check
          %p860 = pneg %p276
        $region134: #{ms_ssim_loss.1} parent=99 // pred_check_branch
          %862 = sbr.rel (%p860) target = $region136
        $region135: #{ms_ssim_loss.1} parent=99 // pred_region
          %864 = dma.done [#allocation14], 1152
        $region136: #{ms_ssim_loss.1} parent=99 // pred_fallthru
          _
        // Predicated region
        $region137: #{ms_ssim_loss.1} parent=99 // pred_check
          %p865 = pneg %p297
        $region138: #{ms_ssim_loss.1} parent=99 // pred_check_branch
          %867 = sbr.rel (%p865) target = $region140
        $region139: #{ms_ssim_loss.1} parent=99 // pred_region
          %869 = dma.done [#allocation17], 512
        $region140: #{ms_ssim_loss.1} parent=99 // pred_fallthru
          _
        // Predicated region
        $region141: #{ms_ssim_loss.1} parent=99 // pred_check
          %p870 = pneg %p339
        $region142: #{ms_ssim_loss.1} parent=99 // pred_check_branch
          %872 = sbr.rel (%p870) target = $region144
        $region143: #{ms_ssim_loss.1} parent=99 // pred_region
          %874 = dma.done [#allocation17], 512
        $region144: #{ms_ssim_loss.1} parent=99 // pred_fallthru
          _
        // Predicated region
        $region145: #{ms_ssim_loss.1} parent=99 // pred_check
          %p875 = pneg %p360
        $region146: #{ms_ssim_loss.1} parent=99 // pred_check_branch
          %877 = sbr.rel (%p875) target = $region148
        $region147: #{ms_ssim_loss.1} parent=99 // pred_region
          %879 = dma.done [#allocation20], 256
        $region148: #{ms_ssim_loss.1} parent=99 // pred_fallthru
          _
        // Predicated region
        $region149: #{ms_ssim_loss.1} parent=99 // pred_check
          %p880 = pneg %p381
        $region150: #{ms_ssim_loss.1} parent=99 // pred_check_branch
          %882 = sbr.rel (%p880) target = $region152
        $region151: #{ms_ssim_loss.1} parent=99 // pred_region
          %884 = dma.done [#allocation20], 128
        $region152: #{ms_ssim_loss.1} parent=99 // pred_fallthru
          _
        // Predicated region
        $region153: #{ms_ssim_loss.1} parent=99 // pred_check
          %p885 = pneg %p402
        $region154: #{ms_ssim_loss.1} parent=99 // pred_check_branch
          %887 = sbr.rel (%p885) target = $region156
        $region155: #{ms_ssim_loss.1} parent=99 // pred_region
          %889 = dma.done [#allocation23], 64
        $region156: #{ms_ssim_loss.1} parent=99 // pred_fallthru
          _
        // Predicated region
        $region157: #{ms_ssim_loss.1} parent=99 // pred_check
          %p890 = pneg %p423
        $region158: #{ms_ssim_loss.1} parent=99 // pred_check_branch
          %892 = sbr.rel (%p890) target = $region160
        $region159: #{ms_ssim_loss.1} parent=99 // pred_region
          %894 = dma.done [#allocation23], 1024
        $region160: #{ms_ssim_loss.1} parent=99 // pred_fallthru
          _
        // Predicated region
        $region161: #{ms_ssim_loss.1} parent=99 // pred_check
          %p895 = pneg %p444
        $region162: #{ms_ssim_loss.1} parent=99 // pred_check_branch
          %897 = sbr.rel (%p895) target = $region164
        $region163: #{ms_ssim_loss.1} parent=99 // pred_region
          %899 = dma.done [#allocation26], 512
        $region164: #{ms_ssim_loss.1} parent=99 // pred_fallthru
          _
        // Predicated region
        $region165: #{ms_ssim_loss.1} parent=99 // pred_check
          %p900 = pneg %p465
        $region166: #{ms_ssim_loss.1} parent=99 // pred_check_branch
          %902 = sbr.rel (%p900) target = $region168
        $region167: #{ms_ssim_loss.1} parent=99 // pred_region
          %904 = dma.done [#allocation26], 256
        $region168: #{ms_ssim_loss.1} parent=99 // pred_fallthru
          _
        // Predicated region
        $region169: #{ms_ssim_loss.1} parent=99 // pred_check
          %p905 = pneg %p486
        $region170: #{ms_ssim_loss.1} parent=99 // pred_check_branch
          %907 = sbr.rel (%p905) target = $region172
        $region171: #{ms_ssim_loss.1} parent=99 // pred_region
          %909 = dma.done [#allocation29], 128
        $region172: #{ms_ssim_loss.1} parent=99 // pred_fallthru
          _
        %s910 = sand.u32 %s67, 1
        %s911 = scalar_lea.sflag [#allocation3], %s910
        %s912 = sand.u32 %s67, 1
        %s913 = smul.addr %s912, 64
        %s914 = scalar_lea.vmem [#allocation2], %s913
        %p915 = pneg %p80
        %p916 = pneg %p77
        %s917 = sand.u32 %s45, 1
        %s918 = scalar_lea.sflag [#allocation5], %s917
        %s919 = sand.u32 %s95, 1
        %s920 = smul.addr %s919, 64
        %s921 = scalar_lea.vmem [#allocation4], %s920
        %p922 = pneg %p108
        %p923 = pneg %p105
        %p924 = pneg %p129
        %p925 = pneg %p126
        %p926 = pneg %p150
        %p927 = pneg %p147
        %p928 = pneg %p171
        %p929 = pneg %p168
        %p930 = pneg %p192
        %p931 = pneg %p189
        %p932 = pneg %p213
        %p933 = pneg %p210
        %p934 = pneg %p234
        %p935 = pneg %p231
        %p936 = pneg %p255
        %p937 = pneg %p252
        %p938 = pneg %p276
        %p939 = pneg %p273
        %p940 = pneg %p297
        %p941 = pneg %p294
        %p942 = pneg %p318
        %p943 = pneg %p315
        %p944 = pneg %p339
        %p945 = pneg %p336
        %p946 = pneg %p360
        %p947 = pneg %p357
        %p948 = pneg %p381
        %p949 = pneg %p378
        %p950 = pneg %p402
        %p951 = pneg %p399
        %p952 = pneg %p423
        %p953 = pneg %p420
        %p954 = pneg %p444
        %p955 = pneg %p441
        %p956 = pneg %p465
        %p957 = pneg %p462
        %p958 = pneg %p486
        %p959 = pneg %p483
        %p960 = pneg %p514
        %p961 = pneg %p511
        %p962 = scmp.lt.s32.totalorder %s49, 1
        %s963 = scalar_select %p962, %s49, 1
        %p964 = scmp.lt.s32.totalorder %s50, 2
        %s965 = scalar_select %p964, %s50, 2
        %s966 = smul.addr %s963, 3
        %s967 = sadd.s32 %s965, %s966
        %s968 = smul.addr %s967, 8
        %s969 = scalar_lea.vmem %s20, %s968
        %p970 = scmp.lt.s32.totalorder %s49, 1
        %s971 = scalar_select %p970, %s49, 1
        %p972 = scmp.lt.s32.totalorder %s50, 2
        %s973 = scalar_select %p972, %s50, 2
        %s974 = smul.addr %s971, 3
        %s975 = sadd.s32 %s973, %s974
        %s976 = smul.addr %s975, 8
        %s977 = scalar_lea.vmem %s20, %s976
        %v978 = vld [vmem:[%s814] sm:$0xff]
        %v979 = vld [vmem:[%s814 + $0x8] sm:$0xff]
        %v980 = vld [vmem:[%s814 + $0x10] sm:$0xff]
        %v981 = vld [vmem:[%s814 + $0x18] sm:$0xff]
        %v982 = vld [vmem:[%s814 + $0x20] sm:$0xff]
        %v983 = vld [vmem:[%s814 + $0x28] sm:$0xff]
        %v984 = vld [vmem:[%s814 + $0x30] sm:$0xff]
        %v985 = vld [vmem:[%s814 + $0x38] sm:$0xff]
        %v986 = vadd.f32 %v978, 1.0
        %v987 = vadd.f32 %v979, 1.0
        %v988 = vadd.f32 %v980, 1.0
        %v989 = vadd.f32 %v981, 1.0
        %v990 = vadd.f32 %v982, 1.0
        %v991 = vadd.f32 %v983, 1.0
        %v992 = vadd.f32 %v984, 1.0
        %v993 = vadd.f32 %v985, 1.0
        %v994 = vmul.f32 %v986, 0.5
        %v995 = vmul.f32 %v987, 0.5
        %v996 = vmul.f32 %v988, 0.5
        %v997 = vmul.f32 %v989, 0.5
        %v998 = vmul.f32 %v990, 0.5
        %v999 = vmul.f32 %v991, 0.5
        %v1000 = vmul.f32 %v992, 0.5
        %v1001 = vmul.f32 %v993, 0.5
        %v1002 = vld [vmem:[%s824] sm:$0xff]
        %v1003 = vld [vmem:[%s824 + $0x8] sm:$0xff]
        %v1004 = vld [vmem:[%s824 + $0x10] sm:$0xff]
        %v1005 = vld [vmem:[%s824 + $0x18] sm:$0xff]
        %v1006 = vld [vmem:[%s824 + $0x20] sm:$0xff]
        %v1007 = vld [vmem:[%s824 + $0x28] sm:$0xff]
        %v1008 = vld [vmem:[%s824 + $0x30] sm:$0xff]
        %v1009 = vld [vmem:[%s824 + $0x38] sm:$0xff]
        %v1010 = vadd.f32 %v1002, 1.0
        %v1011 = vadd.f32 %v1003, 1.0
        %v1012 = vadd.f32 %v1004, 1.0
        %v1013 = vadd.f32 %v1005, 1.0
        %v1014 = vadd.f32 %v1006, 1.0
        %v1015 = vadd.f32 %v1007, 1.0
        %v1016 = vadd.f32 %v1008, 1.0
        %v1017 = vadd.f32 %v1009, 1.0
        %v1018 = vmul.f32 %v1010, 0.5
        %v1019 = vmul.f32 %v1011, 0.5
        %v1020 = vmul.f32 %v1012, 0.5
        %v1021 = vmul.f32 %v1013, 0.5
        %v1022 = vmul.f32 %v1014, 0.5
        %v1023 = vmul.f32 %v1015, 0.5
        %v1024 = vmul.f32 %v1016, 0.5
        %v1025 = vmul.f32 %v1017, 0.5
        %v1026 = vmul.f32 %v994, %v994
        %v1027 = vmul.f32 %v995, %v995
        %v1028 = vmul.f32 %v996, %v996
        %v1029 = vmul.f32 %v997, %v997
        %v1030 = vmul.f32 %v998, %v998
        %v1031 = vmul.f32 %v999, %v999
        %v1032 = vmul.f32 %v1000, %v1000
        %v1033 = vmul.f32 %v1001, %v1001
        %v1034 = vmul.f32 %v1018, %v1018
        %v1035 = vmul.f32 %v1019, %v1019
        %v1036 = vmul.f32 %v1020, %v1020
        %v1037 = vmul.f32 %v1021, %v1021
        %v1038 = vmul.f32 %v1022, %v1022
        %v1039 = vmul.f32 %v1023, %v1023
        %v1040 = vmul.f32 %v1024, %v1024
        %v1041 = vmul.f32 %v1025, %v1025
        %v1042 = vmul.f32 %v994, %v1018
        %v1043 = vmul.f32 %v995, %v1019
        %v1044 = vmul.f32 %v996, %v1020
        %v1045 = vmul.f32 %v997, %v1021
        %v1046 = vmul.f32 %v998, %v1022
        %v1047 = vmul.f32 %v999, %v1023
        %v1048 = vmul.f32 %v1000, %v1024
        %v1049 = vmul.f32 %v1001, %v1025
        %v1050 = vld [vmem:[#allocation6] sm:$0xff]
        %v1051 = vld [vmem:[#allocation6 + $0x8] sm:$0xff]
        %v1052 = vld [vmem:[#allocation6 + $0x10] sm:$0xff]
        %v1053 = vld [vmem:[#allocation6 + $0x18] sm:$0xff]
        %v1054 = vld [vmem:[#allocation6 + $0x20] sm:$0xff]
        %v1055 = vld [vmem:[#allocation6 + $0x28] sm:$0xff]
        %v1056 = vld [vmem:[#allocation6 + $0x30] sm:$0xff]
        %v1057 = vld [vmem:[#allocation6 + $0x38] sm:$0xff]
        %vm1058 = vcmask 523264
        %v1060 = vsel %vm1058, %v994, 0
        %v1063 = vsel %vm1058, %v995, 0
        %v1066 = vsel %vm1058, %v996, 0
        %v1069 = vsel %vm1058, %v997, 0
        %v1072 = vsel %vm1058, %v998, 0
        %v1075 = vsel %vm1058, %v999, 0
        %v1078 = vsel %vm1058, %v1000, 0
        %v1081 = vsel %vm1058, %v1001, 0
        %v1084 = vsel %vm1058, %v1018, 0
        %v1087 = vsel %vm1058, %v1019, 0
        %v1090 = vsel %vm1058, %v1020, 0
        %v1093 = vsel %vm1058, %v1021, 0
        %v1096 = vsel %vm1058, %v1022, 0
        %v1099 = vsel %vm1058, %v1023, 0
        %v1102 = vsel %vm1058, %v1024, 0
        %v1105 = vsel %vm1058, %v1025, 0
        %v1108 = vsel %vm1058, %v1026, 0
        %v1111 = vsel %vm1058, %v1027, 0
        %v1114 = vsel %vm1058, %v1028, 0
        %v1117 = vsel %vm1058, %v1029, 0
        %v1120 = vsel %vm1058, %v1030, 0
        %v1123 = vsel %vm1058, %v1031, 0
        %v1126 = vsel %vm1058, %v1032, 0
        %v1129 = vsel %vm1058, %v1033, 0
        %v1132 = vsel %vm1058, %v1034, 0
        %v1135 = vsel %vm1058, %v1035, 0
        %v1138 = vsel %vm1058, %v1036, 0
        %v1141 = vsel %vm1058, %v1037, 0
        %v1144 = vsel %vm1058, %v1038, 0
        %v1147 = vsel %vm1058, %v1039, 0
        %v1150 = vsel %vm1058, %v1040, 0
        %v1153 = vsel %vm1058, %v1041, 0
        %v1156 = vsel %vm1058, %v1042, 0
        %v1159 = vsel %vm1058, %v1043, 0
        %v1162 = vsel %vm1058, %v1044, 0
        %v1165 = vsel %vm1058, %v1045, 0
        %v1168 = vsel %vm1058, %v1046, 0
        %v1171 = vsel %vm1058, %v1047, 0
        %v1174 = vsel %vm1058, %v1048, 0
        %v1177 = vsel %vm1058, %v1049, 0
        %1179 = vmatpush.msra.mxu0 0.0
        %1180 = vmatpush.msra.mxu0 0.0
        %1181 = vmatpush.msra.mxu0 0.0
        %1182 = vmatpush.msra.mxu0 0.0
        %1183 = vmatpush.msra.mxu0 0.0
        %1184 = vmatpush.msra.mxu0 0.0
        %1185 = vmatpush.msra.mxu0 0.0
        %1186 = vmatpush.msra.mxu0 0.0
        %1187 = vmatpush.msra.mxu0 %v1057
        %1188 = vmatpush.msra.mxu0 %v1056
        %1189 = vmatpush.msra.mxu0 %v1055
        %1190 = vmatpush.msra.mxu0 %v1054
        %1191 = vmatpush.msra.mxu0 %v1053
        %1192 = vmatpush.msra.mxu0 %v1052
        %1193 = vmatpush.msra.mxu0 %v1051
        %1194 = vmatpush.msra.mxu0 %v1050
        %1195 = vmatmul.f32.gmra.mxu0 %v1060
        %v1196 = vpop.f32.mrf.mxu0
        %v1197 = vadd.f32 0.0, %v1196
        %1198 = vmatmul.f32.gmra.mxu0 %v1063
        %v1199 = vpop.f32.mrf.mxu0
        %v1200 = vadd.f32 0.0, %v1199
        %1201 = vmatmul.f32.gmra.mxu0 %v1066
        %v1202 = vpop.f32.mrf.mxu0
        %v1203 = vadd.f32 0.0, %v1202
        %1204 = vmatmul.f32.gmra.mxu0 %v1069
        %v1205 = vpop.f32.mrf.mxu0
        %v1206 = vadd.f32 0.0, %v1205
        %1207 = vmatmul.f32.gmra.mxu0 %v1072
        %v1208 = vpop.f32.mrf.mxu0
        %v1209 = vadd.f32 0.0, %v1208
        %1210 = vmatmul.f32.gmra.mxu0 %v1075
        %v1211 = vpop.f32.mrf.mxu0
        %v1212 = vadd.f32 0.0, %v1211
        %1213 = vmatmul.f32.gmra.mxu0 %v1078
        %v1214 = vpop.f32.mrf.mxu0
        %v1215 = vadd.f32 0.0, %v1214
        %1216 = vmatmul.f32.gmra.mxu0 %v1081
        %v1217 = vpop.f32.mrf.mxu0
        %v1218 = vadd.f32 0.0, %v1217
        %1219 = vmatmul.f32.gmra.mxu0 %v1084
        %v1220 = vpop.f32.mrf.mxu0
        %v1221 = vadd.f32 0.0, %v1220
        %1222 = vmatmul.f32.gmra.mxu0 %v1087
        %v1223 = vpop.f32.mrf.mxu0
        %v1224 = vadd.f32 0.0, %v1223
        %1225 = vmatmul.f32.gmra.mxu0 %v1090
        %v1226 = vpop.f32.mrf.mxu0
        %v1227 = vadd.f32 0.0, %v1226
        %1228 = vmatmul.f32.gmra.mxu0 %v1093
        %v1229 = vpop.f32.mrf.mxu0
        %v1230 = vadd.f32 0.0, %v1229
        %1231 = vmatmul.f32.gmra.mxu0 %v1096
        %v1232 = vpop.f32.mrf.mxu0
        %v1233 = vadd.f32 0.0, %v1232
        %1234 = vmatmul.f32.gmra.mxu0 %v1099
        %v1235 = vpop.f32.mrf.mxu0
        %v1236 = vadd.f32 0.0, %v1235
        %1237 = vmatmul.f32.gmra.mxu0 %v1102
        %v1238 = vpop.f32.mrf.mxu0
        %v1239 = vadd.f32 0.0, %v1238
        %1240 = vmatmul.f32.gmra.mxu0 %v1105
        %v1241 = vpop.f32.mrf.mxu0
        %v1242 = vadd.f32 0.0, %v1241
        %1243 = vmatmul.f32.gmra.mxu0 %v1108
        %v1244 = vpop.f32.mrf.mxu0
        %v1245 = vadd.f32 0.0, %v1244
        %1246 = vmatmul.f32.gmra.mxu0 %v1111
        %v1247 = vpop.f32.mrf.mxu0
        %v1248 = vadd.f32 0.0, %v1247
        %1249 = vmatmul.f32.gmra.mxu0 %v1114
        %v1250 = vpop.f32.mrf.mxu0
        %v1251 = vadd.f32 0.0, %v1250
        %1252 = vmatmul.f32.gmra.mxu0 %v1117
        %v1253 = vpop.f32.mrf.mxu0
        %v1254 = vadd.f32 0.0, %v1253
        %1255 = vmatmul.f32.gmra.mxu0 %v1120
        %v1256 = vpop.f32.mrf.mxu0
        %v1257 = vadd.f32 0.0, %v1256
        %1258 = vmatmul.f32.gmra.mxu0 %v1123
        %v1259 = vpop.f32.mrf.mxu0
        %v1260 = vadd.f32 0.0, %v1259
        %1261 = vmatmul.f32.gmra.mxu0 %v1126
        %v1262 = vpop.f32.mrf.mxu0
        %v1263 = vadd.f32 0.0, %v1262
        %1264 = vmatmul.f32.gmra.mxu0 %v1129
        %v1265 = vpop.f32.mrf.mxu0
        %v1266 = vadd.f32 0.0, %v1265
        %1267 = vmatmul.f32.gmra.mxu0 %v1132
        %v1268 = vpop.f32.mrf.mxu0
        %v1269 = vadd.f32 0.0, %v1268
        %1270 = vmatmul.f32.gmra.mxu0 %v1135
        %v1271 = vpop.f32.mrf.mxu0
        %v1272 = vadd.f32 0.0, %v1271
        %1273 = vmatmul.f32.gmra.mxu0 %v1138
        %v1274 = vpop.f32.mrf.mxu0
        %v1275 = vadd.f32 0.0, %v1274
        %1276 = vmatmul.f32.gmra.mxu0 %v1141
        %v1277 = vpop.f32.mrf.mxu0
        %v1278 = vadd.f32 0.0, %v1277
        %1279 = vmatmul.f32.gmra.mxu0 %v1144
        %v1280 = vpop.f32.mrf.mxu0
        %v1281 = vadd.f32 0.0, %v1280
        %1282 = vmatmul.f32.gmra.mxu0 %v1147
        %v1283 = vpop.f32.mrf.mxu0
        %v1284 = vadd.f32 0.0, %v1283
        %1285 = vmatmul.f32.gmra.mxu0 %v1150
        %v1286 = vpop.f32.mrf.mxu0
        %v1287 = vadd.f32 0.0, %v1286
        %1288 = vmatmul.f32.gmra.mxu0 %v1153
        %v1289 = vpop.f32.mrf.mxu0
        %v1290 = vadd.f32 0.0, %v1289
        %1291 = vmatmul.f32.gmra.mxu0 %v1156
        %v1292 = vpop.f32.mrf.mxu0
        %v1293 = vadd.f32 0.0, %v1292
        %1294 = vmatmul.f32.gmra.mxu0 %v1159
        %v1295 = vpop.f32.mrf.mxu0
        %v1296 = vadd.f32 0.0, %v1295
        %1297 = vmatmul.f32.gmra.mxu0 %v1162
        %v1298 = vpop.f32.mrf.mxu0
        %v1299 = vadd.f32 0.0, %v1298
        %1300 = vmatmul.f32.gmra.mxu0 %v1165
        %v1301 = vpop.f32.mrf.mxu0
        %v1302 = vadd.f32 0.0, %v1301
        %1303 = vmatmul.f32.gmra.mxu0 %v1168
        %v1304 = vpop.f32.mrf.mxu0
        %v1305 = vadd.f32 0.0, %v1304
        %1306 = vmatmul.f32.gmra.mxu0 %v1171
        %v1307 = vpop.f32.mrf.mxu0
        %v1308 = vadd.f32 0.0, %v1307
        %1309 = vmatmul.f32.gmra.mxu0 %v1174
        %v1310 = vpop.f32.mrf.mxu0
        %v1311 = vadd.f32 0.0, %v1310
        %1312 = vmatmul.f32.gmra.mxu0 %v1177
        %v1313 = vpop.f32.mrf.mxu0
        %v1314 = vadd.f32 0.0, %v1313
        %1315 = vdwg.mxu0
        %v1316 = vld [vmem:[#allocation12] sm:$0xff]
        %v1317 = vld [vmem:[#allocation12 + $0x8] sm:$0xff]
        %v1318 = vld [vmem:[#allocation12 + $0x10] sm:$0xff]
        %v1319 = vld [vmem:[#allocation12 + $0x18] sm:$0xff]
        %v1320 = vld [vmem:[#allocation12 + $0x20] sm:$0xff]
        %v1321 = vld [vmem:[#allocation12 + $0x28] sm:$0xff]
        %v1322 = vld [vmem:[#allocation12 + $0x30] sm:$0xff]
        %v1323 = vld [vmem:[#allocation12 + $0x38] sm:$0xff]
        %v1324 = vld [vmem:[#allocation12 + $0x40] sm:$0xff]
        %v1325 = vld [vmem:[#allocation12 + $0x48] sm:$0xff]
        %v1326 = vld [vmem:[#allocation12 + $0x50] sm:$0xff]
        %v1327 = vld [vmem:[#allocation12 + $0x58] sm:$0xff]
        %v1328 = vld [vmem:[#allocation12 + $0x60] sm:$0xff]
        %v1329 = vld [vmem:[#allocation12 + $0x68] sm:$0xff]
        %v1330 = vld [vmem:[#allocation12 + $0x70] sm:$0xff]
        %v1331 = vld [vmem:[#allocation12 + $0x78] sm:$0xff]
        %v1332 = vld [vmem:[#allocation12 + $0x80] sm:$0xff]
        %v1333 = vld [vmem:[#allocation12 + $0x88] sm:$0xff]
        %v1334 = vld [vmem:[#allocation12 + $0x90] sm:$0xff]
        %v1335 = vld [vmem:[#allocation12 + $0x98] sm:$0xff]
        %v1336 = vld [vmem:[#allocation12 + $0xa0] sm:$0xff]
        %v1337 = vld [vmem:[#allocation12 + $0xa8] sm:$0xff]
        %v1338 = vld [vmem:[#allocation12 + $0xb0] sm:$0xff]
        %v1339 = vld [vmem:[#allocation12 + $0xb8] sm:$0xff]
        %v1340 = vld [vmem:[#allocation12 + $0xc0] sm:$0xff]
        %v1341 = vld [vmem:[#allocation12 + $0xc8] sm:$0xff]
        %v1342 = vld [vmem:[#allocation12 + $0xd0] sm:$0xff]
        %v1343 = vld [vmem:[#allocation12 + $0xd8] sm:$0xff]
        %v1344 = vld [vmem:[#allocation12 + $0xe0] sm:$0xff]
        %v1345 = vld [vmem:[#allocation12 + $0xe8] sm:$0xff]
        %v1346 = vld [vmem:[#allocation12 + $0xf0] sm:$0xff]
        %v1347 = vld [vmem:[#allocation12 + $0xf8] sm:$0xff]
        %v1348 = vld [vmem:[#allocation12 + $0x100] sm:$0xff]
        %v1349 = vld [vmem:[#allocation12 + $0x108] sm:$0xff]
        %v1350 = vld [vmem:[#allocation12 + $0x110] sm:$0xff]
        %v1351 = vld [vmem:[#allocation12 + $0x118] sm:$0xff]
        %v1352 = vld [vmem:[#allocation12 + $0x120] sm:$0xff]
        %v1353 = vld [vmem:[#allocation12 + $0x128] sm:$0xff]
        %v1354 = vld [vmem:[#allocation12 + $0x130] sm:$0xff]
        %v1355 = vld [vmem:[#allocation12 + $0x138] sm:$0xff]
        %v1356 = vld [vmem:[#allocation12 + $0x140] sm:$0xff]
        %v1357 = vld [vmem:[#allocation12 + $0x148] sm:$0xff]
        %v1358 = vld [vmem:[#allocation12 + $0x150] sm:$0xff]
        %v1359 = vld [vmem:[#allocation12 + $0x158] sm:$0xff]
        %v1360 = vld [vmem:[#allocation12 + $0x160] sm:$0xff]
        %v1361 = vld [vmem:[#allocation12 + $0x168] sm:$0xff]
        %v1362 = vld [vmem:[#allocation12 + $0x170] sm:$0xff]
        %v1363 = vld [vmem:[#allocation12 + $0x178] sm:$0xff]
        %v1364 = vld [vmem:[#allocation12 + $0x180] sm:$0xff]
        %v1365 = vld [vmem:[#allocation12 + $0x188] sm:$0xff]
        %v1366 = vld [vmem:[#allocation12 + $0x190] sm:$0xff]
        %v1367 = vld [vmem:[#allocation12 + $0x198] sm:$0xff]
        %v1368 = vld [vmem:[#allocation12 + $0x1a0] sm:$0xff]
        %v1369 = vld [vmem:[#allocation12 + $0x1a8] sm:$0xff]
        %v1370 = vld [vmem:[#allocation12 + $0x1b0] sm:$0xff]
        %v1371 = vld [vmem:[#allocation12 + $0x1b8] sm:$0xff]
        %v1372 = vld [vmem:[#allocation12 + $0x1c0] sm:$0xff]
        %v1373 = vld [vmem:[#allocation12 + $0x1c8] sm:$0xff]
        %v1374 = vld [vmem:[#allocation12 + $0x1d0] sm:$0xff]
        %v1375 = vld [vmem:[#allocation12 + $0x1d8] sm:$0xff]
        %v1376 = vld [vmem:[#allocation12 + $0x1e0] sm:$0xff]
        %v1377 = vld [vmem:[#allocation12 + $0x1e8] sm:$0xff]
        %v1378 = vld [vmem:[#allocation12 + $0x1f0] sm:$0xff]
        %v1379 = vld [vmem:[#allocation12 + $0x1f8] sm:$0xff]
        %v1380 = vld [vmem:[#allocation12 + $0x200] sm:$0xff]
        %v1381 = vld [vmem:[#allocation12 + $0x208] sm:$0xff]
        %v1382 = vld [vmem:[#allocation12 + $0x210] sm:$0xff]
        %v1383 = vld [vmem:[#allocation12 + $0x218] sm:$0xff]
        %v1384 = vld [vmem:[#allocation12 + $0x220] sm:$0xff]
        %v1385 = vld [vmem:[#allocation12 + $0x228] sm:$0xff]
        %v1386 = vld [vmem:[#allocation12 + $0x230] sm:$0xff]
        %v1387 = vld [vmem:[#allocation12 + $0x238] sm:$0xff]
        %v1388 = vld [vmem:[#allocation12 + $0x240] sm:$0xff]
        %v1389 = vld [vmem:[#allocation12 + $0x248] sm:$0xff]
        %v1390 = vld [vmem:[#allocation12 + $0x250] sm:$0xff]
        %v1391 = vld [vmem:[#allocation12 + $0x258] sm:$0xff]
        %v1392 = vld [vmem:[#allocation12 + $0x260] sm:$0xff]
        %v1393 = vld [vmem:[#allocation12 + $0x268] sm:$0xff]
        %v1394 = vld [vmem:[#allocation12 + $0x270] sm:$0xff]
        %v1395 = vld [vmem:[#allocation12 + $0x278] sm:$0xff]
        %v1396 = vld [vmem:[#allocation12 + $0x280] sm:$0xff]
        %v1397 = vld [vmem:[#allocation12 + $0x288] sm:$0xff]
        %v1398 = vld [vmem:[#allocation12 + $0x290] sm:$0xff]
        %v1399 = vld [vmem:[#allocation12 + $0x298] sm:$0xff]
        %v1400 = vld [vmem:[#allocation12 + $0x2a0] sm:$0xff]
        %v1401 = vld [vmem:[#allocation12 + $0x2a8] sm:$0xff]
        %v1402 = vld [vmem:[#allocation12 + $0x2b0] sm:$0xff]
        %v1403 = vld [vmem:[#allocation12 + $0x2b8] sm:$0xff]
        %v1404 = vld [vmem:[#allocation12 + $0x2c0] sm:$0xff]
        %v1405 = vld [vmem:[#allocation12 + $0x2c8] sm:$0xff]
        %v1406 = vld [vmem:[#allocation12 + $0x2d0] sm:$0xff]
        %v1407 = vld [vmem:[#allocation12 + $0x2d8] sm:$0xff]
        %v1408 = vld [vmem:[#allocation12 + $0x2e0] sm:$0xff]
        %v1409 = vld [vmem:[#allocation12 + $0x2e8] sm:$0xff]
        %v1410 = vld [vmem:[#allocation12 + $0x2f0] sm:$0xff]
        %v1411 = vld [vmem:[#allocation12 + $0x2f8] sm:$0xff]
        %v1412 = vld [vmem:[#allocation12 + $0x300] sm:$0xff]
        %v1413 = vld [vmem:[#allocation12 + $0x308] sm:$0xff]
        %v1414 = vld [vmem:[#allocation12 + $0x310] sm:$0xff]
        %v1415 = vld [vmem:[#allocation12 + $0x318] sm:$0xff]
        %v1416 = vld [vmem:[#allocation12 + $0x320] sm:$0xff]
        %v1417 = vld [vmem:[#allocation12 + $0x328] sm:$0xff]
        %v1418 = vld [vmem:[#allocation12 + $0x330] sm:$0xff]
        %v1419 = vld [vmem:[#allocation12 + $0x338] sm:$0xff]
        %v1420 = vld [vmem:[#allocation12 + $0x340] sm:$0xff]
        %v1421 = vld [vmem:[#allocation12 + $0x348] sm:$0xff]
        %v1422 = vld [vmem:[#allocation12 + $0x350] sm:$0xff]
        %v1423 = vld [vmem:[#allocation12 + $0x358] sm:$0xff]
        %v1424 = vld [vmem:[#allocation12 + $0x360] sm:$0xff]
        %v1425 = vld [vmem:[#allocation12 + $0x368] sm:$0xff]
        %v1426 = vld [vmem:[#allocation12 + $0x370] sm:$0xff]
        %v1427 = vld [vmem:[#allocation12 + $0x378] sm:$0xff]
        %v1428 = vld [vmem:[#allocation12 + $0x380] sm:$0xff]
        %v1429 = vld [vmem:[#allocation12 + $0x388] sm:$0xff]
        %v1430 = vld [vmem:[#allocation12 + $0x390] sm:$0x3f]
        %v1431 = vld [vmem:[#allocation12 + $0x398] sm:$0x3f]
        %v1432 = vld [vmem:[#allocation12 + $0x3a0] sm:$0x3f]
        %v1434 = vsel %vm1058, %v1318, 0
        %v1437 = vsel %vm1058, %v1321, 0
        %v1440 = vsel %vm1058, %v1324, 0
        %v1443 = vsel %vm1058, %v1327, 0
        %v1446 = vsel %vm1058, %v1330, 0
        %v1449 = vsel %vm1058, %v1333, 0
        %v1452 = vsel %vm1058, %v1336, 0
        %v1455 = vsel %vm1058, %v1339, 0
        %v1458 = vsel %vm1058, %v1342, 0
        %v1461 = vsel %vm1058, %v1345, 0
        %v1464 = vsel %vm1058, %v1348, 0
        %v1467 = vsel %vm1058, %v1351, 0
        %v1470 = vsel %vm1058, %v1354, 0
        %v1473 = vsel %vm1058, %v1357, 0
        %v1476 = vsel %vm1058, %v1360, 0
        %v1479 = vsel %vm1058, %v1363, 0
        %v1482 = vsel %vm1058, %v1366, 0
        %v1485 = vsel %vm1058, %v1369, 0
        %v1488 = vsel %vm1058, %v1372, 0
        %v1491 = vsel %vm1058, %v1375, 0
        %v1494 = vsel %vm1058, %v1378, 0
        %v1497 = vsel %vm1058, %v1381, 0
        %v1500 = vsel %vm1058, %v1384, 0
        %v1503 = vsel %vm1058, %v1387, 0
        %v1506 = vsel %vm1058, %v1390, 0
        %v1509 = vsel %vm1058, %v1393, 0
        %v1512 = vsel %vm1058, %v1396, 0
        %v1515 = vsel %vm1058, %v1399, 0
        %v1518 = vsel %vm1058, %v1402, 0
        %v1521 = vsel %vm1058, %v1405, 0
        %v1524 = vsel %vm1058, %v1408, 0
        %v1527 = vsel %vm1058, %v1411, 0
        %v1530 = vsel %vm1058, %v1414, 0
        %v1533 = vsel %vm1058, %v1417, 0
        %v1536 = vsel %vm1058, %v1420, 0
        %v1539 = vsel %vm1058, %v1423, 0
        %v1542 = vsel %vm1058, %v1426, 0
        %v1545 = vsel %vm1058, %v1429, 0
        %v1548 = vsel %vm1058, %v1432, 0
        %1550 = vmatpush.msra.mxu0 %v1242
        %1551 = vmatpush.msra.mxu0 %v1239
        %1552 = vmatpush.msra.mxu0 %v1236
        %1553 = vmatpush.msra.mxu0 %v1233
        %1554 = vmatpush.msra.mxu0 %v1230
        %1555 = vmatpush.msra.mxu0 %v1227
        %1556 = vmatpush.msra.mxu0 %v1224
        %1557 = vmatpush.msra.mxu0 %v1221
        %1558 = vmatpush.msra.mxu0 %v1218
        %1559 = vmatpush.msra.mxu0 %v1215
        %1560 = vmatpush.msra.mxu0 %v1212
        %1561 = vmatpush.msra.mxu0 %v1209
        %1562 = vmatpush.msra.mxu0 %v1206
        %1563 = vmatpush.msra.mxu0 %v1203
        %1564 = vmatpush.msra.mxu0 %v1200
        %1565 = vmatpush.msra.mxu0 %v1197
        %1566 = vmatmul.f32.gmra.mxu0 %v1316
        %v1567 = vpop.f32.mrf.mxu0
        %v1568 = vadd.f32 0.0, %v1567
        %1569 = vmatmul.f32.gmra.mxu0 %v1319
        %v1570 = vpop.f32.mrf.mxu0
        %v1571 = vadd.f32 0.0, %v1570
        %1572 = vmatmul.f32.gmra.mxu0 %v1322
        %v1573 = vpop.f32.mrf.mxu0
        %v1574 = vadd.f32 0.0, %v1573
        %1575 = vmatmul.f32.gmra.mxu0 %v1325
        %v1576 = vpop.f32.mrf.mxu0
        %v1577 = vadd.f32 0.0, %v1576
        %1578 = vmatmul.f32.gmra.mxu0 %v1328
        %v1579 = vpop.f32.mrf.mxu0
        %v1580 = vadd.f32 0.0, %v1579
        %1581 = vmatmul.f32.gmra.mxu0 %v1331
        %v1582 = vpop.f32.mrf.mxu0
        %v1583 = vadd.f32 0.0, %v1582
        %1584 = vmatmul.f32.gmra.mxu0 %v1334
        %v1585 = vpop.f32.mrf.mxu0
        %v1586 = vadd.f32 0.0, %v1585
        %1587 = vmatmul.f32.gmra.mxu0 %v1337
        %v1588 = vpop.f32.mrf.mxu0
        %v1589 = vadd.f32 0.0, %v1588
        %1590 = vmatmul.f32.gmra.mxu0 %v1340
        %v1591 = vpop.f32.mrf.mxu0
        %v1592 = vadd.f32 0.0, %v1591
        %1593 = vmatmul.f32.gmra.mxu0 %v1343
        %v1594 = vpop.f32.mrf.mxu0
        %v1595 = vadd.f32 0.0, %v1594
        %1596 = vmatmul.f32.gmra.mxu0 %v1346
        %v1597 = vpop.f32.mrf.mxu0
        %v1598 = vadd.f32 0.0, %v1597
        %1599 = vmatmul.f32.gmra.mxu0 %v1349
        %v1600 = vpop.f32.mrf.mxu0
        %v1601 = vadd.f32 0.0, %v1600
        %1602 = vmatmul.f32.gmra.mxu0 %v1352
        %v1603 = vpop.f32.mrf.mxu0
        %v1604 = vadd.f32 0.0, %v1603
        %1605 = vmatmul.f32.gmra.mxu0 %v1355
        %v1606 = vpop.f32.mrf.mxu0
        %v1607 = vadd.f32 0.0, %v1606
        %1608 = vmatmul.f32.gmra.mxu0 %v1358
        %v1609 = vpop.f32.mrf.mxu0
        %v1610 = vadd.f32 0.0, %v1609
        %1611 = vmatmul.f32.gmra.mxu0 %v1361
        %v1612 = vpop.f32.mrf.mxu0
        %v1613 = vadd.f32 0.0, %v1612
        %1614 = vmatmul.f32.gmra.mxu0 %v1364
        %v1615 = vpop.f32.mrf.mxu0
        %v1616 = vadd.f32 0.0, %v1615
        %1617 = vmatmul.f32.gmra.mxu0 %v1367
        %v1618 = vpop.f32.mrf.mxu0
        %v1619 = vadd.f32 0.0, %v1618
        %1620 = vmatmul.f32.gmra.mxu0 %v1370
        %v1621 = vpop.f32.mrf.mxu0
        %v1622 = vadd.f32 0.0, %v1621
        %1623 = vmatmul.f32.gmra.mxu0 %v1373
        %v1624 = vpop.f32.mrf.mxu0
        %v1625 = vadd.f32 0.0, %v1624
        %1626 = vmatmul.f32.gmra.mxu0 %v1376
        %v1627 = vpop.f32.mrf.mxu0
        %v1628 = vadd.f32 0.0, %v1627
        %1629 = vmatmul.f32.gmra.mxu0 %v1379
        %v1630 = vpop.f32.mrf.mxu0
        %v1631 = vadd.f32 0.0, %v1630
        %1632 = vmatmul.f32.gmra.mxu0 %v1382
        %v1633 = vpop.f32.mrf.mxu0
        %v1634 = vadd.f32 0.0, %v1633
        %1635 = vmatmul.f32.gmra.mxu0 %v1385
        %v1636 = vpop.f32.mrf.mxu0
        %v1637 = vadd.f32 0.0, %v1636
        %1638 = vmatmul.f32.gmra.mxu0 %v1388
        %v1639 = vpop.f32.mrf.mxu0
        %v1640 = vadd.f32 0.0, %v1639
        %1641 = vmatmul.f32.gmra.mxu0 %v1391
        %v1642 = vpop.f32.mrf.mxu0
        %v1643 = vadd.f32 0.0, %v1642
        %1644 = vmatmul.f32.gmra.mxu0 %v1394
        %v1645 = vpop.f32.mrf.mxu0
        %v1646 = vadd.f32 0.0, %v1645
        %1647 = vmatmul.f32.gmra.mxu0 %v1397
        %v1648 = vpop.f32.mrf.mxu0
        %v1649 = vadd.f32 0.0, %v1648
        %1650 = vmatmul.f32.gmra.mxu0 %v1400
        %v1651 = vpop.f32.mrf.mxu0
        %v1652 = vadd.f32 0.0, %v1651
        %1653 = vmatmul.f32.gmra.mxu0 %v1403
        %v1654 = vpop.f32.mrf.mxu0
        %v1655 = vadd.f32 0.0, %v1654
        %1656 = vmatmul.f32.gmra.mxu0 %v1406
        %v1657 = vpop.f32.mrf.mxu0
        %v1658 = vadd.f32 0.0, %v1657
        %1659 = vmatmul.f32.gmra.mxu0 %v1409
        %v1660 = vpop.f32.mrf.mxu0
        %v1661 = vadd.f32 0.0, %v1660
        %1662 = vmatmul.f32.gmra.mxu0 %v1412
        %v1663 = vpop.f32.mrf.mxu0
        %v1664 = vadd.f32 0.0, %v1663
        %1665 = vmatmul.f32.gmra.mxu0 %v1415
        %v1666 = vpop.f32.mrf.mxu0
        %v1667 = vadd.f32 0.0, %v1666
        %1668 = vmatmul.f32.gmra.mxu0 %v1418
        %v1669 = vpop.f32.mrf.mxu0
        %v1670 = vadd.f32 0.0, %v1669
        %1671 = vmatmul.f32.gmra.mxu0 %v1421
        %v1672 = vpop.f32.mrf.mxu0
        %v1673 = vadd.f32 0.0, %v1672
        %1674 = vmatmul.f32.gmra.mxu0 %v1424
        %v1675 = vpop.f32.mrf.mxu0
        %v1676 = vadd.f32 0.0, %v1675
        %1677 = vmatmul.f32.gmra.mxu0 %v1427
        %v1678 = vpop.f32.mrf.mxu0
        %v1679 = vadd.f32 0.0, %v1678
        %1680 = vmatmul.f32.gmra.mxu0 %v1430
        %v1681 = vpop.f32.mrf.mxu0
        %v1682 = vadd.f32 0.0, %v1681
        %1683 = vdwg.mxu0
        %1684 = vmatpush.msra.mxu0 %v1290
        %1685 = vmatpush.msra.mxu0 %v1287
        %1686 = vmatpush.msra.mxu0 %v1284
        %1687 = vmatpush.msra.mxu0 %v1281
        %1688 = vmatpush.msra.mxu0 %v1278
        %1689 = vmatpush.msra.mxu0 %v1275
        %1690 = vmatpush.msra.mxu0 %v1272
        %1691 = vmatpush.msra.mxu0 %v1269
        %1692 = vmatpush.msra.mxu0 %v1266
        %1693 = vmatpush.msra.mxu0 %v1263
        %1694 = vmatpush.msra.mxu0 %v1260
        %1695 = vmatpush.msra.mxu0 %v1257
        %1696 = vmatpush.msra.mxu0 %v1254
        %1697 = vmatpush.msra.mxu0 %v1251
        %1698 = vmatpush.msra.mxu0 %v1248
        %1699 = vmatpush.msra.mxu0 %v1245
        %1700 = vmatmul.f32.gmra.mxu0 %v1317
        %v1701 = vpop.f32.mrf.mxu0
        %v1702 = vadd.f32 %v1568, %v1701
        %1703 = vmatmul.f32.gmra.mxu0 %v1320
        %v1704 = vpop.f32.mrf.mxu0
        %v1705 = vadd.f32 %v1571, %v1704
        %1706 = vmatmul.f32.gmra.mxu0 %v1323
        %v1707 = vpop.f32.mrf.mxu0
        %v1708 = vadd.f32 %v1574, %v1707
        %1709 = vmatmul.f32.gmra.mxu0 %v1326
        %v1710 = vpop.f32.mrf.mxu0
        %v1711 = vadd.f32 %v1577, %v1710
        %1712 = vmatmul.f32.gmra.mxu0 %v1329
        %v1713 = vpop.f32.mrf.mxu0
        %v1714 = vadd.f32 %v1580, %v1713
        %1715 = vmatmul.f32.gmra.mxu0 %v1332
        %v1716 = vpop.f32.mrf.mxu0
        %v1717 = vadd.f32 %v1583, %v1716
        %1718 = vmatmul.f32.gmra.mxu0 %v1335
        %v1719 = vpop.f32.mrf.mxu0
        %v1720 = vadd.f32 %v1586, %v1719
        %1721 = vmatmul.f32.gmra.mxu0 %v1338
        %v1722 = vpop.f32.mrf.mxu0
        %v1723 = vadd.f32 %v1589, %v1722
        %1724 = vmatmul.f32.gmra.mxu0 %v1341
        %v1725 = vpop.f32.mrf.mxu0
        %v1726 = vadd.f32 %v1592, %v1725
        %1727 = vmatmul.f32.gmra.mxu0 %v1344
        %v1728 = vpop.f32.mrf.mxu0
        %v1729 = vadd.f32 %v1595, %v1728
        %1730 = vmatmul.f32.gmra.mxu0 %v1347
        %v1731 = vpop.f32.mrf.mxu0
        %v1732 = vadd.f32 %v1598, %v1731
        %1733 = vmatmul.f32.gmra.mxu0 %v1350
        %v1734 = vpop.f32.mrf.mxu0
        %v1735 = vadd.f32 %v1601, %v1734
        %1736 = vmatmul.f32.gmra.mxu0 %v1353
        %v1737 = vpop.f32.mrf.mxu0
        %v1738 = vadd.f32 %v1604, %v1737
        %1739 = vmatmul.f32.gmra.mxu0 %v1356
        %v1740 = vpop.f32.mrf.mxu0
        %v1741 = vadd.f32 %v1607, %v1740
        %1742 = vmatmul.f32.gmra.mxu0 %v1359
        %v1743 = vpop.f32.mrf.mxu0
        %v1744 = vadd.f32 %v1610, %v1743
        %1745 = vmatmul.f32.gmra.mxu0 %v1362
        %v1746 = vpop.f32.mrf.mxu0
        %v1747 = vadd.f32 %v1613, %v1746
        %1748 = vmatmul.f32.gmra.mxu0 %v1365
        %v1749 = vpop.f32.mrf.mxu0
        %v1750 = vadd.f32 %v1616, %v1749
        %1751 = vmatmul.f32.gmra.mxu0 %v1368
        %v1752 = vpop.f32.mrf.mxu0
        %v1753 = vadd.f32 %v1619, %v1752
        %1754 = vmatmul.f32.gmra.mxu0 %v1371
        %v1755 = vpop.f32.mrf.mxu0
        %v1756 = vadd.f32 %v1622, %v1755
        %1757 = vmatmul.f32.gmra.mxu0 %v1374
        %v1758 = vpop.f32.mrf.mxu0
        %v1759 = vadd.f32 %v1625, %v1758
        %1760 = vmatmul.f32.gmra.mxu0 %v1377
        %v1761 = vpop.f32.mrf.mxu0
        %v1762 = vadd.f32 %v1628, %v1761
        %1763 = vmatmul.f32.gmra.mxu0 %v1380
        %v1764 = vpop.f32.mrf.mxu0
        %v1765 = vadd.f32 %v1631, %v1764
        %1766 = vmatmul.f32.gmra.mxu0 %v1383
        %v1767 = vpop.f32.mrf.mxu0
        %v1768 = vadd.f32 %v1634, %v1767
        %1769 = vmatmul.f32.gmra.mxu0 %v1386
        %v1770 = vpop.f32.mrf.mxu0
        %v1771 = vadd.f32 %v1637, %v1770
        %1772 = vmatmul.f32.gmra.mxu0 %v1389
        %v1773 = vpop.f32.mrf.mxu0
        %v1774 = vadd.f32 %v1640, %v1773
        %1775 = vmatmul.f32.gmra.mxu0 %v1392
        %v1776 = vpop.f32.mrf.mxu0
        %v1777 = vadd.f32 %v1643, %v1776
        %1778 = vmatmul.f32.gmra.mxu0 %v1395
        %v1779 = vpop.f32.mrf.mxu0
        %v1780 = vadd.f32 %v1646, %v1779
        %1781 = vmatmul.f32.gmra.mxu0 %v1398
        %v1782 = vpop.f32.mrf.mxu0
        %v1783 = vadd.f32 %v1649, %v1782
        %1784 = vmatmul.f32.gmra.mxu0 %v1401
        %v1785 = vpop.f32.mrf.mxu0
        %v1786 = vadd.f32 %v1652, %v1785
        %1787 = vmatmul.f32.gmra.mxu0 %v1404
        %v1788 = vpop.f32.mrf.mxu0
        %v1789 = vadd.f32 %v1655, %v1788
        %1790 = vmatmul.f32.gmra.mxu0 %v1407
        %v1791 = vpop.f32.mrf.mxu0
        %v1792 = vadd.f32 %v1658, %v1791
        %1793 = vmatmul.f32.gmra.mxu0 %v1410
        %v1794 = vpop.f32.mrf.mxu0
        %v1795 = vadd.f32 %v1661, %v1794
        %1796 = vmatmul.f32.gmra.mxu0 %v1413
        %v1797 = vpop.f32.mrf.mxu0
        %v1798 = vadd.f32 %v1664, %v1797
        %1799 = vmatmul.f32.gmra.mxu0 %v1416
        %v1800 = vpop.f32.mrf.mxu0
        %v1801 = vadd.f32 %v1667, %v1800
        %1802 = vmatmul.f32.gmra.mxu0 %v1419
        %v1803 = vpop.f32.mrf.mxu0
        %v1804 = vadd.f32 %v1670, %v1803
        %1805 = vmatmul.f32.gmra.mxu0 %v1422
        %v1806 = vpop.f32.mrf.mxu0
        %v1807 = vadd.f32 %v1673, %v1806
        %1808 = vmatmul.f32.gmra.mxu0 %v1425
        %v1809 = vpop.f32.mrf.mxu0
        %v1810 = vadd.f32 %v1676, %v1809
        %1811 = vmatmul.f32.gmra.mxu0 %v1428
        %v1812 = vpop.f32.mrf.mxu0
        %v1813 = vadd.f32 %v1679, %v1812
        %1814 = vmatmul.f32.gmra.mxu0 %v1431
        %v1815 = vpop.f32.mrf.mxu0
        %v1816 = vadd.f32 %v1682, %v1815
        %1817 = vdwg.mxu0
        %1818 = vmatpush.msra.mxu0 0.0
        %1819 = vmatpush.msra.mxu0 0.0
        %1820 = vmatpush.msra.mxu0 0.0
        %1821 = vmatpush.msra.mxu0 0.0
        %1822 = vmatpush.msra.mxu0 0.0
        %1823 = vmatpush.msra.mxu0 0.0
        %1824 = vmatpush.msra.mxu0 0.0
        %1825 = vmatpush.msra.mxu0 0.0
        %1826 = vmatpush.msra.mxu0 %v1314
        %1827 = vmatpush.msra.mxu0 %v1311
        %1828 = vmatpush.msra.mxu0 %v1308
        %1829 = vmatpush.msra.mxu0 %v1305
        %1830 = vmatpush.msra.mxu0 %v1302
        %1831 = vmatpush.msra.mxu0 %v1299
        %1832 = vmatpush.msra.mxu0 %v1296
        %1833 = vmatpush.msra.mxu0 %v1293
        %1834 = vmatmul.f32.gmra.mxu0 %v1434
        %v1835 = vpop.f32.mrf.mxu0
        %v1836 = vadd.f32 %v1702, %v1835
        %1837 = vmatmul.f32.gmra.mxu0 %v1437
        %v1838 = vpop.f32.mrf.mxu0
        %v1839 = vadd.f32 %v1705, %v1838
        %1840 = vmatmul.f32.gmra.mxu0 %v1440
        %v1841 = vpop.f32.mrf.mxu0
        %v1842 = vadd.f32 %v1708, %v1841
        %1843 = vmatmul.f32.gmra.mxu0 %v1443
        %v1844 = vpop.f32.mrf.mxu0
        %v1845 = vadd.f32 %v1711, %v1844
        %1846 = vmatmul.f32.gmra.mxu0 %v1446
        %v1847 = vpop.f32.mrf.mxu0
        %v1848 = vadd.f32 %v1714, %v1847
        %1849 = vmatmul.f32.gmra.mxu0 %v1449
        %v1850 = vpop.f32.mrf.mxu0
        %v1851 = vadd.f32 %v1717, %v1850
        %1852 = vmatmul.f32.gmra.mxu0 %v1452
        %v1853 = vpop.f32.mrf.mxu0
        %v1854 = vadd.f32 %v1720, %v1853
        %1855 = vmatmul.f32.gmra.mxu0 %v1455
        %v1856 = vpop.f32.mrf.mxu0
        %v1857 = vadd.f32 %v1723, %v1856
        %1858 = vmatmul.f32.gmra.mxu0 %v1458
        %v1859 = vpop.f32.mrf.mxu0
        %v1860 = vadd.f32 %v1726, %v1859
        %1861 = vmatmul.f32.gmra.mxu0 %v1461
        %v1862 = vpop.f32.mrf.mxu0
        %v1863 = vadd.f32 %v1729, %v1862
        %1864 = vmatmul.f32.gmra.mxu0 %v1464
        %v1865 = vpop.f32.mrf.mxu0
        %v1866 = vadd.f32 %v1732, %v1865
        %1867 = vmatmul.f32.gmra.mxu0 %v1467
        %v1868 = vpop.f32.mrf.mxu0
        %v1869 = vadd.f32 %v1735, %v1868
        %1870 = vmatmul.f32.gmra.mxu0 %v1470
        %v1871 = vpop.f32.mrf.mxu0
        %v1872 = vadd.f32 %v1738, %v1871
        %1873 = vmatmul.f32.gmra.mxu0 %v1473
        %v1874 = vpop.f32.mrf.mxu0
        %v1875 = vadd.f32 %v1741, %v1874
        %1876 = vmatmul.f32.gmra.mxu0 %v1476
        %v1877 = vpop.f32.mrf.mxu0
        %v1878 = vadd.f32 %v1744, %v1877
        %1879 = vmatmul.f32.gmra.mxu0 %v1479
        %v1880 = vpop.f32.mrf.mxu0
        %v1881 = vadd.f32 %v1747, %v1880
        %1882 = vmatmul.f32.gmra.mxu0 %v1482
        %v1883 = vpop.f32.mrf.mxu0
        %v1884 = vadd.f32 %v1750, %v1883
        %1885 = vmatmul.f32.gmra.mxu0 %v1485
        %v1886 = vpop.f32.mrf.mxu0
        %v1887 = vadd.f32 %v1753, %v1886
        %1888 = vmatmul.f32.gmra.mxu0 %v1488
        %v1889 = vpop.f32.mrf.mxu0
        %v1890 = vadd.f32 %v1756, %v1889
        %1891 = vmatmul.f32.gmra.mxu0 %v1491
        %v1892 = vpop.f32.mrf.mxu0
        %v1893 = vadd.f32 %v1759, %v1892
        %1894 = vmatmul.f32.gmra.mxu0 %v1494
        %v1895 = vpop.f32.mrf.mxu0
        %v1896 = vadd.f32 %v1762, %v1895
        %1897 = vmatmul.f32.gmra.mxu0 %v1497
        %v1898 = vpop.f32.mrf.mxu0
        %v1899 = vadd.f32 %v1765, %v1898
        %1900 = vmatmul.f32.gmra.mxu0 %v1500
        %v1901 = vpop.f32.mrf.mxu0
        %v1902 = vadd.f32 %v1768, %v1901
        %1903 = vmatmul.f32.gmra.mxu0 %v1503
        %v1904 = vpop.f32.mrf.mxu0
        %v1905 = vadd.f32 %v1771, %v1904
        %1906 = vmatmul.f32.gmra.mxu0 %v1506
        %v1907 = vpop.f32.mrf.mxu0
        %v1908 = vadd.f32 %v1774, %v1907
        %1909 = vmatmul.f32.gmra.mxu0 %v1509
        %v1910 = vpop.f32.mrf.mxu0
        %v1911 = vadd.f32 %v1777, %v1910
        %1912 = vmatmul.f32.gmra.mxu0 %v1512
        %v1913 = vpop.f32.mrf.mxu0
        %v1914 = vadd.f32 %v1780, %v1913
        %1915 = vmatmul.f32.gmra.mxu0 %v1515
        %v1916 = vpop.f32.mrf.mxu0
        %v1917 = vadd.f32 %v1783, %v1916
        %1918 = vmatmul.f32.gmra.mxu0 %v1518
        %v1919 = vpop.f32.mrf.mxu0
        %v1920 = vadd.f32 %v1786, %v1919
        %1921 = vmatmul.f32.gmra.mxu0 %v1521
        %v1922 = vpop.f32.mrf.mxu0
        %v1923 = vadd.f32 %v1789, %v1922
        %1924 = vmatmul.f32.gmra.mxu0 %v1524
        %v1925 = vpop.f32.mrf.mxu0
        %v1926 = vadd.f32 %v1792, %v1925
        %1927 = vmatmul.f32.gmra.mxu0 %v1527
        %v1928 = vpop.f32.mrf.mxu0
        %v1929 = vadd.f32 %v1795, %v1928
        %1930 = vmatmul.f32.gmra.mxu0 %v1530
        %v1931 = vpop.f32.mrf.mxu0
        %v1932 = vadd.f32 %v1798, %v1931
        %1933 = vmatmul.f32.gmra.mxu0 %v1533
        %v1934 = vpop.f32.mrf.mxu0
        %v1935 = vadd.f32 %v1801, %v1934
        %1936 = vmatmul.f32.gmra.mxu0 %v1536
        %v1937 = vpop.f32.mrf.mxu0
        %v1938 = vadd.f32 %v1804, %v1937
        %1939 = vmatmul.f32.gmra.mxu0 %v1539
        %v1940 = vpop.f32.mrf.mxu0
        %v1941 = vadd.f32 %v1807, %v1940
        %1942 = vmatmul.f32.gmra.mxu0 %v1542
        %v1943 = vpop.f32.mrf.mxu0
        %v1944 = vadd.f32 %v1810, %v1943
        %1945 = vmatmul.f32.gmra.mxu0 %v1545
        %v1946 = vpop.f32.mrf.mxu0
        %v1947 = vadd.f32 %v1813, %v1946
        %1948 = vmatmul.f32.gmra.mxu0 %v1548
        %v1949 = vpop.f32.mrf.mxu0
        %v1950 = vadd.f32 %v1816, %v1949
        %1951 = vdwg.mxu0
        %v1952 = vmul.f32 %v1836, %v1836
        %v1953 = vmul.f32 %v1839, %v1839
        %v1954 = vmul.f32 %v1842, %v1842
        %v1955 = vmul.f32 %v1845, %v1845
        %v1956 = vmul.f32 %v1848, %v1848
        %v1957 = vmul.f32 %v1851, %v1851
        %v1958 = vmul.f32 %v1854, %v1854
        %v1959 = vmul.f32 %v1857, %v1857
        %v1960 = vmul.f32 %v1860, %v1860
        %v1961 = vmul.f32 %v1863, %v1863
        %v1962 = vmul.f32 %v1866, %v1866
        %v1963 = vmul.f32 %v1869, %v1869
        %v1964 = vmul.f32 %v1872, %v1872
        %v1965 = vmul.f32 %v1875, %v1875
        %v1966 = vmul.f32 %v1878, %v1878
        %v1967 = vmul.f32 %v1881, %v1881
        %vm1977 = vcmask 1041408
        %v1978 = vrot.slane %v1857, 6
        %v1979 = vrot.slane %v1860, 6
        %v1980 = vsel %vm1977, %v1978, %v1979
        %v1981 = vrot.slane %v1863, 6
        %v1982 = vsel %vm1977, %v1979, %v1981
        %v1983 = vrot.slane %v1866, 6
        %v1984 = vsel %vm1977, %v1981, %v1983
        %v1985 = vrot.slane %v1869, 6
        %v1986 = vsel %vm1977, %v1983, %v1985
        %v1987 = vrot.slane %v1872, 6
        %v1988 = vsel %vm1977, %v1985, %v1987
        %v1989 = vrot.slane %v1875, 6
        %v1990 = vsel %vm1977, %v1987, %v1989
        %v1991 = vrot.slane %v1878, 6
        %v1992 = vsel %vm1977, %v1989, %v1991
        %v1993 = vrot.slane %v1881, 6
        %v1994 = vsel %vm1977, %v1991, %v1993
        %v2003 = vmul.f32 %v1836, %v1980
        %v2004 = vmul.f32 %v1839, %v1982
        %v2005 = vmul.f32 %v1842, %v1984
        %v2006 = vmul.f32 %v1845, %v1986
        %v2007 = vmul.f32 %v1848, %v1988
        %v2008 = vmul.f32 %v1851, %v1990
        %v2009 = vmul.f32 %v1854, %v1992
        %v2010 = vmul.f32 %v1857, %v1994
        %vm2019 = vcmask 1043456
        %v2020 = vrot.slane %v1952, 4
        %v2021 = vrot.slane %v1953, 4
        %v2022 = vsel %vm2019, %v2020, %v2021
        %v2023 = vrot.slane %v1954, 4
        %v2024 = vsel %vm2019, %v2021, %v2023
        %v2025 = vrot.slane %v1955, 4
        %v2026 = vsel %vm2019, %v2023, %v2025
        %v2027 = vrot.slane %v1956, 4
        %v2028 = vsel %vm2019, %v2025, %v2027
        %v2029 = vrot.slane %v1957, 4
        %v2030 = vsel %vm2019, %v2027, %v2029
        %v2031 = vrot.slane %v1958, 4
        %v2032 = vsel %vm2019, %v2029, %v2031
        %v2033 = vrot.slane %v1959, 4
        %v2034 = vsel %vm2019, %v2031, %v2033
        %v2044 = vsub.f32 %v1881, %v2020
        %v2045 = vsub.f32 %v1884, %v2022
        %v2046 = vsub.f32 %v1887, %v2024
        %v2047 = vsub.f32 %v1890, %v2026
        %v2048 = vsub.f32 %v1893, %v2028
        %v2049 = vsub.f32 %v1896, %v2030
        %v2050 = vsub.f32 %v1899, %v2032
        %v2051 = vsub.f32 %v1902, %v2034
        %v2052 = vsub.f32 %v1905, %v2033
        %v2061 = vrot.slane %v1960, 4
        %v2062 = vsel %vm2019, %v2033, %v2061
        %v2063 = vrot.slane %v1961, 4
        %v2064 = vsel %vm2019, %v2061, %v2063
        %v2065 = vrot.slane %v1962, 4
        %v2066 = vsel %vm2019, %v2063, %v2065
        %v2067 = vrot.slane %v1963, 4
        %v2068 = vsel %vm2019, %v2065, %v2067
        %v2069 = vrot.slane %v1964, 4
        %v2070 = vsel %vm2019, %v2067, %v2069
        %v2071 = vrot.slane %v1965, 4
        %v2072 = vsel %vm2019, %v2069, %v2071
        %v2073 = vrot.slane %v1966, 4
        %v2074 = vsel %vm2019, %v2071, %v2073
        %v2075 = vrot.slane %v1967, 4
        %v2076 = vsel %vm2019, %v2073, %v2075
        %v2085 = vsub.f32 %v1905, %v2062
        %v2086 = vsub.f32 %v1908, %v2064
        %v2087 = vsub.f32 %v1911, %v2066
        %v2088 = vsub.f32 %v1914, %v2068
        %v2089 = vsub.f32 %v1917, %v2070
        %v2090 = vsub.f32 %v1920, %v2072
        %v2091 = vsub.f32 %v1923, %v2074
        %v2092 = vsub.f32 %v1926, %v2076
        %v2093 = vsub.f32 %v1929, %v2003
        %v2094 = vsub.f32 %v1932, %v2004
        %v2095 = vsub.f32 %v1935, %v2005
        %v2096 = vsub.f32 %v1938, %v2006
        %v2097 = vsub.f32 %v1941, %v2007
        %v2098 = vsub.f32 %v1944, %v2008
        %v2099 = vsub.f32 %v1947, %v2009
        %v2100 = vsub.f32 %v1950, %v2010
        %v2101 = vrot.slane %v1959, 6
        %v2102 = vrot.slane %v1960, 6
        %v2103 = vsel %vm1977, %v2101, %v2102
        %v2104 = vrot.slane %v1961, 6
        %v2105 = vsel %vm1977, %v2102, %v2104
        %v2106 = vrot.slane %v1962, 6
        %v2107 = vsel %vm1977, %v2104, %v2106
        %v2108 = vrot.slane %v1963, 6
        %v2109 = vsel %vm1977, %v2106, %v2108
        %v2110 = vrot.slane %v1964, 6
        %v2111 = vsel %vm1977, %v2108, %v2110
        %v2112 = vrot.slane %v1965, 6
        %v2113 = vsel %vm1977, %v2110, %v2112
        %v2114 = vrot.slane %v1966, 6
        %v2115 = vsel %vm1977, %v2112, %v2114
        %v2116 = vrot.slane %v1967, 6
        %v2117 = vsel %vm1977, %v2114, %v2116
        %v2126 = vadd.f32 %v1952, %v2103
        %v2127 = vadd.f32 %v1953, %v2105
        %v2128 = vadd.f32 %v1954, %v2107
        %v2129 = vadd.f32 %v1955, %v2109
        %v2130 = vadd.f32 %v1956, %v2111
        %v2131 = vadd.f32 %v1957, %v2113
        %v2132 = vadd.f32 %v1958, %v2115
        %v2133 = vadd.f32 %v1959, %v2117
        %v2134 = vadd.f32 %v2126, 0.0001
        %v2135 = vadd.f32 %v2127, 0.0001
        %v2136 = vadd.f32 %v2128, 0.0001
        %v2137 = vadd.f32 %v2129, 0.0001
        %v2138 = vadd.f32 %v2130, 0.0001
        %v2139 = vadd.f32 %v2131, 0.0001
        %v2140 = vadd.f32 %v2132, 0.0001
        %v2141 = vadd.f32 %v2133, 0.0001
        %v2150 = vrot.slane %v2085, 6
        %v2151 = vrot.slane %v2086, 6
        %v2152 = vsel %vm1977, %v2150, %v2151
        %v2153 = vrot.slane %v2087, 6
        %v2154 = vsel %vm1977, %v2151, %v2153
        %v2155 = vrot.slane %v2088, 6
        %v2156 = vsel %vm1977, %v2153, %v2155
        %v2157 = vrot.slane %v2089, 6
        %v2158 = vsel %vm1977, %v2155, %v2157
        %v2159 = vrot.slane %v2090, 6
        %v2160 = vsel %vm1977, %v2157, %v2159
        %v2161 = vrot.slane %v2091, 6
        %v2162 = vsel %vm1977, %v2159, %v2161
        %v2163 = vrot.slane %v2092, 6
        %v2164 = vsel %vm1977, %v2161, %v2163
        %v2174 = vadd.f32 %v2044, %v2150
        %v2175 = vadd.f32 %v2045, %v2152
        %v2176 = vadd.f32 %v2046, %v2154
        %v2177 = vadd.f32 %v2047, %v2156
        %v2178 = vadd.f32 %v2048, %v2158
        %v2179 = vadd.f32 %v2049, %v2160
        %v2180 = vadd.f32 %v2050, %v2162
        %v2181 = vadd.f32 %v2051, %v2164
        %v2182 = vadd.f32 %v2052, %v2163
        %v2183 = vadd.f32 %v2174, 0.0009
        %v2184 = vadd.f32 %v2175, 0.0009
        %v2185 = vadd.f32 %v2176, 0.0009
        %v2186 = vadd.f32 %v2177, 0.0009
        %v2187 = vadd.f32 %v2178, 0.0009
        %v2188 = vadd.f32 %v2179, 0.0009
        %v2189 = vadd.f32 %v2180, 0.0009
        %v2190 = vadd.f32 %v2181, 0.0009
        %v2191 = vadd.f32 %v2182, 0.0009
        %v2192 = vmul.f32 %v2093, 2.0
        %v2193 = vmul.f32 %v2094, 2.0
        %v2194 = vmul.f32 %v2095, 2.0
        %v2195 = vmul.f32 %v2096, 2.0
        %v2196 = vmul.f32 %v2097, 2.0
        %v2197 = vmul.f32 %v2098, 2.0
        %v2198 = vmul.f32 %v2099, 2.0
        %v2199 = vmul.f32 %v2100, 2.0
        %v2200 = vadd.f32 %v2192, 0.0009
        %v2201 = vadd.f32 %v2193, 0.0009
        %v2202 = vadd.f32 %v2194, 0.0009
        %v2203 = vadd.f32 %v2195, 0.0009
        %v2204 = vadd.f32 %v2196, 0.0009
        %v2205 = vadd.f32 %v2197, 0.0009
        %v2206 = vadd.f32 %v2198, 0.0009
        %v2207 = vadd.f32 %v2199, 0.0009
        %v2217 = vrot.slane %v2183, 4
        %v2218 = vrot.slane %v2184, 4
        %v2219 = vsel %vm2019, %v2217, %v2218
        %v2220 = vrot.slane %v2185, 4
        %v2221 = vsel %vm2019, %v2218, %v2220
        %v2222 = vrot.slane %v2186, 4
        %v2223 = vsel %vm2019, %v2220, %v2222
        %v2224 = vrot.slane %v2187, 4
        %v2225 = vsel %vm2019, %v2222, %v2224
        %v2226 = vrot.slane %v2188, 4
        %v2227 = vsel %vm2019, %v2224, %v2226
        %v2228 = vrot.slane %v2189, 4
        %v2229 = vsel %vm2019, %v2226, %v2228
        %v2230 = vrot.slane %v2190, 4
        %v2231 = vsel %vm2019, %v2228, %v2230
        %v2232 = vrot.slane %v2191, 4
        %v2233 = vsel %vm2019, %v2230, %v2232
        %v2242 = vmul.f32 %v2134, %v2219
        %v2243 = vmul.f32 %v2135, %v2221
        %v2244 = vmul.f32 %v2136, %v2223
        %v2245 = vmul.f32 %v2137, %v2225
        %v2246 = vmul.f32 %v2138, %v2227
        %v2247 = vmul.f32 %v2139, %v2229
        %v2248 = vmul.f32 %v2140, %v2231
        %v2249 = vmul.f32 %v2141, %v2233
        %v2250 = vrcp.pop %v2242
        %v2251 = vmul.f32 %v2242, %v2250
        %v2252 = vsub.f32 1.0, %v2251
        %v2253 = vmul.f32 %v2250, %v2252
        %v2254 = vadd.f32 %v2250, %v2253
        %vm2255 = vweird.f32 %v2242
        %vm2256 = vweird.f32 %v2250
        %vm2257 = vmor %vm2255, %vm2256
        %v2258 = vsel %vm2257, %v2250, %v2254
        %v2259 = vand.u32 2147483647, %v2242
        %vm2260 = vcmp.eq.f32.partialorder %v2259, 8.507059e+37
        %v2261 = vand.u32 %v2242, 2147483648
        %v2262 = vor.u32 1.1754944e-38, %v2261
        %v2263 = vsel %vm2260, %v2262, %v2258
        %v2264 = vmul.f32 1.0, %v2263
        %v2265 = vrcp.pop %v2243
        %v2266 = vmul.f32 %v2243, %v2265
        %v2267 = vsub.f32 1.0, %v2266
        %v2268 = vmul.f32 %v2265, %v2267
        %v2269 = vadd.f32 %v2265, %v2268
        %vm2270 = vweird.f32 %v2243
        %vm2271 = vweird.f32 %v2265
        %vm2272 = vmor %vm2270, %vm2271
        %v2273 = vsel %vm2272, %v2265, %v2269
        %v2274 = vand.u32 2147483647, %v2243
        %vm2275 = vcmp.eq.f32.partialorder %v2274, 8.507059e+37
        %v2276 = vand.u32 %v2243, 2147483648
        %v2277 = vor.u32 1.1754944e-38, %v2276
        %v2278 = vsel %vm2275, %v2277, %v2273
        %v2279 = vmul.f32 1.0, %v2278
        %v2280 = vrcp.pop %v2244
        %v2281 = vmul.f32 %v2244, %v2280
        %v2282 = vsub.f32 1.0, %v2281
        %v2283 = vmul.f32 %v2280, %v2282
        %v2284 = vadd.f32 %v2280, %v2283
        %vm2285 = vweird.f32 %v2244
        %vm2286 = vweird.f32 %v2280
        %vm2287 = vmor %vm2285, %vm2286
        %v2288 = vsel %vm2287, %v2280, %v2284
        %v2289 = vand.u32 2147483647, %v2244
        %vm2290 = vcmp.eq.f32.partialorder %v2289, 8.507059e+37
        %v2291 = vand.u32 %v2244, 2147483648
        %v2292 = vor.u32 1.1754944e-38, %v2291
        %v2293 = vsel %vm2290, %v2292, %v2288
        %v2294 = vmul.f32 1.0, %v2293
        %v2295 = vrcp.pop %v2245
        %v2296 = vmul.f32 %v2245, %v2295
        %v2297 = vsub.f32 1.0, %v2296
        %v2298 = vmul.f32 %v2295, %v2297
        %v2299 = vadd.f32 %v2295, %v2298
        %vm2300 = vweird.f32 %v2245
        %vm2301 = vweird.f32 %v2295
        %vm2302 = vmor %vm2300, %vm2301
        %v2303 = vsel %vm2302, %v2295, %v2299
        %v2304 = vand.u32 2147483647, %v2245
        %vm2305 = vcmp.eq.f32.partialorder %v2304, 8.507059e+37
        %v2306 = vand.u32 %v2245, 2147483648
        %v2307 = vor.u32 1.1754944e-38, %v2306
        %v2308 = vsel %vm2305, %v2307, %v2303
        %v2309 = vmul.f32 1.0, %v2308
        %v2310 = vrcp.pop %v2246
        %v2311 = vmul.f32 %v2246, %v2310
        %v2312 = vsub.f32 1.0, %v2311
        %v2313 = vmul.f32 %v2310, %v2312
        %v2314 = vadd.f32 %v2310, %v2313
        %vm2315 = vweird.f32 %v2246
        %vm2316 = vweird.f32 %v2310
        %vm2317 = vmor %vm2315, %vm2316
        %v2318 = vsel %vm2317, %v2310, %v2314
        %v2319 = vand.u32 2147483647, %v2246
        %vm2320 = vcmp.eq.f32.partialorder %v2319, 8.507059e+37
        %v2321 = vand.u32 %v2246, 2147483648
        %v2322 = vor.u32 1.1754944e-38, %v2321
        %v2323 = vsel %vm2320, %v2322, %v2318
        %v2324 = vmul.f32 1.0, %v2323
        %v2325 = vrcp.pop %v2247
        %v2326 = vmul.f32 %v2247, %v2325
        %v2327 = vsub.f32 1.0, %v2326
        %v2328 = vmul.f32 %v2325, %v2327
        %v2329 = vadd.f32 %v2325, %v2328
        %vm2330 = vweird.f32 %v2247
        %vm2331 = vweird.f32 %v2325
        %vm2332 = vmor %vm2330, %vm2331
        %v2333 = vsel %vm2332, %v2325, %v2329
        %v2334 = vand.u32 2147483647, %v2247
        %vm2335 = vcmp.eq.f32.partialorder %v2334, 8.507059e+37
        %v2336 = vand.u32 %v2247, 2147483648
        %v2337 = vor.u32 1.1754944e-38, %v2336
        %v2338 = vsel %vm2335, %v2337, %v2333
        %v2339 = vmul.f32 1.0, %v2338
        %v2340 = vrcp.pop %v2248
        %v2341 = vmul.f32 %v2248, %v2340
        %v2342 = vsub.f32 1.0, %v2341
        %v2343 = vmul.f32 %v2340, %v2342
        %v2344 = vadd.f32 %v2340, %v2343
        %vm2345 = vweird.f32 %v2248
        %vm2346 = vweird.f32 %v2340
        %vm2347 = vmor %vm2345, %vm2346
        %v2348 = vsel %vm2347, %v2340, %v2344
        %v2349 = vand.u32 2147483647, %v2248
        %vm2350 = vcmp.eq.f32.partialorder %v2349, 8.507059e+37
        %v2351 = vand.u32 %v2248, 2147483648
        %v2352 = vor.u32 1.1754944e-38, %v2351
        %v2353 = vsel %vm2350, %v2352, %v2348
        %v2354 = vmul.f32 1.0, %v2353
        %v2355 = vrcp.pop %v2249
        %v2356 = vmul.f32 %v2249, %v2355
        %v2357 = vsub.f32 1.0, %v2356
        %v2358 = vmul.f32 %v2355, %v2357
        %v2359 = vadd.f32 %v2355, %v2358
        %vm2360 = vweird.f32 %v2249
        %vm2361 = vweird.f32 %v2355
        %vm2362 = vmor %vm2360, %vm2361
        %v2363 = vsel %vm2362, %v2355, %v2359
        %v2364 = vand.u32 2147483647, %v2249
        %vm2365 = vcmp.eq.f32.partialorder %v2364, 8.507059e+37
        %v2366 = vand.u32 %v2249, 2147483648
        %v2367 = vor.u32 1.1754944e-38, %v2366
        %v2368 = vsel %vm2365, %v2367, %v2363
        %v2369 = vmul.f32 1.0, %v2368
        %v2370 = vmul.f32 %v2200, %v2134
        %v2371 = vmul.f32 %v2201, %v2135
        %v2372 = vmul.f32 %v2202, %v2136
        %v2373 = vmul.f32 %v2203, %v2137
        %v2374 = vmul.f32 %v2204, %v2138
        %v2375 = vmul.f32 %v2205, %v2139
        %v2376 = vmul.f32 %v2206, %v2140
        %v2377 = vmul.f32 %v2207, %v2141
        %v2378 = vmul.f32 %v2370, %v2264
        %v2379 = vmul.f32 %v2371, %v2279
        %v2380 = vmul.f32 %v2372, %v2294
        %v2381 = vmul.f32 %v2373, %v2309
        %v2382 = vmul.f32 %v2374, %v2324
        %v2383 = vmul.f32 %v2375, %v2339
        %v2384 = vmul.f32 %v2376, %v2354
        %v2385 = vmul.f32 %v2377, %v2369
        %vm2386 = vcmask 506880
        %v2387 = vsel %vm2386, %v2378, 0.0
        %v2388 = vsel %vm2386, %v2379, 0.0
        %v2389 = vadd.f32 %v2387, %v2388
        %v2390 = vsel %vm2386, %v2380, 0.0
        %v2391 = vadd.f32 %v2389, %v2390
        %v2392 = vsel %vm2386, %v2381, 0.0
        %v2393 = vadd.f32 %v2391, %v2392
        %v2394 = vsel %vm2386, %v2382, 0.0
        %v2395 = vadd.f32 %v2393, %v2394
        %v2396 = vsel %vm2386, %v2383, 0.0
        %v2397 = vadd.f32 %v2395, %v2396
        %v2398 = vsel %vm2386, %v2384, 0.0
        %v2399 = vadd.f32 %v2397, %v2398
        %vm2400 = vcmask 504832
        %v2401 = vsel %vm2400, %v2385, 0.0
        %v2402 = vadd.f32 %v2399, %v2401
        %2403 = vadd.xlane.f32.xlu0 %v2402
        %v2404 = vpop.xlane.xlu0 %2403
        %v2405 = vrot.slane %v2404, 4
        %v2406 = vadd.f32 %v2404, %v2405
        %v2407 = vrot.slane %v2406, 2
        %v2408 = vadd.f32 %v2406, %v2407
        %v2409 = vrot.slane %v2408, 1
        %v2410 = vadd.f32 %v2408, %v2409
        %s2411 = vtos %v2410
        %v2412 = vstv %s2411
        %v2413 = vmul.f32 %v2412, 0.0002601457
        %v2414 = vld [vmem:[#allocation18] sm:$0xff]
        %v2415 = vld [vmem:[#allocation18 + $0x8] sm:$0xff]
        %v2416 = vld [vmem:[#allocation18 + $0x10] sm:$0xff]
        %v2417 = vld [vmem:[#allocation18 + $0x18] sm:$0xff]
        %v2418 = vld [vmem:[#allocation24] sm:$0xff]
        %v2419 = vld [vmem:[#allocation24 + $0x8] sm:$0xff]
        %v2420 = vld [vmem:[#allocation24 + $0x10] sm:$0xff]
        %v2421 = vld [vmem:[#allocation24 + $0x18] sm:$0xff]
        %v2422 = vld [vmem:[#allocation24 + $0x20] sm:$0xff]
        %v2423 = vld [vmem:[#allocation24 + $0x28] sm:$0xff]
        %v2424 = vld [vmem:[#allocation24 + $0x30] sm:$0xff]
        %v2425 = vld [vmem:[#allocation24 + $0x38] sm:$0xff]
        %2426 = vmatpush.msra.mxu0 0.0
        %2427 = vmatpush.msra.mxu0 0.0
        %2428 = vmatpush.msra.mxu0 0.0
        %2429 = vmatpush.msra.mxu0 0.0
        %2430 = vmatpush.msra.mxu0 0.0
        %2431 = vmatpush.msra.mxu0 0.0
        %2432 = vmatpush.msra.mxu0 0.0
        %2433 = vmatpush.msra.mxu0 0.0
        %2434 = vmatpush.msra.mxu0 %v2425
        %2435 = vmatpush.msra.mxu0 %v2424
        %2436 = vmatpush.msra.mxu0 %v2423
        %2437 = vmatpush.msra.mxu0 %v2422
        %2438 = vmatpush.msra.mxu0 %v2421
        %2439 = vmatpush.msra.mxu0 %v2420
        %2440 = vmatpush.msra.mxu0 %v2419
        %2441 = vmatpush.msra.mxu0 %v2418
        %2442 = vmatmul.f32.gmra.mxu0 %v1060
        %v2443 = vpop.f32.mrf.mxu0
        %v2444 = vadd.f32 0.0, %v2443
        %2445 = vmatmul.f32.gmra.mxu0 %v1063
        %v2446 = vpop.f32.mrf.mxu0
        %v2447 = vadd.f32 0.0, %v2446
        %2448 = vmatmul.f32.gmra.mxu0 %v1066
        %v2449 = vpop.f32.mrf.mxu0
        %v2450 = vadd.f32 0.0, %v2449
        %2451 = vmatmul.f32.gmra.mxu0 %v1069
        %v2452 = vpop.f32.mrf.mxu0
        %v2453 = vadd.f32 0.0, %v2452
        %2454 = vmatmul.f32.gmra.mxu0 %v1072
        %v2455 = vpop.f32.mrf.mxu0
        %v2456 = vadd.f32 0.0, %v2455
        %2457 = vmatmul.f32.gmra.mxu0 %v1075
        %v2458 = vpop.f32.mrf.mxu0
        %v2459 = vadd.f32 0.0, %v2458
        %2460 = vmatmul.f32.gmra.mxu0 %v1078
        %v2461 = vpop.f32.mrf.mxu0
        %v2462 = vadd.f32 0.0, %v2461
        %2463 = vmatmul.f32.gmra.mxu0 %v1081
        %v2464 = vpop.f32.mrf.mxu0
        %v2465 = vadd.f32 0.0, %v2464
        %2466 = vdwg.mxu0
        %v2468 = vsel %vm1058, %v2414, 0
        %v2471 = vsel %vm1058, %v2415, 0
        %v2474 = vsel %vm1058, %v2416, 0
        %v2477 = vsel %vm1058, %v2417, 0
        %2479 = vmatpush.msra.mxu0 0.0
        %2480 = vmatpush.msra.mxu0 0.0
        %2481 = vmatpush.msra.mxu0 0.0
        %2482 = vmatpush.msra.mxu0 0.0
        %2483 = vmatpush.msra.mxu0 0.0
        %2484 = vmatpush.msra.mxu0 0.0
        %2485 = vmatpush.msra.mxu0 0.0
        %2486 = vmatpush.msra.mxu0 0.0
        %2487 = vmatpush.msra.mxu0 %v2465
        %2488 = vmatpush.msra.mxu0 %v2462
        %2489 = vmatpush.msra.mxu0 %v2459
        %2490 = vmatpush.msra.mxu0 %v2456
        %2491 = vmatpush.msra.mxu0 %v2453
        %2492 = vmatpush.msra.mxu0 %v2450
        %2493 = vmatpush.msra.mxu0 %v2447
        %2494 = vmatpush.msra.mxu0 %v2444
        %2495 = vmatmul.f32.gmra.mxu0 %v2468
        %v2496 = vpop.f32.mrf.mxu0
        %v2497 = vadd.f32 0.0, %v2496
        %2498 = vmatmul.f32.gmra.mxu0 %v2471
        %v2499 = vpop.f32.mrf.mxu0
        %v2500 = vadd.f32 0.0, %v2499
        %2501 = vmatmul.f32.gmra.mxu0 %v2474
        %v2502 = vpop.f32.mrf.mxu0
        %v2503 = vadd.f32 0.0, %v2502
        %2504 = vmatmul.f32.gmra.mxu0 %v2477
        %v2505 = vpop.f32.mrf.mxu0
        %v2506 = vadd.f32 0.0, %v2505
        %2507 = vdwg.mxu0
        %2508 = vmatpush.msra.mxu0 0.0
        %2509 = vmatpush.msra.mxu0 0.0
        %2510 = vmatpush.msra.mxu0 0.0
        %2511 = vmatpush.msra.mxu0 0.0
        %2512 = vmatpush.msra.mxu0 0.0
        %2513 = vmatpush.msra.mxu0 0.0
        %2514 = vmatpush.msra.mxu0 0.0
        %2515 = vmatpush.msra.mxu0 0.0
        %2516 = vmatpush.msra.mxu0 %v2425
        %2517 = vmatpush.msra.mxu0 %v2424
        %2518 = vmatpush.msra.mxu0 %v2423
        %2519 = vmatpush.msra.mxu0 %v2422
        %2520 = vmatpush.msra.mxu0 %v2421
        %2521 = vmatpush.msra.mxu0 %v2420
        %2522 = vmatpush.msra.mxu0 %v2419
        %2523 = vmatpush.msra.mxu0 %v2418
        %2524 = vmatmul.f32.gmra.mxu0 %v1084
        %v2525 = vpop.f32.mrf.mxu0
        %v2526 = vadd.f32 0.0, %v2525
        %2527 = vmatmul.f32.gmra.mxu0 %v1087
        %v2528 = vpop.f32.mrf.mxu0
        %v2529 = vadd.f32 0.0, %v2528
        %2530 = vmatmul.f32.gmra.mxu0 %v1090
        %v2531 = vpop.f32.mrf.mxu0
        %v2532 = vadd.f32 0.0, %v2531
        %2533 = vmatmul.f32.gmra.mxu0 %v1093
        %v2534 = vpop.f32.mrf.mxu0
        %v2535 = vadd.f32 0.0, %v2534
        %2536 = vmatmul.f32.gmra.mxu0 %v1096
        %v2537 = vpop.f32.mrf.mxu0
        %v2538 = vadd.f32 0.0, %v2537
        %2539 = vmatmul.f32.gmra.mxu0 %v1099
        %v2540 = vpop.f32.mrf.mxu0
        %v2541 = vadd.f32 0.0, %v2540
        %2542 = vmatmul.f32.gmra.mxu0 %v1102
        %v2543 = vpop.f32.mrf.mxu0
        %v2544 = vadd.f32 0.0, %v2543
        %2545 = vmatmul.f32.gmra.mxu0 %v1105
        %v2546 = vpop.f32.mrf.mxu0
        %v2547 = vadd.f32 0.0, %v2546
        %2548 = vdwg.mxu0
        %2549 = vmatpush.msra.mxu0 0.0
        %2550 = vmatpush.msra.mxu0 0.0
        %2551 = vmatpush.msra.mxu0 0.0
        %2552 = vmatpush.msra.mxu0 0.0
        %2553 = vmatpush.msra.mxu0 0.0
        %2554 = vmatpush.msra.mxu0 0.0
        %2555 = vmatpush.msra.mxu0 0.0
        %2556 = vmatpush.msra.mxu0 0.0
        %2557 = vmatpush.msra.mxu0 %v2547
        %2558 = vmatpush.msra.mxu0 %v2544
        %2559 = vmatpush.msra.mxu0 %v2541
        %2560 = vmatpush.msra.mxu0 %v2538
        %2561 = vmatpush.msra.mxu0 %v2535
        %2562 = vmatpush.msra.mxu0 %v2532
        %2563 = vmatpush.msra.mxu0 %v2529
        %2564 = vmatpush.msra.mxu0 %v2526
        %2565 = vmatmul.f32.gmra.mxu0 %v2468
        %v2566 = vpop.f32.mrf.mxu0
        %v2567 = vadd.f32 0.0, %v2566
        %2568 = vmatmul.f32.gmra.mxu0 %v2471
        %v2569 = vpop.f32.mrf.mxu0
        %v2570 = vadd.f32 0.0, %v2569
        %2571 = vmatmul.f32.gmra.mxu0 %v2474
        %v2572 = vpop.f32.mrf.mxu0
        %v2573 = vadd.f32 0.0, %v2572
        %2574 = vmatmul.f32.gmra.mxu0 %v2477
        %v2575 = vpop.f32.mrf.mxu0
        %v2576 = vadd.f32 0.0, %v2575
        %2577 = vdwg.mxu0
        %v2578 = vmul.f32 %v2497, %v2497
        %v2579 = vmul.f32 %v2500, %v2500
        %v2580 = vmul.f32 %v2503, %v2503
        %v2581 = vmul.f32 %v2506, %v2506
        %v2582 = vmul.f32 %v2567, %v2567
        %v2583 = vmul.f32 %v2570, %v2570
        %v2584 = vmul.f32 %v2573, %v2573
        %v2585 = vmul.f32 %v2576, %v2576
        %v2586 = vmul.f32 %v2497, %v2567
        %v2587 = vmul.f32 %v2500, %v2570
        %v2588 = vmul.f32 %v2503, %v2573
        %v2589 = vmul.f32 %v2506, %v2576
        %v2590 = vld [vmem:[#allocation7] sm:$0xff]
        %v2591 = vld [vmem:[#allocation7 + $0x8] sm:$0xff]
        %v2592 = vld [vmem:[#allocation7 + $0x10] sm:$0xff]
        %v2593 = vld [vmem:[#allocation7 + $0x18] sm:$0xff]
        %vm2594 = vcmask 261120
        %v2596 = vsel %vm2594, %v2497, 0
        %v2599 = vsel %vm2594, %v2500, 0
        %v2602 = vsel %vm2594, %v2503, 0
        %v2605 = vsel %vm2594, %v2506, 0
        %v2608 = vsel %vm2594, %v2567, 0
        %v2611 = vsel %vm2594, %v2570, 0
        %v2614 = vsel %vm2594, %v2573, 0
        %v2617 = vsel %vm2594, %v2576, 0
        %v2620 = vsel %vm2594, %v2578, 0
        %v2623 = vsel %vm2594, %v2579, 0
        %v2626 = vsel %vm2594, %v2580, 0
        %v2629 = vsel %vm2594, %v2581, 0
        %v2632 = vsel %vm2594, %v2582, 0
        %v2635 = vsel %vm2594, %v2583, 0
        %v2638 = vsel %vm2594, %v2584, 0
        %v2641 = vsel %vm2594, %v2585, 0
        %v2644 = vsel %vm2594, %v2586, 0
        %v2647 = vsel %vm2594, %v2587, 0
        %v2650 = vsel %vm2594, %v2588, 0
        %v2653 = vsel %vm2594, %v2589, 0
        %2655 = vmatpush.msra.mxu0 0.0
        %2656 = vmatpush.msra.mxu0 0.0
        %2657 = vmatpush.msra.mxu0 0.0
        %2658 = vmatpush.msra.mxu0 0.0
        %2659 = vmatpush.msra.mxu0 0.0
        %2660 = vmatpush.msra.mxu0 0.0
        %2661 = vmatpush.msra.mxu0 0.0
        %2662 = vmatpush.msra.mxu0 0.0
        %2663 = vmatpush.msra.mxu0 0.0
        %2664 = vmatpush.msra.mxu0 0.0
        %2665 = vmatpush.msra.mxu0 0.0
        %2666 = vmatpush.msra.mxu0 0.0
        %2667 = vmatpush.msra.mxu0 %v2593
        %2668 = vmatpush.msra.mxu0 %v2592
        %2669 = vmatpush.msra.mxu0 %v2591
        %2670 = vmatpush.msra.mxu0 %v2590
        %2671 = vmatmul.f32.gmra.mxu0 %v2596
        %v2672 = vpop.f32.mrf.mxu0
        %v2673 = vadd.f32 0.0, %v2672
        %2674 = vmatmul.f32.gmra.mxu0 %v2599
        %v2675 = vpop.f32.mrf.mxu0
        %v2676 = vadd.f32 0.0, %v2675
        %2677 = vmatmul.f32.gmra.mxu0 %v2602
        %v2678 = vpop.f32.mrf.mxu0
        %v2679 = vadd.f32 0.0, %v2678
        %2680 = vmatmul.f32.gmra.mxu0 %v2605
        %v2681 = vpop.f32.mrf.mxu0
        %v2682 = vadd.f32 0.0, %v2681
        %2683 = vmatmul.f32.gmra.mxu0 %v2608
        %v2684 = vpop.f32.mrf.mxu0
        %v2685 = vadd.f32 0.0, %v2684
        %2686 = vmatmul.f32.gmra.mxu0 %v2611
        %v2687 = vpop.f32.mrf.mxu0
        %v2688 = vadd.f32 0.0, %v2687
        %2689 = vmatmul.f32.gmra.mxu0 %v2614
        %v2690 = vpop.f32.mrf.mxu0
        %v2691 = vadd.f32 0.0, %v2690
        %2692 = vmatmul.f32.gmra.mxu0 %v2617
        %v2693 = vpop.f32.mrf.mxu0
        %v2694 = vadd.f32 0.0, %v2693
        %2695 = vmatmul.f32.gmra.mxu0 %v2620
        %v2696 = vpop.f32.mrf.mxu0
        %v2697 = vadd.f32 0.0, %v2696
        %2698 = vmatmul.f32.gmra.mxu0 %v2623
        %v2699 = vpop.f32.mrf.mxu0
        %v2700 = vadd.f32 0.0, %v2699
        %2701 = vmatmul.f32.gmra.mxu0 %v2626
        %v2702 = vpop.f32.mrf.mxu0
        %v2703 = vadd.f32 0.0, %v2702
        %2704 = vmatmul.f32.gmra.mxu0 %v2629
        %v2705 = vpop.f32.mrf.mxu0
        %v2706 = vadd.f32 0.0, %v2705
        %2707 = vmatmul.f32.gmra.mxu0 %v2632
        %v2708 = vpop.f32.mrf.mxu0
        %v2709 = vadd.f32 0.0, %v2708
        %2710 = vmatmul.f32.gmra.mxu0 %v2635
        %v2711 = vpop.f32.mrf.mxu0
        %v2712 = vadd.f32 0.0, %v2711
        %2713 = vmatmul.f32.gmra.mxu0 %v2638
        %v2714 = vpop.f32.mrf.mxu0
        %v2715 = vadd.f32 0.0, %v2714
        %2716 = vmatmul.f32.gmra.mxu0 %v2641
        %v2717 = vpop.f32.mrf.mxu0
        %v2718 = vadd.f32 0.0, %v2717
        %2719 = vmatmul.f32.gmra.mxu0 %v2644
        %v2720 = vpop.f32.mrf.mxu0
        %v2721 = vadd.f32 0.0, %v2720
        %2722 = vmatmul.f32.gmra.mxu0 %v2647
        %v2723 = vpop.f32.mrf.mxu0
        %v2724 = vadd.f32 0.0, %v2723
        %2725 = vmatmul.f32.gmra.mxu0 %v2650
        %v2726 = vpop.f32.mrf.mxu0
        %v2727 = vadd.f32 0.0, %v2726
        %2728 = vmatmul.f32.gmra.mxu0 %v2653
        %v2729 = vpop.f32.mrf.mxu0
        %v2730 = vadd.f32 0.0, %v2729
        %2731 = vdwg.mxu0
        %v2732 = vld [vmem:[#allocation13] sm:$0xff]
        %v2733 = vld [vmem:[#allocation13 + $0x8] sm:$0xff]
        %v2734 = vld [vmem:[#allocation13 + $0x10] sm:$0xff]
        %v2735 = vld [vmem:[#allocation13 + $0x18] sm:$0xff]
        %v2736 = vld [vmem:[#allocation13 + $0x20] sm:$0xff]
        %v2737 = vld [vmem:[#allocation13 + $0x28] sm:$0xff]
        %v2738 = vld [vmem:[#allocation13 + $0x30] sm:$0xff]
        %v2739 = vld [vmem:[#allocation13 + $0x38] sm:$0xff]
        %v2740 = vld [vmem:[#allocation13 + $0x40] sm:$0xff]
        %v2741 = vld [vmem:[#allocation13 + $0x48] sm:$0xff]
        %v2742 = vld [vmem:[#allocation13 + $0x50] sm:$0xff]
        %v2743 = vld [vmem:[#allocation13 + $0x58] sm:$0xff]
        %v2744 = vld [vmem:[#allocation13 + $0x60] sm:$0xff]
        %v2745 = vld [vmem:[#allocation13 + $0x68] sm:$0xff]
        %v2746 = vld [vmem:[#allocation13 + $0x70] sm:$0xff]
        %v2747 = vld [vmem:[#allocation13 + $0x78] sm:$0xff]
        %v2748 = vld [vmem:[#allocation13 + $0x80] sm:$0xff]
        %v2749 = vld [vmem:[#allocation13 + $0x88] sm:$0xff]
        %v2750 = vld [vmem:[#allocation13 + $0x90] sm:$0xff]
        %v2751 = vld [vmem:[#allocation13 + $0x98] sm:$0xff]
        %v2752 = vld [vmem:[#allocation13 + $0xa0] sm:$0xff]
        %v2753 = vld [vmem:[#allocation13 + $0xa8] sm:$0xff]
        %v2754 = vld [vmem:[#allocation13 + $0xb0] sm:$0xff]
        %v2755 = vld [vmem:[#allocation13 + $0xb8] sm:$0xff]
        %v2756 = vld [vmem:[#allocation13 + $0xc0] sm:$0xff]
        %v2757 = vld [vmem:[#allocation13 + $0xc8] sm:$0xff]
        %v2758 = vld [vmem:[#allocation13 + $0xd0] sm:$0xff]
        %v2759 = vld [vmem:[#allocation13 + $0xd8] sm:$0xff]
        %v2760 = vld [vmem:[#allocation13 + $0xe0] sm:$0xff]
        %v2761 = vld [vmem:[#allocation13 + $0xe8] sm:$0xff]
        %v2762 = vld [vmem:[#allocation13 + $0xf0] sm:$0xff]
        %v2763 = vld [vmem:[#allocation13 + $0xf8] sm:$0xff]
        %v2764 = vld [vmem:[#allocation13 + $0x100] sm:$0xff]
        %v2765 = vld [vmem:[#allocation13 + $0x108] sm:$0xff]
        %v2766 = vld [vmem:[#allocation13 + $0x110] sm:$0xff]
        %v2767 = vld [vmem:[#allocation13 + $0x118] sm:$0xff]
        %v2768 = vld [vmem:[#allocation13 + $0x120] sm:$0x3f]
        %v2769 = vld [vmem:[#allocation13 + $0x128] sm:$0x3f]
        %v2771 = vsel %vm2594, %v2733, 0
        %v2774 = vsel %vm2594, %v2735, 0
        %v2777 = vsel %vm2594, %v2737, 0
        %v2780 = vsel %vm2594, %v2739, 0
        %v2783 = vsel %vm2594, %v2741, 0
        %v2786 = vsel %vm2594, %v2743, 0
        %v2789 = vsel %vm2594, %v2745, 0
        %v2792 = vsel %vm2594, %v2747, 0
        %v2795 = vsel %vm2594, %v2749, 0
        %v2798 = vsel %vm2594, %v2751, 0
        %v2801 = vsel %vm2594, %v2753, 0
        %v2804 = vsel %vm2594, %v2755, 0
        %v2807 = vsel %vm2594, %v2757, 0
        %v2810 = vsel %vm2594, %v2759, 0
        %v2813 = vsel %vm2594, %v2761, 0
        %v2816 = vsel %vm2594, %v2763, 0
        %v2819 = vsel %vm2594, %v2765, 0
        %v2822 = vsel %vm2594, %v2767, 0
        %v2825 = vsel %vm2594, %v2769, 0
        %2827 = vmatpush.msra.mxu0 %v2718
        %2828 = vmatpush.msra.mxu0 %v2715
        %2829 = vmatpush.msra.mxu0 %v2712
        %2830 = vmatpush.msra.mxu0 %v2709
        %2831 = vmatpush.msra.mxu0 %v2706
        %2832 = vmatpush.msra.mxu0 %v2703
        %2833 = vmatpush.msra.mxu0 %v2700
        %2834 = vmatpush.msra.mxu0 %v2697
        %2835 = vmatpush.msra.mxu0 %v2694
        %2836 = vmatpush.msra.mxu0 %v2691
        %2837 = vmatpush.msra.mxu0 %v2688
        %2838 = vmatpush.msra.mxu0 %v2685
        %2839 = vmatpush.msra.mxu0 %v2682
        %2840 = vmatpush.msra.mxu0 %v2679
        %2841 = vmatpush.msra.mxu0 %v2676
        %2842 = vmatpush.msra.mxu0 %v2673
        %2843 = vmatmul.f32.gmra.mxu0 %v2732
        %v2844 = vpop.f32.mrf.mxu0
        %v2845 = vadd.f32 0.0, %v2844
        %2846 = vmatmul.f32.gmra.mxu0 %v2734
        %v2847 = vpop.f32.mrf.mxu0
        %v2848 = vadd.f32 0.0, %v2847
        %2849 = vmatmul.f32.gmra.mxu0 %v2736
        %v2850 = vpop.f32.mrf.mxu0
        %v2851 = vadd.f32 0.0, %v2850
        %2852 = vmatmul.f32.gmra.mxu0 %v2738
        %v2853 = vpop.f32.mrf.mxu0
        %v2854 = vadd.f32 0.0, %v2853
        %2855 = vmatmul.f32.gmra.mxu0 %v2740
        %v2856 = vpop.f32.mrf.mxu0
        %v2857 = vadd.f32 0.0, %v2856
        %2858 = vmatmul.f32.gmra.mxu0 %v2742
        %v2859 = vpop.f32.mrf.mxu0
        %v2860 = vadd.f32 0.0, %v2859
        %2861 = vmatmul.f32.gmra.mxu0 %v2744
        %v2862 = vpop.f32.mrf.mxu0
        %v2863 = vadd.f32 0.0, %v2862
        %2864 = vmatmul.f32.gmra.mxu0 %v2746
        %v2865 = vpop.f32.mrf.mxu0
        %v2866 = vadd.f32 0.0, %v2865
        %2867 = vmatmul.f32.gmra.mxu0 %v2748
        %v2868 = vpop.f32.mrf.mxu0
        %v2869 = vadd.f32 0.0, %v2868
        %2870 = vmatmul.f32.gmra.mxu0 %v2750
        %v2871 = vpop.f32.mrf.mxu0
        %v2872 = vadd.f32 0.0, %v2871
        %2873 = vmatmul.f32.gmra.mxu0 %v2752
        %v2874 = vpop.f32.mrf.mxu0
        %v2875 = vadd.f32 0.0, %v2874
        %2876 = vmatmul.f32.gmra.mxu0 %v2754
        %v2877 = vpop.f32.mrf.mxu0
        %v2878 = vadd.f32 0.0, %v2877
        %2879 = vmatmul.f32.gmra.mxu0 %v2756
        %v2880 = vpop.f32.mrf.mxu0
        %v2881 = vadd.f32 0.0, %v2880
        %2882 = vmatmul.f32.gmra.mxu0 %v2758
        %v2883 = vpop.f32.mrf.mxu0
        %v2884 = vadd.f32 0.0, %v2883
        %2885 = vmatmul.f32.gmra.mxu0 %v2760
        %v2886 = vpop.f32.mrf.mxu0
        %v2887 = vadd.f32 0.0, %v2886
        %2888 = vmatmul.f32.gmra.mxu0 %v2762
        %v2889 = vpop.f32.mrf.mxu0
        %v2890 = vadd.f32 0.0, %v2889
        %2891 = vmatmul.f32.gmra.mxu0 %v2764
        %v2892 = vpop.f32.mrf.mxu0
        %v2893 = vadd.f32 0.0, %v2892
        %2894 = vmatmul.f32.gmra.mxu0 %v2766
        %v2895 = vpop.f32.mrf.mxu0
        %v2896 = vadd.f32 0.0, %v2895
        %2897 = vmatmul.f32.gmra.mxu0 %v2768
        %v2898 = vpop.f32.mrf.mxu0
        %v2899 = vadd.f32 0.0, %v2898
        %2900 = vdwg.mxu0
        %2901 = vmatpush.msra.mxu0 0.0
        %2902 = vmatpush.msra.mxu0 0.0
        %2903 = vmatpush.msra.mxu0 0.0
        %2904 = vmatpush.msra.mxu0 0.0
        %2905 = vmatpush.msra.mxu0 0.0
        %2906 = vmatpush.msra.mxu0 0.0
        %2907 = vmatpush.msra.mxu0 0.0
        %2908 = vmatpush.msra.mxu0 0.0
        %2909 = vmatpush.msra.mxu0 0.0
        %2910 = vmatpush.msra.mxu0 0.0
        %2911 = vmatpush.msra.mxu0 0.0
        %2912 = vmatpush.msra.mxu0 0.0
        %2913 = vmatpush.msra.mxu0 %v2730
        %2914 = vmatpush.msra.mxu0 %v2727
        %2915 = vmatpush.msra.mxu0 %v2724
        %2916 = vmatpush.msra.mxu0 %v2721
        %2917 = vmatmul.f32.gmra.mxu0 %v2771
        %v2918 = vpop.f32.mrf.mxu0
        %v2919 = vadd.f32 %v2845, %v2918
        %2920 = vmatmul.f32.gmra.mxu0 %v2774
        %v2921 = vpop.f32.mrf.mxu0
        %v2922 = vadd.f32 %v2848, %v2921
        %2923 = vmatmul.f32.gmra.mxu0 %v2777
        %v2924 = vpop.f32.mrf.mxu0
        %v2925 = vadd.f32 %v2851, %v2924
        %2926 = vmatmul.f32.gmra.mxu0 %v2780
        %v2927 = vpop.f32.mrf.mxu0
        %v2928 = vadd.f32 %v2854, %v2927
        %2929 = vmatmul.f32.gmra.mxu0 %v2783
        %v2930 = vpop.f32.mrf.mxu0
        %v2931 = vadd.f32 %v2857, %v2930
        %2932 = vmatmul.f32.gmra.mxu0 %v2786
        %v2933 = vpop.f32.mrf.mxu0
        %v2934 = vadd.f32 %v2860, %v2933
        %2935 = vmatmul.f32.gmra.mxu0 %v2789
        %v2936 = vpop.f32.mrf.mxu0
        %v2937 = vadd.f32 %v2863, %v2936
        %2938 = vmatmul.f32.gmra.mxu0 %v2792
        %v2939 = vpop.f32.mrf.mxu0
        %v2940 = vadd.f32 %v2866, %v2939
        %2941 = vmatmul.f32.gmra.mxu0 %v2795
        %v2942 = vpop.f32.mrf.mxu0
        %v2943 = vadd.f32 %v2869, %v2942
        %2944 = vmatmul.f32.gmra.mxu0 %v2798
        %v2945 = vpop.f32.mrf.mxu0
        %v2946 = vadd.f32 %v2872, %v2945
        %2947 = vmatmul.f32.gmra.mxu0 %v2801
        %v2948 = vpop.f32.mrf.mxu0
        %v2949 = vadd.f32 %v2875, %v2948
        %2950 = vmatmul.f32.gmra.mxu0 %v2804
        %v2951 = vpop.f32.mrf.mxu0
        %v2952 = vadd.f32 %v2878, %v2951
        %2953 = vmatmul.f32.gmra.mxu0 %v2807
        %v2954 = vpop.f32.mrf.mxu0
        %v2955 = vadd.f32 %v2881, %v2954
        %2956 = vmatmul.f32.gmra.mxu0 %v2810
        %v2957 = vpop.f32.mrf.mxu0
        %v2958 = vadd.f32 %v2884, %v2957
        %2959 = vmatmul.f32.gmra.mxu0 %v2813
        %v2960 = vpop.f32.mrf.mxu0
        %v2961 = vadd.f32 %v2887, %v2960
        %2962 = vmatmul.f32.gmra.mxu0 %v2816
        %v2963 = vpop.f32.mrf.mxu0
        %v2964 = vadd.f32 %v2890, %v2963
        %2965 = vmatmul.f32.gmra.mxu0 %v2819
        %v2966 = vpop.f32.mrf.mxu0
        %v2967 = vadd.f32 %v2893, %v2966
        %2968 = vmatmul.f32.gmra.mxu0 %v2822
        %v2969 = vpop.f32.mrf.mxu0
        %v2970 = vadd.f32 %v2896, %v2969
        %2971 = vmatmul.f32.gmra.mxu0 %v2825
        %v2972 = vpop.f32.mrf.mxu0
        %v2973 = vadd.f32 %v2899, %v2972
        %2974 = vdwg.mxu0
        %v2975 = vmul.f32 %v2919, %v2919
        %v2976 = vmul.f32 %v2922, %v2922
        %v2977 = vmul.f32 %v2925, %v2925
        %v2978 = vmul.f32 %v2928, %v2928
        %v2979 = vmul.f32 %v2931, %v2931
        %v2980 = vmul.f32 %v2934, %v2934
        %v2981 = vmul.f32 %v2937, %v2937
        %v2982 = vmul.f32 %v2940, %v2940
        %v2988 = vrot.slane %v2928, 6
        %v2989 = vrot.slane %v2931, 6
        %v2990 = vsel %vm1977, %v2988, %v2989
        %v2991 = vrot.slane %v2934, 6
        %v2992 = vsel %vm1977, %v2989, %v2991
        %v2993 = vrot.slane %v2937, 6
        %v2994 = vsel %vm1977, %v2991, %v2993
        %v2995 = vrot.slane %v2940, 6
        %v2996 = vsel %vm1977, %v2993, %v2995
        %v3001 = vmul.f32 %v2919, %v2990
        %v3002 = vmul.f32 %v2922, %v2992
        %v3003 = vmul.f32 %v2925, %v2994
        %v3004 = vmul.f32 %v2928, %v2996
        %v3009 = vrot.slane %v2975, 4
        %v3010 = vrot.slane %v2976, 4
        %v3011 = vsel %vm2019, %v3009, %v3010
        %v3012 = vrot.slane %v2977, 4
        %v3013 = vsel %vm2019, %v3010, %v3012
        %v3014 = vrot.slane %v2978, 4
        %v3015 = vsel %vm2019, %v3012, %v3014
        %v3021 = vsub.f32 %v2940, %v3009
        %v3022 = vsub.f32 %v2943, %v3011
        %v3023 = vsub.f32 %v2946, %v3013
        %v3024 = vsub.f32 %v2949, %v3015
        %v3025 = vsub.f32 %v2952, %v3014
        %v3030 = vrot.slane %v2979, 4
        %v3031 = vsel %vm2019, %v3014, %v3030
        %v3032 = vrot.slane %v2980, 4
        %v3033 = vsel %vm2019, %v3030, %v3032
        %v3034 = vrot.slane %v2981, 4
        %v3035 = vsel %vm2019, %v3032, %v3034
        %v3036 = vrot.slane %v2982, 4
        %v3037 = vsel %vm2019, %v3034, %v3036
        %v3042 = vsub.f32 %v2952, %v3031
        %v3043 = vsub.f32 %v2955, %v3033
        %v3044 = vsub.f32 %v2958, %v3035
        %v3045 = vsub.f32 %v2961, %v3037
        %v3046 = vsub.f32 %v2964, %v3001
        %v3047 = vsub.f32 %v2967, %v3002
        %v3048 = vsub.f32 %v2970, %v3003
        %v3049 = vsub.f32 %v2973, %v3004
        %v3050 = vrot.slane %v2978, 6
        %v3051 = vrot.slane %v2979, 6
        %v3052 = vsel %vm1977, %v3050, %v3051
        %v3053 = vrot.slane %v2980, 6
        %v3054 = vsel %vm1977, %v3051, %v3053
        %v3055 = vrot.slane %v2981, 6
        %v3056 = vsel %vm1977, %v3053, %v3055
        %v3057 = vrot.slane %v2982, 6
        %v3058 = vsel %vm1977, %v3055, %v3057
        %v3063 = vadd.f32 %v2975, %v3052
        %v3064 = vadd.f32 %v2976, %v3054
        %v3065 = vadd.f32 %v2977, %v3056
        %v3066 = vadd.f32 %v2978, %v3058
        %v3067 = vadd.f32 %v3063, 0.0001
        %v3068 = vadd.f32 %v3064, 0.0001
        %v3069 = vadd.f32 %v3065, 0.0001
        %v3070 = vadd.f32 %v3066, 0.0001
        %v3075 = vrot.slane %v3042, 6
        %v3076 = vrot.slane %v3043, 6
        %v3077 = vsel %vm1977, %v3075, %v3076
        %v3078 = vrot.slane %v3044, 6
        %v3079 = vsel %vm1977, %v3076, %v3078
        %v3080 = vrot.slane %v3045, 6
        %v3081 = vsel %vm1977, %v3078, %v3080
        %v3087 = vadd.f32 %v3021, %v3075
        %v3088 = vadd.f32 %v3022, %v3077
        %v3089 = vadd.f32 %v3023, %v3079
        %v3090 = vadd.f32 %v3024, %v3081
        %v3091 = vadd.f32 %v3025, %v3080
        %v3092 = vadd.f32 %v3087, 0.0009
        %v3093 = vadd.f32 %v3088, 0.0009
        %v3094 = vadd.f32 %v3089, 0.0009
        %v3095 = vadd.f32 %v3090, 0.0009
        %v3096 = vadd.f32 %v3091, 0.0009
        %v3097 = vmul.f32 %v3046, 2.0
        %v3098 = vmul.f32 %v3047, 2.0
        %v3099 = vmul.f32 %v3048, 2.0
        %v3100 = vmul.f32 %v3049, 2.0
        %v3101 = vadd.f32 %v3097, 0.0009
        %v3102 = vadd.f32 %v3098, 0.0009
        %v3103 = vadd.f32 %v3099, 0.0009
        %v3104 = vadd.f32 %v3100, 0.0009
        %v3110 = vrot.slane %v3092, 4
        %v3111 = vrot.slane %v3093, 4
        %v3112 = vsel %vm2019, %v3110, %v3111
        %v3113 = vrot.slane %v3094, 4
        %v3114 = vsel %vm2019, %v3111, %v3113
        %v3115 = vrot.slane %v3095, 4
        %v3116 = vsel %vm2019, %v3113, %v3115
        %v3117 = vrot.slane %v3096, 4
        %v3118 = vsel %vm2019, %v3115, %v3117
        %v3123 = vmul.f32 %v3067, %v3112
        %v3124 = vmul.f32 %v3068, %v3114
        %v3125 = vmul.f32 %v3069, %v3116
        %v3126 = vmul.f32 %v3070, %v3118
        %v3127 = vrcp.pop %v3123
        %v3128 = vmul.f32 %v3123, %v3127
        %v3129 = vsub.f32 1.0, %v3128
        %v3130 = vmul.f32 %v3127, %v3129
        %v3131 = vadd.f32 %v3127, %v3130
        %vm3132 = vweird.f32 %v3123
        %vm3133 = vweird.f32 %v3127
        %vm3134 = vmor %vm3132, %vm3133
        %v3135 = vsel %vm3134, %v3127, %v3131
        %v3136 = vand.u32 2147483647, %v3123
        %vm3137 = vcmp.eq.f32.partialorder %v3136, 8.507059e+37
        %v3138 = vand.u32 %v3123, 2147483648
        %v3139 = vor.u32 1.1754944e-38, %v3138
        %v3140 = vsel %vm3137, %v3139, %v3135
        %v3141 = vmul.f32 1.0, %v3140
        %v3142 = vrcp.pop %v3124
        %v3143 = vmul.f32 %v3124, %v3142
        %v3144 = vsub.f32 1.0, %v3143
        %v3145 = vmul.f32 %v3142, %v3144
        %v3146 = vadd.f32 %v3142, %v3145
        %vm3147 = vweird.f32 %v3124
        %vm3148 = vweird.f32 %v3142
        %vm3149 = vmor %vm3147, %vm3148
        %v3150 = vsel %vm3149, %v3142, %v3146
        %v3151 = vand.u32 2147483647, %v3124
        %vm3152 = vcmp.eq.f32.partialorder %v3151, 8.507059e+37
        %v3153 = vand.u32 %v3124, 2147483648
        %v3154 = vor.u32 1.1754944e-38, %v3153
        %v3155 = vsel %vm3152, %v3154, %v3150
        %v3156 = vmul.f32 1.0, %v3155
        %v3157 = vrcp.pop %v3125
        %v3158 = vmul.f32 %v3125, %v3157
        %v3159 = vsub.f32 1.0, %v3158
        %v3160 = vmul.f32 %v3157, %v3159
        %v3161 = vadd.f32 %v3157, %v3160
        %vm3162 = vweird.f32 %v3125
        %vm3163 = vweird.f32 %v3157
        %vm3164 = vmor %vm3162, %vm3163
        %v3165 = vsel %vm3164, %v3157, %v3161
        %v3166 = vand.u32 2147483647, %v3125
        %vm3167 = vcmp.eq.f32.partialorder %v3166, 8.507059e+37
        %v3168 = vand.u32 %v3125, 2147483648
        %v3169 = vor.u32 1.1754944e-38, %v3168
        %v3170 = vsel %vm3167, %v3169, %v3165
        %v3171 = vmul.f32 1.0, %v3170
        %v3172 = vrcp.pop %v3126
        %v3173 = vmul.f32 %v3126, %v3172
        %v3174 = vsub.f32 1.0, %v3173
        %v3175 = vmul.f32 %v3172, %v3174
        %v3176 = vadd.f32 %v3172, %v3175
        %vm3177 = vweird.f32 %v3126
        %vm3178 = vweird.f32 %v3172
        %vm3179 = vmor %vm3177, %vm3178
        %v3180 = vsel %vm3179, %v3172, %v3176
        %v3181 = vand.u32 2147483647, %v3126
        %vm3182 = vcmp.eq.f32.partialorder %v3181, 8.507059e+37
        %v3183 = vand.u32 %v3126, 2147483648
        %v3184 = vor.u32 1.1754944e-38, %v3183
        %v3185 = vsel %vm3182, %v3184, %v3180
        %v3186 = vmul.f32 1.0, %v3185
        %v3187 = vmul.f32 %v3101, %v3067
        %v3188 = vmul.f32 %v3102, %v3068
        %v3189 = vmul.f32 %v3103, %v3069
        %v3190 = vmul.f32 %v3104, %v3070
        %v3191 = vmul.f32 %v3187, %v3141
        %v3192 = vmul.f32 %v3188, %v3156
        %v3193 = vmul.f32 %v3189, %v3171
        %v3194 = vmul.f32 %v3190, %v3186
        %vm3195 = vcmask 244736
        %v3196 = vsel %vm3195, %v3191, 0.0
        %v3197 = vsel %vm3195, %v3192, 0.0
        %v3198 = vadd.f32 %v3196, %v3197
        %v3199 = vsel %vm3195, %v3193, 0.0
        %v3200 = vadd.f32 %v3198, %v3199
        %vm3201 = vcmask 242688
        %v3202 = vsel %vm3201, %v3194, 0.0
        %v3203 = vadd.f32 %v3200, %v3202
        %3204 = vadd.xlane.f32.xlu0 %v3203
        %v3205 = vpop.xlane.xlu0 %3204
        %v3206 = vrot.slane %v3205, 4
        %v3207 = vadd.f32 %v3205, %v3206
        %v3208 = vrot.slane %v3207, 2
        %v3209 = vadd.f32 %v3207, %v3208
        %v3210 = vrot.slane %v3209, 1
        %v3211 = vadd.f32 %v3209, %v3210
        %s3212 = vtos %v3211
        %v3213 = vstv %s3212
        %v3214 = vmul.f32 %v3213, 0.0011111111
        %v3215 = vld [vmem:[#allocation19] sm:$0xff]
        %v3216 = vld [vmem:[#allocation19 + $0x8] sm:$0xff]
        %v3217 = vld [vmem:[#allocation25] sm:$0xff]
        %v3218 = vld [vmem:[#allocation25 + $0x8] sm:$0xff]
        %v3219 = vld [vmem:[#allocation25 + $0x10] sm:$0xff]
        %v3220 = vld [vmem:[#allocation25 + $0x18] sm:$0xff]
        %3221 = vmatpush.msra.mxu0 0.0
        %3222 = vmatpush.msra.mxu0 0.0
        %3223 = vmatpush.msra.mxu0 0.0
        %3224 = vmatpush.msra.mxu0 0.0
        %3225 = vmatpush.msra.mxu0 0.0
        %3226 = vmatpush.msra.mxu0 0.0
        %3227 = vmatpush.msra.mxu0 0.0
        %3228 = vmatpush.msra.mxu0 0.0
        %3229 = vmatpush.msra.mxu0 0.0
        %3230 = vmatpush.msra.mxu0 0.0
        %3231 = vmatpush.msra.mxu0 0.0
        %3232 = vmatpush.msra.mxu0 0.0
        %3233 = vmatpush.msra.mxu0 %v3220
        %3234 = vmatpush.msra.mxu0 %v3219
        %3235 = vmatpush.msra.mxu0 %v3218
        %3236 = vmatpush.msra.mxu0 %v3217
        %3237 = vmatmul.f32.gmra.mxu0 %v2596
        %v3238 = vpop.f32.mrf.mxu0
        %v3239 = vadd.f32 0.0, %v3238
        %3240 = vmatmul.f32.gmra.mxu0 %v2599
        %v3241 = vpop.f32.mrf.mxu0
        %v3242 = vadd.f32 0.0, %v3241
        %3243 = vmatmul.f32.gmra.mxu0 %v2602
        %v3244 = vpop.f32.mrf.mxu0
        %v3245 = vadd.f32 0.0, %v3244
        %3246 = vmatmul.f32.gmra.mxu0 %v2605
        %v3247 = vpop.f32.mrf.mxu0
        %v3248 = vadd.f32 0.0, %v3247
        %3249 = vdwg.mxu0
        %v3251 = vsel %vm2594, %v3215, 0
        %v3254 = vsel %vm2594, %v3216, 0
        %3256 = vmatpush.msra.mxu0 0.0
        %3257 = vmatpush.msra.mxu0 0.0
        %3258 = vmatpush.msra.mxu0 0.0
        %3259 = vmatpush.msra.mxu0 0.0
        %3260 = vmatpush.msra.mxu0 0.0
        %3261 = vmatpush.msra.mxu0 0.0
        %3262 = vmatpush.msra.mxu0 0.0
        %3263 = vmatpush.msra.mxu0 0.0
        %3264 = vmatpush.msra.mxu0 0.0
        %3265 = vmatpush.msra.mxu0 0.0
        %3266 = vmatpush.msra.mxu0 0.0
        %3267 = vmatpush.msra.mxu0 0.0
        %3268 = vmatpush.msra.mxu0 %v3248
        %3269 = vmatpush.msra.mxu0 %v3245
        %3270 = vmatpush.msra.mxu0 %v3242
        %3271 = vmatpush.msra.mxu0 %v3239
        %3272 = vmatmul.f32.gmra.mxu0 %v3251
        %v3273 = vpop.f32.mrf.mxu0
        %v3274 = vadd.f32 0.0, %v3273
        %3275 = vmatmul.f32.gmra.mxu0 %v3254
        %v3276 = vpop.f32.mrf.mxu0
        %v3277 = vadd.f32 0.0, %v3276
        %3278 = vdwg.mxu0
        %3279 = vmatpush.msra.mxu0 0.0
        %3280 = vmatpush.msra.mxu0 0.0
        %3281 = vmatpush.msra.mxu0 0.0
        %3282 = vmatpush.msra.mxu0 0.0
        %3283 = vmatpush.msra.mxu0 0.0
        %3284 = vmatpush.msra.mxu0 0.0
        %3285 = vmatpush.msra.mxu0 0.0
        %3286 = vmatpush.msra.mxu0 0.0
        %3287 = vmatpush.msra.mxu0 0.0
        %3288 = vmatpush.msra.mxu0 0.0
        %3289 = vmatpush.msra.mxu0 0.0
        %3290 = vmatpush.msra.mxu0 0.0
        %3291 = vmatpush.msra.mxu0 %v3220
        %3292 = vmatpush.msra.mxu0 %v3219
        %3293 = vmatpush.msra.mxu0 %v3218
        %3294 = vmatpush.msra.mxu0 %v3217
        %3295 = vmatmul.f32.gmra.mxu0 %v2608
        %v3296 = vpop.f32.mrf.mxu0
        %v3297 = vadd.f32 0.0, %v3296
        %3298 = vmatmul.f32.gmra.mxu0 %v2611
        %v3299 = vpop.f32.mrf.mxu0
        %v3300 = vadd.f32 0.0, %v3299
        %3301 = vmatmul.f32.gmra.mxu0 %v2614
        %v3302 = vpop.f32.mrf.mxu0
        %v3303 = vadd.f32 0.0, %v3302
        %3304 = vmatmul.f32.gmra.mxu0 %v2617
        %v3305 = vpop.f32.mrf.mxu0
        %v3306 = vadd.f32 0.0, %v3305
        %3307 = vdwg.mxu0
        %3308 = vmatpush.msra.mxu0 0.0
        %3309 = vmatpush.msra.mxu0 0.0
        %3310 = vmatpush.msra.mxu0 0.0
        %3311 = vmatpush.msra.mxu0 0.0
        %3312 = vmatpush.msra.mxu0 0.0
        %3313 = vmatpush.msra.mxu0 0.0
        %3314 = vmatpush.msra.mxu0 0.0
        %3315 = vmatpush.msra.mxu0 0.0
        %3316 = vmatpush.msra.mxu0 0.0
        %3317 = vmatpush.msra.mxu0 0.0
        %3318 = vmatpush.msra.mxu0 0.0
        %3319 = vmatpush.msra.mxu0 0.0
        %3320 = vmatpush.msra.mxu0 %v3306
        %3321 = vmatpush.msra.mxu0 %v3303
        %3322 = vmatpush.msra.mxu0 %v3300
        %3323 = vmatpush.msra.mxu0 %v3297
        %3324 = vmatmul.f32.gmra.mxu0 %v3251
        %v3325 = vpop.f32.mrf.mxu0
        %v3326 = vadd.f32 0.0, %v3325
        %3327 = vmatmul.f32.gmra.mxu0 %v3254
        %v3328 = vpop.f32.mrf.mxu0
        %v3329 = vadd.f32 0.0, %v3328
        %3330 = vdwg.mxu0
        %v3331 = vmul.f32 %v3274, %v3274
        %v3332 = vmul.f32 %v3277, %v3277
        %v3333 = vmul.f32 %v3326, %v3326
        %v3334 = vmul.f32 %v3329, %v3329
        %v3335 = vmul.f32 %v3274, %v3326
        %v3336 = vmul.f32 %v3277, %v3329
        %v3337 = vld [vmem:[#allocation9] sm:$0xff]
        %v3338 = vld [vmem:[#allocation9 + $0x8] sm:$0xff]
        %vm3339 = vcmask 130048
        %v3341 = vsel %vm3339, %v3274, 0
        %v3344 = vsel %vm3339, %v3277, 0
        %v3347 = vsel %vm3339, %v3326, 0
        %v3350 = vsel %vm3339, %v3329, 0
        %v3353 = vsel %vm3339, %v3331, 0
        %v3356 = vsel %vm3339, %v3332, 0
        %v3359 = vsel %vm3339, %v3333, 0
        %v3362 = vsel %vm3339, %v3334, 0
        %v3365 = vsel %vm3339, %v3335, 0
        %v3368 = vsel %vm3339, %v3336, 0
        %3370 = vmatpush.msra.mxu0 0.0
        %3371 = vmatpush.msra.mxu0 0.0
        %3372 = vmatpush.msra.mxu0 0.0
        %3373 = vmatpush.msra.mxu0 0.0
        %3374 = vmatpush.msra.mxu0 0.0
        %3375 = vmatpush.msra.mxu0 0.0
        %3376 = vmatpush.msra.mxu0 0.0
        %3377 = vmatpush.msra.mxu0 0.0
        %3378 = vmatpush.msra.mxu0 0.0
        %3379 = vmatpush.msra.mxu0 0.0
        %3380 = vmatpush.msra.mxu0 0.0
        %3381 = vmatpush.msra.mxu0 0.0
        %3382 = vmatpush.msra.mxu0 0.0
        %3383 = vmatpush.msra.mxu0 0.0
        %3384 = vmatpush.msra.mxu0 %v3338
        %3385 = vmatpush.msra.mxu0 %v3337
        %3386 = vmatmul.f32.gmra.mxu0 %v3341
        %v3387 = vpop.f32.mrf.mxu0
        %v3388 = vadd.f32 0.0, %v3387
        %3389 = vmatmul.f32.gmra.mxu0 %v3344
        %v3390 = vpop.f32.mrf.mxu0
        %v3391 = vadd.f32 0.0, %v3390
        %3392 = vmatmul.f32.gmra.mxu0 %v3347
        %v3393 = vpop.f32.mrf.mxu0
        %v3394 = vadd.f32 0.0, %v3393
        %3395 = vmatmul.f32.gmra.mxu0 %v3350
        %v3396 = vpop.f32.mrf.mxu0
        %v3397 = vadd.f32 0.0, %v3396
        %3398 = vmatmul.f32.gmra.mxu0 %v3353
        %v3399 = vpop.f32.mrf.mxu0
        %v3400 = vadd.f32 0.0, %v3399
        %3401 = vmatmul.f32.gmra.mxu0 %v3356
        %v3402 = vpop.f32.mrf.mxu0
        %v3403 = vadd.f32 0.0, %v3402
        %3404 = vmatmul.f32.gmra.mxu0 %v3359
        %v3405 = vpop.f32.mrf.mxu0
        %v3406 = vadd.f32 0.0, %v3405
        %3407 = vmatmul.f32.gmra.mxu0 %v3362
        %v3408 = vpop.f32.mrf.mxu0
        %v3409 = vadd.f32 0.0, %v3408
        %3410 = vmatmul.f32.gmra.mxu0 %v3365
        %v3411 = vpop.f32.mrf.mxu0
        %v3412 = vadd.f32 0.0, %v3411
        %3413 = vmatmul.f32.gmra.mxu0 %v3368
        %v3414 = vpop.f32.mrf.mxu0
        %v3415 = vadd.f32 0.0, %v3414
        %3416 = vdwg.mxu0
        %v3417 = vld [vmem:[#allocation15] sm:$0xff]
        %v3418 = vld [vmem:[#allocation15 + $0x8] sm:$0xff]
        %v3419 = vld [vmem:[#allocation15 + $0x10] sm:$0xff]
        %v3420 = vld [vmem:[#allocation15 + $0x18] sm:$0xff]
        %v3421 = vld [vmem:[#allocation15 + $0x20] sm:$0xff]
        %v3422 = vld [vmem:[#allocation15 + $0x28] sm:$0xff]
        %v3423 = vld [vmem:[#allocation15 + $0x30] sm:$0xff]
        %v3424 = vld [vmem:[#allocation15 + $0x38] sm:$0xff]
        %v3425 = vld [vmem:[#allocation15 + $0x40] sm:$0x3f]
        %vm3426 = vcmask 654336
        %v3428 = vsel %vm3426, %v3417, 0
        %v3431 = vsel %vm3426, %v3418, 0
        %v3434 = vsel %vm3426, %v3419, 0
        %v3437 = vsel %vm3426, %v3420, 0
        %v3440 = vsel %vm3426, %v3421, 0
        %v3443 = vsel %vm3426, %v3422, 0
        %v3446 = vsel %vm3426, %v3423, 0
        %v3449 = vsel %vm3426, %v3424, 0
        %v3452 = vsel %vm3426, %v3425, 0
        %3454 = vmatpush.msra.mxu0 0.0
        %3455 = vmatpush.msra.mxu0 0.0
        %3456 = vmatpush.msra.mxu0 0.0
        %3457 = vmatpush.msra.mxu0 0.0
        %3458 = vmatpush.msra.mxu0 0.0
        %3459 = vmatpush.msra.mxu0 0.0
        %3460 = vmatpush.msra.mxu0 %v3415
        %3461 = vmatpush.msra.mxu0 %v3412
        %3462 = vmatpush.msra.mxu0 %v3409
        %3463 = vmatpush.msra.mxu0 %v3406
        %3464 = vmatpush.msra.mxu0 %v3403
        %3465 = vmatpush.msra.mxu0 %v3400
        %3466 = vmatpush.msra.mxu0 %v3397
        %3467 = vmatpush.msra.mxu0 %v3394
        %3468 = vmatpush.msra.mxu0 %v3391
        %3469 = vmatpush.msra.mxu0 %v3388
        %3470 = vmatmul.f32.gmra.mxu0 %v3428
        %v3471 = vpop.f32.mrf.mxu0
        %v3472 = vadd.f32 0.0, %v3471
        %3473 = vmatmul.f32.gmra.mxu0 %v3431
        %v3474 = vpop.f32.mrf.mxu0
        %v3475 = vadd.f32 0.0, %v3474
        %3476 = vmatmul.f32.gmra.mxu0 %v3434
        %v3477 = vpop.f32.mrf.mxu0
        %v3478 = vadd.f32 0.0, %v3477
        %3479 = vmatmul.f32.gmra.mxu0 %v3437
        %v3480 = vpop.f32.mrf.mxu0
        %v3481 = vadd.f32 0.0, %v3480
        %3482 = vmatmul.f32.gmra.mxu0 %v3440
        %v3483 = vpop.f32.mrf.mxu0
        %v3484 = vadd.f32 0.0, %v3483
        %3485 = vmatmul.f32.gmra.mxu0 %v3443
        %v3486 = vpop.f32.mrf.mxu0
        %v3487 = vadd.f32 0.0, %v3486
        %3488 = vmatmul.f32.gmra.mxu0 %v3446
        %v3489 = vpop.f32.mrf.mxu0
        %v3490 = vadd.f32 0.0, %v3489
        %3491 = vmatmul.f32.gmra.mxu0 %v3449
        %v3492 = vpop.f32.mrf.mxu0
        %v3493 = vadd.f32 0.0, %v3492
        %3494 = vmatmul.f32.gmra.mxu0 %v3452
        %v3495 = vpop.f32.mrf.mxu0
        %v3496 = vadd.f32 0.0, %v3495
        %3497 = vdwg.mxu0
        %v3498 = vmul.f32 %v3472, %v3472
        %v3499 = vmul.f32 %v3475, %v3475
        %v3500 = vmul.f32 %v3478, %v3478
        %v3501 = vmul.f32 %v3481, %v3481
        %v3505 = vrot.slane %v3475, 6
        %v3506 = vrot.slane %v3478, 6
        %v3507 = vsel %vm1977, %v3505, %v3506
        %v3508 = vrot.slane %v3481, 6
        %v3509 = vsel %vm1977, %v3506, %v3508
        %v3512 = vmul.f32 %v3472, %v3507
        %v3513 = vmul.f32 %v3475, %v3509
        %v3516 = vrot.slane %v3498, 4
        %v3517 = vrot.slane %v3499, 4
        %v3518 = vsel %vm2019, %v3516, %v3517
        %v3522 = vsub.f32 %v3481, %v3516
        %v3523 = vsub.f32 %v3484, %v3518
        %v3524 = vsub.f32 %v3487, %v3517
        %v3527 = vrot.slane %v3500, 4
        %v3528 = vsel %vm2019, %v3517, %v3527
        %v3529 = vrot.slane %v3501, 4
        %v3530 = vsel %vm2019, %v3527, %v3529
        %v3533 = vsub.f32 %v3487, %v3528
        %v3534 = vsub.f32 %v3490, %v3530
        %v3535 = vsub.f32 %v3493, %v3512
        %v3536 = vsub.f32 %v3496, %v3513
        %v3537 = vrot.slane %v3499, 6
        %v3538 = vrot.slane %v3500, 6
        %v3539 = vsel %vm1977, %v3537, %v3538
        %v3540 = vrot.slane %v3501, 6
        %v3541 = vsel %vm1977, %v3538, %v3540
        %v3544 = vadd.f32 %v3498, %v3539
        %v3545 = vadd.f32 %v3499, %v3541
        %v3546 = vadd.f32 %v3544, 0.0001
        %v3547 = vadd.f32 %v3545, 0.0001
        %v3550 = vrot.slane %v3533, 6
        %v3551 = vrot.slane %v3534, 6
        %v3552 = vsel %vm1977, %v3550, %v3551
        %v3556 = vadd.f32 %v3522, %v3550
        %v3557 = vadd.f32 %v3523, %v3552
        %v3558 = vadd.f32 %v3524, %v3551
        %v3559 = vadd.f32 %v3556, 0.0009
        %v3560 = vadd.f32 %v3557, 0.0009
        %v3561 = vadd.f32 %v3558, 0.0009
        %v3562 = vmul.f32 %v3535, 2.0
        %v3563 = vmul.f32 %v3536, 2.0
        %v3564 = vadd.f32 %v3562, 0.0009
        %v3565 = vadd.f32 %v3563, 0.0009
        %v3569 = vrot.slane %v3559, 4
        %v3570 = vrot.slane %v3560, 4
        %v3571 = vsel %vm2019, %v3569, %v3570
        %v3572 = vrot.slane %v3561, 4
        %v3573 = vsel %vm2019, %v3570, %v3572
        %v3576 = vmul.f32 %v3546, %v3571
        %v3577 = vmul.f32 %v3547, %v3573
        %v3578 = vrcp.pop %v3576
        %v3579 = vmul.f32 %v3576, %v3578
        %v3580 = vsub.f32 1.0, %v3579
        %v3581 = vmul.f32 %v3578, %v3580
        %v3582 = vadd.f32 %v3578, %v3581
        %vm3583 = vweird.f32 %v3576
        %vm3584 = vweird.f32 %v3578
        %vm3585 = vmor %vm3583, %vm3584
        %v3586 = vsel %vm3585, %v3578, %v3582
        %v3587 = vand.u32 2147483647, %v3576
        %vm3588 = vcmp.eq.f32.partialorder %v3587, 8.507059e+37
        %v3589 = vand.u32 %v3576, 2147483648
        %v3590 = vor.u32 1.1754944e-38, %v3589
        %v3591 = vsel %vm3588, %v3590, %v3586
        %v3592 = vmul.f32 1.0, %v3591
        %v3593 = vrcp.pop %v3577
        %v3594 = vmul.f32 %v3577, %v3593
        %v3595 = vsub.f32 1.0, %v3594
        %v3596 = vmul.f32 %v3593, %v3595
        %v3597 = vadd.f32 %v3593, %v3596
        %vm3598 = vweird.f32 %v3577
        %vm3599 = vweird.f32 %v3593
        %vm3600 = vmor %vm3598, %vm3599
        %v3601 = vsel %vm3600, %v3593, %v3597
        %v3602 = vand.u32 2147483647, %v3577
        %vm3603 = vcmp.eq.f32.partialorder %v3602, 8.507059e+37
        %v3604 = vand.u32 %v3577, 2147483648
        %v3605 = vor.u32 1.1754944e-38, %v3604
        %v3606 = vsel %vm3603, %v3605, %v3601
        %v3607 = vmul.f32 1.0, %v3606
        %v3608 = vmul.f32 %v3564, %v3546
        %v3609 = vmul.f32 %v3565, %v3547
        %v3610 = vmul.f32 %v3608, %v3592
        %v3611 = vmul.f32 %v3609, %v3607
        %vm3612 = vcmask 113664
        %v3613 = vsel %vm3612, %v3610, 0.0
        %vm3614 = vcmask 111616
        %v3615 = vsel %vm3614, %v3611, 0.0
        %v3616 = vadd.f32 %v3613, %v3615
        %3617 = vadd.xlane.f32.xlu0 %v3616
        %v3618 = vpop.xlane.xlu0 %3617
        %v3619 = vrot.slane %v3618, 4
        %v3620 = vadd.f32 %v3618, %v3619
        %v3621 = vrot.slane %v3620, 2
        %v3622 = vadd.f32 %v3620, %v3621
        %v3623 = vrot.slane %v3622, 1
        %v3624 = vadd.f32 %v3622, %v3623
        %s3625 = vtos %v3624
        %v3626 = vstv %s3625
        %v3627 = vmul.f32 %v3626, 0.0051020407
        %v3628 = vld [vmem:[#allocation21] sm:$0xff]
        %v3629 = vld [vmem:[#allocation27] sm:$0xff]
        %v3630 = vld [vmem:[#allocation27 + $0x8] sm:$0xff]
        %3631 = vmatpush.msra.mxu0 0.0
        %3632 = vmatpush.msra.mxu0 0.0
        %3633 = vmatpush.msra.mxu0 0.0
        %3634 = vmatpush.msra.mxu0 0.0
        %3635 = vmatpush.msra.mxu0 0.0
        %3636 = vmatpush.msra.mxu0 0.0
        %3637 = vmatpush.msra.mxu0 0.0
        %3638 = vmatpush.msra.mxu0 0.0
        %3639 = vmatpush.msra.mxu0 0.0
        %3640 = vmatpush.msra.mxu0 0.0
        %3641 = vmatpush.msra.mxu0 0.0
        %3642 = vmatpush.msra.mxu0 0.0
        %3643 = vmatpush.msra.mxu0 0.0
        %3644 = vmatpush.msra.mxu0 0.0
        %3645 = vmatpush.msra.mxu0 %v3630
        %3646 = vmatpush.msra.mxu0 %v3629
        %3647 = vmatmul.f32.gmra.mxu0 %v3341
        %v3648 = vpop.f32.mrf.mxu0
        %v3649 = vadd.f32 0.0, %v3648
        %3650 = vmatmul.f32.gmra.mxu0 %v3344
        %v3651 = vpop.f32.mrf.mxu0
        %v3652 = vadd.f32 0.0, %v3651
        %3653 = vdwg.mxu0
        %v3655 = vsel %vm3339, %v3628, 0
        %3657 = vmatpush.msra.mxu0 0.0
        %3658 = vmatpush.msra.mxu0 0.0
        %3659 = vmatpush.msra.mxu0 0.0
        %3660 = vmatpush.msra.mxu0 0.0
        %3661 = vmatpush.msra.mxu0 0.0
        %3662 = vmatpush.msra.mxu0 0.0
        %3663 = vmatpush.msra.mxu0 0.0
        %3664 = vmatpush.msra.mxu0 0.0
        %3665 = vmatpush.msra.mxu0 0.0
        %3666 = vmatpush.msra.mxu0 0.0
        %3667 = vmatpush.msra.mxu0 0.0
        %3668 = vmatpush.msra.mxu0 0.0
        %3669 = vmatpush.msra.mxu0 0.0
        %3670 = vmatpush.msra.mxu0 0.0
        %3671 = vmatpush.msra.mxu0 %v3652
        %3672 = vmatpush.msra.mxu0 %v3649
        %3673 = vmatmul.f32.gmra.mxu0 %v3655
        %v3674 = vpop.f32.mrf.mxu0
        %v3675 = vadd.f32 0.0, %v3674
        %3676 = vdwg.mxu0
        %3677 = vmatpush.msra.mxu0 0.0
        %3678 = vmatpush.msra.mxu0 0.0
        %3679 = vmatpush.msra.mxu0 0.0
        %3680 = vmatpush.msra.mxu0 0.0
        %3681 = vmatpush.msra.mxu0 0.0
        %3682 = vmatpush.msra.mxu0 0.0
        %3683 = vmatpush.msra.mxu0 0.0
        %3684 = vmatpush.msra.mxu0 0.0
        %3685 = vmatpush.msra.mxu0 0.0
        %3686 = vmatpush.msra.mxu0 0.0
        %3687 = vmatpush.msra.mxu0 0.0
        %3688 = vmatpush.msra.mxu0 0.0
        %3689 = vmatpush.msra.mxu0 0.0
        %3690 = vmatpush.msra.mxu0 0.0
        %3691 = vmatpush.msra.mxu0 %v3630
        %3692 = vmatpush.msra.mxu0 %v3629
        %3693 = vmatmul.f32.gmra.mxu0 %v3347
        %v3694 = vpop.f32.mrf.mxu0
        %v3695 = vadd.f32 0.0, %v3694
        %3696 = vmatmul.f32.gmra.mxu0 %v3350
        %v3697 = vpop.f32.mrf.mxu0
        %v3698 = vadd.f32 0.0, %v3697
        %3699 = vdwg.mxu0
        %3700 = vmatpush.msra.mxu0 0.0
        %3701 = vmatpush.msra.mxu0 0.0
        %3702 = vmatpush.msra.mxu0 0.0
        %3703 = vmatpush.msra.mxu0 0.0
        %3704 = vmatpush.msra.mxu0 0.0
        %3705 = vmatpush.msra.mxu0 0.0
        %3706 = vmatpush.msra.mxu0 0.0
        %3707 = vmatpush.msra.mxu0 0.0
        %3708 = vmatpush.msra.mxu0 0.0
        %3709 = vmatpush.msra.mxu0 0.0
        %3710 = vmatpush.msra.mxu0 0.0
        %3711 = vmatpush.msra.mxu0 0.0
        %3712 = vmatpush.msra.mxu0 0.0
        %3713 = vmatpush.msra.mxu0 0.0
        %3714 = vmatpush.msra.mxu0 %v3698
        %3715 = vmatpush.msra.mxu0 %v3695
        %3716 = vmatmul.f32.gmra.mxu0 %v3655
        %v3717 = vpop.f32.mrf.mxu0
        %v3718 = vadd.f32 0.0, %v3717
        %3719 = vdwg.mxu0
        %v3720 = vmul.f32 %v3675, %v3675
        %v3721 = vmul.f32 %v3718, %v3718
        %v3722 = vmul.f32 %v3675, %v3718
        %v3723 = vld [vmem:[#allocation10] sm:$0xff]
        %vm3724 = vcmask 64512
        %v3726 = vsel %vm3724, %v3675, 0
        %v3729 = vsel %vm3724, %v3718, 0
        %v3732 = vsel %vm3724, %v3720, 0
        %v3735 = vsel %vm3724, %v3721, 0
        %v3738 = vsel %vm3724, %v3722, 0
        %3740 = vmatpush.msra.mxu0 0.0
        %3741 = vmatpush.msra.mxu0 0.0
        %3742 = vmatpush.msra.mxu0 0.0
        %3743 = vmatpush.msra.mxu0 0.0
        %3744 = vmatpush.msra.mxu0 0.0
        %3745 = vmatpush.msra.mxu0 0.0
        %3746 = vmatpush.msra.mxu0 0.0
        %3747 = vmatpush.msra.mxu0 0.0
        %3748 = vmatpush.msra.mxu0 0.0
        %3749 = vmatpush.msra.mxu0 0.0
        %3750 = vmatpush.msra.mxu0 0.0
        %3751 = vmatpush.msra.mxu0 0.0
        %3752 = vmatpush.msra.mxu0 0.0
        %3753 = vmatpush.msra.mxu0 0.0
        %3754 = vmatpush.msra.mxu0 0.0
        %3755 = vmatpush.msra.mxu0 %v3723
        %3756 = vmatmul.f32.gmra.mxu0 %v3726
        %v3757 = vpop.f32.mrf.mxu0
        %v3758 = vadd.f32 0.0, %v3757
        %3759 = vmatmul.f32.gmra.mxu0 %v3729
        %v3760 = vpop.f32.mrf.mxu0
        %v3761 = vadd.f32 0.0, %v3760
        %3762 = vmatmul.f32.gmra.mxu0 %v3732
        %v3763 = vpop.f32.mrf.mxu0
        %v3764 = vadd.f32 0.0, %v3763
        %3765 = vmatmul.f32.gmra.mxu0 %v3735
        %v3766 = vpop.f32.mrf.mxu0
        %v3767 = vadd.f32 0.0, %v3766
        %3768 = vmatmul.f32.gmra.mxu0 %v3738
        %v3769 = vpop.f32.mrf.mxu0
        %v3770 = vadd.f32 0.0, %v3769
        %3771 = vdwg.mxu0
        %v3772 = vld [vmem:[#allocation16] sm:$0xff]
        %v3773 = vld [vmem:[#allocation16 + $0x8] sm:$0xff]
        %v3774 = vld [vmem:[#allocation16 + $0x10] sm:$0xff]
        %v3775 = vld [vmem:[#allocation16 + $0x18] sm:$0x3f]
        %vm3776 = vcmask 326656
        %v3778 = vsel %vm3776, %v3772, 0
        %v3781 = vsel %vm3776, %v3773, 0
        %v3784 = vsel %vm3776, %v3774, 0
        %v3787 = vsel %vm3776, %v3775, 0
        %3789 = vmatpush.msra.mxu0 0.0
        %3790 = vmatpush.msra.mxu0 0.0
        %3791 = vmatpush.msra.mxu0 0.0
        %3792 = vmatpush.msra.mxu0 0.0
        %3793 = vmatpush.msra.mxu0 0.0
        %3794 = vmatpush.msra.mxu0 0.0
        %3795 = vmatpush.msra.mxu0 0.0
        %3796 = vmatpush.msra.mxu0 0.0
        %3797 = vmatpush.msra.mxu0 0.0
        %3798 = vmatpush.msra.mxu0 0.0
        %3799 = vmatpush.msra.mxu0 0.0
        %3800 = vmatpush.msra.mxu0 %v3770
        %3801 = vmatpush.msra.mxu0 %v3767
        %3802 = vmatpush.msra.mxu0 %v3764
        %3803 = vmatpush.msra.mxu0 %v3761
        %3804 = vmatpush.msra.mxu0 %v3758
        %3805 = vmatmul.f32.gmra.mxu0 %v3778
        %v3806 = vpop.f32.mrf.mxu0
        %v3807 = vadd.f32 0.0, %v3806
        %3808 = vmatmul.f32.gmra.mxu0 %v3781
        %v3809 = vpop.f32.mrf.mxu0
        %v3810 = vadd.f32 0.0, %v3809
        %3811 = vmatmul.f32.gmra.mxu0 %v3784
        %v3812 = vpop.f32.mrf.mxu0
        %v3813 = vadd.f32 0.0, %v3812
        %3814 = vmatmul.f32.gmra.mxu0 %v3787
        %v3815 = vpop.f32.mrf.mxu0
        %v3816 = vadd.f32 0.0, %v3815
        %3817 = vdwg.mxu0
        %v3818 = vmul.f32 %v3807, %v3807
        %v3819 = vmul.f32 %v3810, %v3810
        %v3822 = vrot.slane %v3807, 6
        %v3823 = vrot.slane %v3810, 6
        %v3824 = vsel %vm1977, %v3822, %v3823
        %v3826 = vmul.f32 %v3807, %v3824
        %v3828 = vrot.slane %v3818, 4
        %v3830 = vsub.f32 %v3810, %v3828
        %v3831 = vsub.f32 %v3813, %v3828
        %v3833 = vrot.slane %v3819, 4
        %v3834 = vsel %vm2019, %v3828, %v3833
        %v3836 = vsub.f32 %v3813, %v3834
        %v3837 = vsub.f32 %v3816, %v3826
        %v3838 = vrot.slane %v3818, 6
        %v3839 = vrot.slane %v3819, 6
        %v3840 = vsel %vm1977, %v3838, %v3839
        %v3842 = vadd.f32 %v3818, %v3840
        %v3843 = vadd.f32 %v3842, 0.0001
        %v3845 = vrot.slane %v3836, 6
        %v3847 = vadd.f32 %v3830, %v3845
        %v3848 = vadd.f32 %v3831, %v3845
        %v3849 = vadd.f32 %v3847, 0.0009
        %v3850 = vadd.f32 %v3848, 0.0009
        %v3851 = vmul.f32 %v3837, 2.0
        %v3852 = vadd.f32 %v3851, 0.0009
        %v3855 = vrot.slane %v3849, 4
        %v3856 = vrot.slane %v3850, 4
        %v3857 = vsel %vm2019, %v3855, %v3856
        %v3859 = vmul.f32 %v3843, %v3857
        %v3860 = vrcp.pop %v3859
        %v3861 = vmul.f32 %v3859, %v3860
        %v3862 = vsub.f32 1.0, %v3861
        %v3863 = vmul.f32 %v3860, %v3862
        %v3864 = vadd.f32 %v3860, %v3863
        %vm3865 = vweird.f32 %v3859
        %vm3866 = vweird.f32 %v3860
        %vm3867 = vmor %vm3865, %vm3866
        %v3868 = vsel %vm3867, %v3860, %v3864
        %v3869 = vand.u32 2147483647, %v3859
        %vm3870 = vcmp.eq.f32.partialorder %v3869, 8.507059e+37
        %v3871 = vand.u32 %v3859, 2147483648
        %v3872 = vor.u32 1.1754944e-38, %v3871
        %v3873 = vsel %vm3870, %v3872, %v3868
        %v3874 = vmul.f32 1.0, %v3873
        %v3875 = vmul.f32 %v3852, %v3843
        %v3876 = vmul.f32 %v3875, %v3874
        %vm3877 = vcmask 46080
        %v3878 = vsel %vm3877, %v3876, 0.0
        %3879 = vadd.xlane.f32.xlu0 %v3878
        %v3880 = vpop.xlane.xlu0 %3879
        %v3881 = vrot.slane %v3880, 4
        %v3882 = vadd.f32 %v3880, %v3881
        %v3883 = vrot.slane %v3882, 2
        %v3884 = vadd.f32 %v3882, %v3883
        %v3885 = vrot.slane %v3884, 1
        %v3886 = vadd.f32 %v3884, %v3885
        %s3887 = vtos %v3886
        %v3888 = vstv %s3887
        %v3889 = vmul.f32 %v3888, 0.027777778
        %v3890 = vld [vmem:[#allocation22] sm:$0xf]
        %v3891 = vld [vmem:[#allocation28] sm:$0xff]
        %3892 = vmatpush.msra.mxu0 0.0
        %3893 = vmatpush.msra.mxu0 0.0
        %3894 = vmatpush.msra.mxu0 0.0
        %3895 = vmatpush.msra.mxu0 0.0
        %3896 = vmatpush.msra.mxu0 0.0
        %3897 = vmatpush.msra.mxu0 0.0
        %3898 = vmatpush.msra.mxu0 0.0
        %3899 = vmatpush.msra.mxu0 0.0
        %3900 = vmatpush.msra.mxu0 0.0
        %3901 = vmatpush.msra.mxu0 0.0
        %3902 = vmatpush.msra.mxu0 0.0
        %3903 = vmatpush.msra.mxu0 0.0
        %3904 = vmatpush.msra.mxu0 0.0
        %3905 = vmatpush.msra.mxu0 0.0
        %3906 = vmatpush.msra.mxu0 0.0
        %3907 = vmatpush.msra.mxu0 %v3891
        %3908 = vmatmul.f32.gmra.mxu0 %v3726
        %v3909 = vpop.f32.mrf.mxu0
        %v3910 = vadd.f32 0.0, %v3909
        %3911 = vdwg.mxu0
        %v3913 = vsel %vm3724, %v3890, 0
        %3915 = vmatpush.msra.mxu0 0.0
        %3916 = vmatpush.msra.mxu0 0.0
        %3917 = vmatpush.msra.mxu0 0.0
        %3918 = vmatpush.msra.mxu0 0.0
        %3919 = vmatpush.msra.mxu0 0.0
        %3920 = vmatpush.msra.mxu0 0.0
        %3921 = vmatpush.msra.mxu0 0.0
        %3922 = vmatpush.msra.mxu0 0.0
        %3923 = vmatpush.msra.mxu0 0.0
        %3924 = vmatpush.msra.mxu0 0.0
        %3925 = vmatpush.msra.mxu0 0.0
        %3926 = vmatpush.msra.mxu0 0.0
        %3927 = vmatpush.msra.mxu0 0.0
        %3928 = vmatpush.msra.mxu0 0.0
        %3929 = vmatpush.msra.mxu0 0.0
        %3930 = vmatpush.msra.mxu0 %v3910
        %3931 = vmatmul.f32.gmra.mxu0 %v3913
        %v3932 = vpop.f32.mrf.mxu0
        %v3933 = vadd.f32 0.0, %v3932
        %3934 = vdwg.mxu0
        %3935 = vmatpush.msra.mxu0 0.0
        %3936 = vmatpush.msra.mxu0 0.0
        %3937 = vmatpush.msra.mxu0 0.0
        %3938 = vmatpush.msra.mxu0 0.0
        %3939 = vmatpush.msra.mxu0 0.0
        %3940 = vmatpush.msra.mxu0 0.0
        %3941 = vmatpush.msra.mxu0 0.0
        %3942 = vmatpush.msra.mxu0 0.0
        %3943 = vmatpush.msra.mxu0 0.0
        %3944 = vmatpush.msra.mxu0 0.0
        %3945 = vmatpush.msra.mxu0 0.0
        %3946 = vmatpush.msra.mxu0 0.0
        %3947 = vmatpush.msra.mxu0 0.0
        %3948 = vmatpush.msra.mxu0 0.0
        %3949 = vmatpush.msra.mxu0 0.0
        %3950 = vmatpush.msra.mxu0 %v3891
        %3951 = vmatmul.f32.gmra.mxu0 %v3729
        %v3952 = vpop.f32.mrf.mxu0
        %v3953 = vadd.f32 0.0, %v3952
        %3954 = vdwg.mxu0
        %3955 = vmatpush.msra.mxu0 0.0
        %3956 = vmatpush.msra.mxu0 0.0
        %3957 = vmatpush.msra.mxu0 0.0
        %3958 = vmatpush.msra.mxu0 0.0
        %3959 = vmatpush.msra.mxu0 0.0
        %3960 = vmatpush.msra.mxu0 0.0
        %3961 = vmatpush.msra.mxu0 0.0
        %3962 = vmatpush.msra.mxu0 0.0
        %3963 = vmatpush.msra.mxu0 0.0
        %3964 = vmatpush.msra.mxu0 0.0
        %3965 = vmatpush.msra.mxu0 0.0
        %3966 = vmatpush.msra.mxu0 0.0
        %3967 = vmatpush.msra.mxu0 0.0
        %3968 = vmatpush.msra.mxu0 0.0
        %3969 = vmatpush.msra.mxu0 0.0
        %3970 = vmatpush.msra.mxu0 %v3953
        %3971 = vmatmul.f32.gmra.mxu0 %v3913
        %v3972 = vpop.f32.mrf.mxu0
        %v3973 = vadd.f32 0.0, %v3972
        %3974 = vdwg.mxu0
        %v3975 = vmul.f32 %v3933, %v3933
        %v3976 = vmul.f32 %v3973, %v3973
        %v3977 = vmul.f32 %v3933, %v3973
        %v3979 = vrot.slane %v3973, 4
        %v3982 = vrot.slane %v3976, 4
        %v3984 = vsel %vm2019, %v3933, %v3979
        %v3985 = vsel %vm2019, %v3975, %v3982
        %v3986 = vld [vmem:[%s6] sm:$0xf]
        %vm3987 = vcmask 31744
        %v3989 = vsel %vm3987, %v3984, 0
        %v3992 = vsel %vm3987, %v3985, 0
        %v3995 = vsel %vm3987, %v3977, 0
        %v3998 = vsel %vm2019, %v3986, 0
        %4000 = vmatpush.msra.mxu0 0.0
        %4001 = vmatpush.msra.mxu0 0.0
        %4002 = vmatpush.msra.mxu0 0.0
        %4003 = vmatpush.msra.mxu0 0.0
        %4004 = vmatpush.msra.mxu0 0.0
        %4005 = vmatpush.msra.mxu0 0.0
        %4006 = vmatpush.msra.mxu0 0.0
        %4007 = vmatpush.msra.mxu0 0.0
        %4008 = vmatpush.msra.mxu0 0.0
        %4009 = vmatpush.msra.mxu0 0.0
        %4010 = vmatpush.msra.mxu0 0.0
        %4011 = vmatpush.msra.mxu0 0.0
        %4012 = vmatpush.msra.mxu0 0.0
        %4013 = vmatpush.msra.mxu0 0.0
        %4014 = vmatpush.msra.mxu0 0.0
        %4015 = vmatpush.msra.mxu0 %v3998
        %4016 = vmatmul.f32.gmra.mxu0 %v3989
        %v4017 = vpop.f32.mrf.mxu0
        %v4018 = vadd.f32 0.0, %v4017
        %4019 = vmatmul.f32.gmra.mxu0 %v3992
        %v4020 = vpop.f32.mrf.mxu0
        %v4021 = vadd.f32 0.0, %v4020
        %4022 = vmatmul.f32.gmra.mxu0 %v3995
        %v4023 = vpop.f32.mrf.mxu0
        %v4024 = vadd.f32 0.0, %v4023
        %4025 = vdwg.mxu0
        %v4026 = vld [vmem:[%s11] sm:$0xff]
        %v4027 = vld [vmem:[%s11 + $0x8] sm:$0x3]
        %vm4028 = vcmask 162816
        %v4030 = vsel %vm4028, %v4026, 0
        %v4033 = vsel %vm4028, %v4027, 0
        %v4036 = vsel %vm2019, %v4024, 0
        %4038 = vmatpush.msra.mxu0 0.0
        %4039 = vmatpush.msra.mxu0 0.0
        %4040 = vmatpush.msra.mxu0 0.0
        %4041 = vmatpush.msra.mxu0 0.0
        %4042 = vmatpush.msra.mxu0 0.0
        %4043 = vmatpush.msra.mxu0 0.0
        %4044 = vmatpush.msra.mxu0 0.0
        %4045 = vmatpush.msra.mxu0 0.0
        %4046 = vmatpush.msra.mxu0 0.0
        %4047 = vmatpush.msra.mxu0 0.0
        %4048 = vmatpush.msra.mxu0 0.0
        %4049 = vmatpush.msra.mxu0 0.0
        %4050 = vmatpush.msra.mxu0 0.0
        %4051 = vmatpush.msra.mxu0 %v4036
        %4052 = vmatpush.msra.mxu0 %v4021
        %4053 = vmatpush.msra.mxu0 %v4018
        %4054 = vmatmul.f32.gmra.mxu0 %v4030
        %v4055 = vpop.f32.mrf.mxu0
        %v4056 = vadd.f32 0.0, %v4055
        %4057 = vmatmul.f32.gmra.mxu0 %v4033
        %v4058 = vpop.f32.mrf.mxu0
        %v4059 = vadd.f32 0.0, %v4058
        %4060 = vdwg.mxu0
        %v4061 = vmul.f32 %v4056, %v4056
        %v4063 = vrot.slane %v4056, 2
        %v4065 = vmul.f32 %v4056, %v4063
        %v4067 = vrot.slane %v4061, 4
        %v4069 = vsub.f32 %v4056, %v4067
        %v4070 = vsub.f32 %v4059, %v4065
        %v4071 = vrot.slane %v4061, 2
        %v4073 = vadd.f32 %v4061, %v4071
        %v4074 = vadd.f32 %v4073, 0.0001
        %v4076 = vrot.slane %v4069, 2
        %v4078 = vadd.f32 %v4069, %v4076
        %v4079 = vadd.f32 %v4078, 0.0009
        %v4080 = vmul.f32 %v4070, 2.0
        %v4081 = vadd.f32 %v4080, 0.0009
        %v4083 = vrot.slane %v4079, 4
        %v4085 = vmul.f32 %v4074, %v4083
        %v4086 = vrcp.pop %v4085
        %v4087 = vmul.f32 %v4085, %v4086
        %v4088 = vsub.f32 1.0, %v4087
        %v4089 = vmul.f32 %v4086, %v4088
        %v4090 = vadd.f32 %v4086, %v4089
        %vm4091 = vweird.f32 %v4085
        %vm4092 = vweird.f32 %v4086
        %vm4093 = vmor %vm4091, %vm4092
        %v4094 = vsel %vm4093, %v4086, %v4090
        %v4095 = vand.u32 2147483647, %v4085
        %vm4096 = vcmp.eq.f32.partialorder %v4095, 8.507059e+37
        %v4097 = vand.u32 %v4085, 2147483648
        %v4098 = vor.u32 1.1754944e-38, %v4097
        %v4099 = vsel %vm4096, %v4098, %v4094
        %v4100 = vmul.f32 1.0, %v4099
        %v4101 = vmul.f32 %v4065, 2.0
        %v4102 = vadd.f32 %v4101, 0.0001
        %v4103 = vmul.f32 %v4102, %v4081
        %v4104 = vmul.f32 %v4103, %v4100
        %vm4105 = vcmask 9216
        %v4106 = vsel %vm4105, %v4104, 0.0
        %4107 = vadd.xlane.f32.xlu0 %v4106
        %v4108 = vpop.xlane.xlu0 %4107
        %v4109 = vrot.slane %v4108, 4
        %v4110 = vadd.f32 %v4108, %v4109
        %v4111 = vrot.slane %v4110, 2
        %v4112 = vadd.f32 %v4110, %v4111
        %v4113 = vrot.slane %v4112, 1
        %v4114 = vadd.f32 %v4112, %v4113
        %s4115 = vtos %v4114
        %v4116 = vstv %s4115
        %v4117 = vmul.f32 %v4116, 0.25
        %v4118 = vlaneseq
        %v4119 = vshrl.u32 %v4118, 7
        %vm4120 = vcmp.eq.s32.totalorder %v4119, 0
        %v4121 = vsel %vm4120, %v2413, 0.0
        %v4122 = vadd.f32 %v4121, 0.0
        %vm4123 = vcmp.eq.s32.totalorder %v4119, 1
        %v4124 = vsel %vm4123, %v3214, 0.0
        %v4125 = vadd.f32 %v4122, %v4124
        %vm4126 = vcmp.eq.s32.totalorder %v4119, 2
        %v4127 = vsel %vm4126, %v3627, 0.0
        %v4128 = vadd.f32 %v4125, %v4127
        %vm4129 = vcmp.eq.s32.totalorder %v4119, 3
        %v4130 = vsel %vm4129, %v3889, 0.0
        %v4131 = vadd.f32 %v4128, %v4130
        %vm4132 = vcmp.eq.s32.totalorder %v4119, 4
        %v4133 = vsel %vm4132, %v4117, 0.0
        %v4134 = vadd.f32 %v4131, %v4133
        %4135 = vst [vmem:[%s977] sm:$0xff] %v4134
        %p4136 = scmp.lt.s32.totalorder %s49, 1
        %s4137 = scalar_select %p4136, %s49, 1
        %p4138 = scmp.lt.s32.totalorder %s50, 2
        %s4139 = scalar_select %p4138, %s50, 2
        %s4140 = smul.addr %s4137, 3
        %s4141 = sadd.s32 %s4139, %s4140
        %s4142 = smul.addr %s4141, 8
        %s4143 = scalar_lea.vmem %s20, %s4142
        // Predicated region
        $region173: #{ms_ssim_loss.1} parent=99 // pred_check
          %p4144 = pneg %p511
        $region174: #{ms_ssim_loss.1} parent=99 // pred_check_branch
          %4146 = sbr.rel (%p4144) target = $region176
        $region175: #{ms_ssim_loss.1} parent=99 // pred_region
          _
        $region176: #{ms_ssim_loss.1} parent=99 // pred_fallthru
          _
      $region100: #{ms_ssim_loss.1} parent=5 // pred_fallthru
        _
      %p4147 = scmp.le.s32.totalorder 2, %s40
      // Predicated region
      $region177: #{ms_ssim_loss.1} parent=5 // pred_check
        %p4148 = pneg %p4147
      $region178: #{ms_ssim_loss.1} parent=5 // pred_check_branch
        %4150 = sbr.rel (%p4148) target = $region180
      $region179: #{ms_ssim_loss.1} parent=5 // pred_region
        %s4151 = ssub.s32 %s40, 2
        // Predicated region
        $region181: #{ms_ssim_loss.1} parent=179 // pred_check
          %p4152 = pneg %p517
        $region182: #{ms_ssim_loss.1} parent=179 // pred_check_branch
          %4154 = sbr.rel (%p4152) target = $region184
        $region183: #{ms_ssim_loss.1} parent=179 // pred_region
          %p4155 = scmp.lt.s32.totalorder %s51, 1
          %s4156 = scalar_select %p4155, %s51, 1
          %p4157 = scmp.lt.s32.totalorder %s52, 2
          %s4158 = scalar_select %p4157, %s52, 2
          %s4159 = smul.addr %s4156, 3
          %s4160 = sadd.s32 %s4158, %s4159
          %s4161 = smul.addr %s4160, 8
          %s4162 = scalar_lea.vmem %s20, %s4161
        $region184: #{ms_ssim_loss.1} parent=179 // pred_fallthru
          _
      $region180: #{ms_ssim_loss.1} parent=5 // pred_fallthru
        _
    $region6: #{ms_ssim_loss.1} parent=1 // loop_footer
      %s44 = sadd.s32 1, %s40
    $region7: #{ms_ssim_loss.1} parent=1 // loop_footer_branch
      %39 = sbr.rel target = $region3
    $region8: #{ms_ssim_loss.1} parent=1 // loop_exit
      _
    %4163 = vsyncpa [#allocation3], 1
    %s4164 = scalar_lea.sflag [#allocation3], 1
    %4165 = vsyncpa %s4164, 1
    %4166 = vsyncpa [#allocation5], 1
    %s4167 = scalar_lea.sflag [#allocation5], 1
    %4168 = vsyncpa %s4167, 1
    %4169 = vsyncpa [#allocation8], 1
    %4170 = vsyncpa [#allocation11], 1
    %4171 = vsyncpa [#allocation14], 1
    %4172 = vsyncpa [#allocation17], 1
    %4173 = vsyncpa [#allocation20], 1
    %4174 = vsyncpa [#allocation23], 1
    %4175 = vsyncpa [#allocation26], 1
    %4176 = vsyncpa [#allocation29], 1

</llo_original>
